<compile_context>
chip_gen: v6e
topology: v6e:2x2x1
jax: 0.10.0
libtpu: 0.0.40
codegen_flags: <defaults>
</compile_context>

<pallas_src>
import jax
import jax.numpy as jnp
from jax.experimental import pallas as pl
from jax.experimental.pallas import tpu as pltpu

LANE = 128     # lane width / MXU-friendly padding target (works on v5e/v6e/v7x)
TILE_B = 128   # batch rows per grid step

# Hidden widths fixed by the PyTorch module definition.
HID_E1 = 200   # encoder_h1 hidden
HID_E2 = 100   # encoder_h2 hidden
HID_D1 = 100   # decoder_h1 hidden
HID_DX = 200   # decoder_x hidden


def _round_up(n, m):
    return (n + m - 1) // m * m


# -----------------------------------------------------------------------------
# kernel
# -----------------------------------------------------------------------------
def _linear(x_f32, w_ref, b_ref):
    # bf16 matmul operands (MXU-native), f32 accumulation, f32 bias add.
    return jnp.dot(x_f32.astype(jnp.bfloat16), w_ref[...],
                   preferred_element_type=jnp.float32) + b_ref[...]


def _block(x, w1, b1, w2, b2, wml, bml):
    # Block.forward: Linear->Tanh->Linear->Tanh, then fused (mu | log_sigma) head.
    t = jnp.tanh(_linear(x, w1, b1))
    t = jnp.tanh(_linear(t, w2, b2))
    ml = _linear(t, wml, bml)
    out = wml.shape[1] // 2          # static; lane-aligned split point
    return ml[:, :out], ml[:, out:]


def iwae_kernel(
    x_ref, eps1_ref, eps2_ref, eps3_ref,
    # encoder_h1 (Block dim_x -> 200 -> dim_h1), mu/logsigma heads fused
    e1_w1, e1_b1, e1_w2, e1_b2, e1_wml, e1_bml,
    # encoder_h2 (Block dim_h1 -> 100 -> dim_h2)
    e2_w1, e2_b1, e2_w2, e2_b2, e2_wml, e2_bml,
    # decoder_h1 (Block dim_h2 -> 100 -> dim_h1)
    d1_w1, d1_b1, d1_w2, d1_b2, d1_wml, d1_bml,
    # decoder_x (Linear dim_h1->200, Tanh, Linear 200->200, Tanh, Linear 200->dim_x)
    dx_w1, dx_b1, dx_w2, dx_b2, dx_w3, dx_b3,
    # outputs (all lane-padded to multiples of 128)
    h1_out, mu1_out, ls1_out, h2_out, mu2_out, ls2_out, p_out,
):
    x = x_ref[...]

    # ---- encoder ----
    mu1, ls1 = _block(x, e1_w1, e1_b1, e1_w2, e1_b2, e1_wml, e1_bml)
    h1 = mu1 + eps1_ref[...] * jnp.exp(0.5 * ls1)          # reparameterize (f32)

    mu2, ls2 = _block(h1, e2_w1, e2_b1, e2_w2, e2_b2, e2_wml, e2_bml)
    h2 = mu2 + eps2_ref[...] * jnp.exp(0.5 * ls2)          # reparameterize (f32)

    # ---- decoder ----
    mud, lsd = _block(h2, d1_w1, d1_b1, d1_w2, d1_b2, d1_wml, d1_bml)
    h1_dec = mud + eps3_ref[...] * jnp.exp(0.5 * lsd)      # reparameterize (f32)

    t = jnp.tanh(_linear(h1_dec, dx_w1, dx_b1))
    t = jnp.tanh(_linear(t, dx_w2, dx_b2))
    p = jax.nn.sigmoid(_linear(t, dx_w3, dx_b3))

    # forward() returns the *encoder* (h1, mu, log_sigma) tuples and p
    # (the decoder's h1 tuple is discarded, matching the PyTorch code).
    h1_out[...] = h1
    mu1_out[...] = mu1
    ls1_out[...] = ls1
    h2_out[...] = h2
    mu2_out[...] = mu2
    ls2_out[...] = ls2
    p_out[...] = p


# -----------------------------------------------------------------------------
# wrapper
# -----------------------------------------------------------------------------
def iwae_forward(x, eps1, eps2, eps3, params, *, tile_b=TILE_B):
    """x:[B,dim_x], eps1/eps3:[B,dim_h1], eps2:[B,dim_h2]; params from make_iwae_params."""
    B, dim_x = x.shape
    dim_h1 = eps1.shape[1]
    dim_h2 = eps2.shape[1]

    dxp = _round_up(dim_x, LANE)
    h1p = _round_up(dim_h1, LANE)
    h2p = _round_up(dim_h2, LANE)
    bp = _round_up(B, tile_b)

    def pad2(a, rows, cols):
        return jnp.pad(a, ((0, rows - a.shape[0]), (0, cols - a.shape[1])))

    xp = pad2(x, bp, dxp)
    e1p = pad2(eps1, bp, h1p)
    e2p = pad2(eps2, bp, h2p)
    e3p = pad2(eps3, bp, h1p)

    grid = (bp // tile_b,)

    def act_spec(cols):
        # streamed per-grid-step tiles (double-buffered by Pallas)
        return pl.BlockSpec((tile_b, cols), lambda i: (i, 0))

    def resident_spec(arr):
        # weights/biases: same block every step -> stay VMEM-resident
        return pl.BlockSpec(arr.shape, lambda i: (0, 0))

    in_specs = [act_spec(dxp), act_spec(h1p), act_spec(h2p), act_spec(h1p)]
    in_specs += [resident_spec(p_) for p_ in params]

    out_shapes = (
        jax.ShapeDtypeStruct((bp, h1p), jnp.float32),   # h1
        jax.ShapeDtypeStruct((bp, h1p), jnp.float32),   # mu_h1
        jax.ShapeDtypeStruct((bp, h1p), jnp.float32),   # log_sigma_h1
        jax.ShapeDtypeStruct((bp, h2p), jnp.float32),   # h2
        jax.ShapeDtypeStruct((bp, h2p), jnp.float32),   # mu_h2
        jax.ShapeDtypeStruct((bp, h2p), jnp.float32),   # log_sigma_h2
        jax.ShapeDtypeStruct((bp, dxp), jnp.float32),   # p
    )
    out_specs = (
        act_spec(h1p), act_spec(h1p), act_spec(h1p),
        act_spec(h2p), act_spec(h2p), act_spec(h2p),
        act_spec(dxp),
    )

    outs = pl.pallas_call(
        iwae_kernel,
        out_shape=out_shapes,
        grid=grid,
        in_specs=in_specs,
        out_specs=out_specs,
        compiler_params=pltpu.CompilerParams(
            dimension_semantics=("parallel",),   # megacore-shard batch on v7x
        ),
    )(xp, e1p, e2p, e3p, *params)

    h1, mu1, ls1, h2, mu2, ls2, p = outs
    # strip lane/batch padding back to logical shapes
    return (
        h1[:B, :dim_h1], mu1[:B, :dim_h1], ls1[:B, :dim_h1],
        h2[:B, :dim_h2], mu2[:B, :dim_h2], ls2[:B, :dim_h2],
        p[:B, :dim_x],
    )


# -----------------------------------------------------------------------------
# parameter construction (PyTorch-style init, then pad + fuse + cast)
# -----------------------------------------------------------------------------
def _init_linear(key, fan_in, fan_out):
    """Deterministic PyTorch-style Linear init: U(-1/sqrt(fan_in), 1/sqrt(fan_in))."""
    kw, kb = jax.random.split(key)
    bound = 1.0 / float(fan_in) ** 0.5
    w = jax.random.uniform(kw, (fan_in, fan_out), jnp.float32, -bound, bound)
    b = jax.random.uniform(kb, (1, fan_out), jnp.float32, -bound, bound)
    return w, b


def _pad_w(w, rows, cols):
    return jnp.pad(w, ((0, rows - w.shape[0]), (0, cols - w.shape[1])))


def _pad_b(b, cols):
    return jnp.pad(b, ((0, 0), (0, cols - b.shape[1])))


def _make_block_params(key, in_dim, hid_dim, out_dim, in_pad, hid_pad, out_pad):
    k1, k2, k3, k4 = jax.random.split(key, 4)
    w1, b1 = _init_linear(k1, in_dim, hid_dim)
    w2, b2 = _init_linear(k2, hid_dim, hid_dim)
    wmu, bmu = _init_linear(k3, hid_dim, out_dim)
    wls, bls = _init_linear(k4, hid_dim, out_dim)
    # fuse fc_mu | fc_logsigma into one [hid_pad, 2*out_pad] head; zero padding
    # keeps padded mu/log_sigma columns at 0 (so padded h columns stay 0 given
    # zero-padded eps).
    wml = jnp.zeros((hid_pad, 2 * out_pad), jnp.float32)
    wml = wml.at[:hid_dim, :out_dim].set(wmu)
    wml = wml.at[:hid_dim, out_pad:out_pad + out_dim].set(wls)
    bml = jnp.zeros((1, 2 * out_pad), jnp.float32)
    bml = bml.at[:, :out_dim].set(bmu)
    bml = bml.at[:, out_pad:out_pad + out_dim].set(bls)
    return [
        _pad_w(w1, in_pad, hid_pad).astype(jnp.bfloat16), _pad_b(b1, hid_pad),
        _pad_w(w2, hid_pad, hid_pad).astype(jnp.bfloat16), _pad_b(b2, hid_pad),
        wml.astype(jnp.bfloat16), bml,
    ]


def make_iwae_params(key, dim_h1, dim_h2, dim_x):
    h1p = _round_up(dim_h1, LANE)
    h2p = _round_up(dim_h2, LANE)
    dxp = _round_up(dim_x, LANE)
    he1 = _round_up(HID_E1, LANE)   # 200 -> 256
    he2 = _round_up(HID_E2, LANE)   # 100 -> 128
    hd1 = _round_up(HID_D1, LANE)   # 100 -> 128
    hdx = _round_up(HID_DX, LANE)   # 200 -> 256

    ke1, ke2, kd1, kdx = jax.random.split(key, 4)
    params = []
    params += _make_block_params(ke1, dim_x, HID_E1, dim_h1, dxp, he1, h1p)   # encoder_h1
    params += _make_block_params(ke2, dim_h1, HID_E2, dim_h2, h1p, he2, h2p)  # encoder_h2
    params += _make_block_params(kd1, dim_h2, HID_D1, dim_h1, h2p, hd1, h1p)  # decoder_h1
    kx1, kx2, kx3 = jax.random.split(kdx, 3)
    w1, b1 = _init_linear(kx1, dim_h1, HID_DX)                                # decoder_x
    w2, b2 = _init_linear(kx2, HID_DX, HID_DX)
    w3, b3 = _init_linear(kx3, HID_DX, dim_x)
    params += [
        _pad_w(w1, h1p, hdx).astype(jnp.bfloat16), _pad_b(b1, hdx),
        _pad_w(w2, hdx, hdx).astype(jnp.bfloat16), _pad_b(b2, hdx),
        _pad_w(w3, hdx, dxp).astype(jnp.bfloat16), _pad_b(b3, dxp),
    ]
    return params


if __name__ == "__main__":
    # Small IWAE config (MNIST would be dim_x=784; we use a small synthetic size).
    # To amortize further, fold the IWAE importance-sample dimension k into B
    # before calling iwae_forward (one call with M=B*k rather than k calls).
    B, dim_x, dim_h1, dim_h2 = 8, 256, 64, 32

    key = jax.random.PRNGKey(0)
    kx, ke1, ke2, ke3, kp = jax.random.split(key, 5)

    # Inputs in [0, 1], like normalized flattened MNIST pixels.
    x = jax.random.uniform(kx, (B, dim_x), jnp.float32)
    eps1 = jax.random.normal(ke1, (B, dim_h1), jnp.float32)   # encoder h1 noise
    eps2 = jax.random.normal(ke2, (B, dim_h2), jnp.float32)   # encoder h2 noise
    eps3 = jax.random.normal(ke3, (B, dim_h1), jnp.float32)   # decoder h1 noise

    params = make_iwae_params(kp, dim_h1, dim_h2, dim_x)

    outs = iwae_forward(x, eps1, eps2, eps3, params)
    outs = jax.block_until_ready(outs)

    h1, mu1, ls1, h2, mu2, ls2, p = outs
    assert h1.shape == (B, dim_h1) and h2.shape == (B, dim_h2) and p.shape == (B, dim_x)
    assert bool(jnp.all(jnp.isfinite(p))) and bool(jnp.all((p > 0) & (p < 1)))
    assert all(bool(jnp.all(jnp.isfinite(o))) for o in outs)

    print("KERNEL_OK")
</pallas_src>

<mosaic_0001>
module attributes {stable_mosaic.version = 11 : i64} {
  func.func @iwae_kernel(%arg0: i32, %arg1: memref<128x256xf32, #tpu.memory_space<vmem>>, %arg2: memref<128x128xf32, #tpu.memory_space<vmem>>, %arg3: memref<128x128xf32, #tpu.memory_space<vmem>>, %arg4: memref<128x128xf32, #tpu.memory_space<vmem>>, %arg5: memref<256x256xbf16, #tpu.memory_space<vmem>>, %arg6: memref<1x256xf32, #tpu.memory_space<vmem>>, %arg7: memref<256x256xbf16, #tpu.memory_space<vmem>>, %arg8: memref<1x256xf32, #tpu.memory_space<vmem>>, %arg9: memref<256x256xbf16, #tpu.memory_space<vmem>>, %arg10: memref<1x256xf32, #tpu.memory_space<vmem>>, %arg11: memref<128x128xbf16, #tpu.memory_space<vmem>>, %arg12: memref<1x128xf32, #tpu.memory_space<vmem>>, %arg13: memref<128x128xbf16, #tpu.memory_space<vmem>>, %arg14: memref<1x128xf32, #tpu.memory_space<vmem>>, %arg15: memref<128x256xbf16, #tpu.memory_space<vmem>>, %arg16: memref<1x256xf32, #tpu.memory_space<vmem>>, %arg17: memref<128x128xbf16, #tpu.memory_space<vmem>>, %arg18: memref<1x128xf32, #tpu.memory_space<vmem>>, %arg19: memref<128x128xbf16, #tpu.memory_space<vmem>>, %arg20: memref<1x128xf32, #tpu.memory_space<vmem>>, %arg21: memref<128x256xbf16, #tpu.memory_space<vmem>>, %arg22: memref<1x256xf32, #tpu.memory_space<vmem>>, %arg23: memref<128x256xbf16, #tpu.memory_space<vmem>>, %arg24: memref<1x256xf32, #tpu.memory_space<vmem>>, %arg25: memref<256x256xbf16, #tpu.memory_space<vmem>>, %arg26: memref<1x256xf32, #tpu.memory_space<vmem>>, %arg27: memref<256x256xbf16, #tpu.memory_space<vmem>>, %arg28: memref<1x256xf32, #tpu.memory_space<vmem>>, %arg29: memref<128x128xf32, #tpu.memory_space<vmem>>, %arg30: memref<128x128xf32, #tpu.memory_space<vmem>>, %arg31: memref<128x128xf32, #tpu.memory_space<vmem>>, %arg32: memref<128x128xf32, #tpu.memory_space<vmem>>, %arg33: memref<128x128xf32, #tpu.memory_space<vmem>>, %arg34: memref<128x128xf32, #tpu.memory_space<vmem>>, %arg35: memref<128x256xf32, #tpu.memory_space<vmem>>) attributes {dimension_semantics = [#tpu.dimension_semantics<parallel>], iteration_bounds = array<i64: 1>, scalar_prefetch = 0 : i64, scratch_operands = 0 : i64, tpu.core_type = #tpu.core_type<tc>, window_params = [{transform_indices = @transform_0, window_bounds = array<i64: 128, 256>}, {transform_indices = @transform_1, window_bounds = array<i64: 128, 128>}, {transform_indices = @transform_2, window_bounds = array<i64: 128, 128>}, {transform_indices = @transform_3, window_bounds = array<i64: 128, 128>}, {pipeline_mode = #tpu.pipeline_mode<synchronous>, transform_indices = @transform_4, window_bounds = array<i64: 256, 256>}, {pipeline_mode = #tpu.pipeline_mode<synchronous>, transform_indices = @transform_5, window_bounds = array<i64: 1, 256>}, {pipeline_mode = #tpu.pipeline_mode<synchronous>, transform_indices = @transform_6, window_bounds = array<i64: 256, 256>}, {pipeline_mode = #tpu.pipeline_mode<synchronous>, transform_indices = @transform_7, window_bounds = array<i64: 1, 256>}, {pipeline_mode = #tpu.pipeline_mode<synchronous>, transform_indices = @transform_8, window_bounds = array<i64: 256, 256>}, {pipeline_mode = #tpu.pipeline_mode<synchronous>, transform_indices = @transform_9, window_bounds = array<i64: 1, 256>}, {pipeline_mode = #tpu.pipeline_mode<synchronous>, transform_indices = @transform_10, window_bounds = array<i64: 128, 128>}, {pipeline_mode = #tpu.pipeline_mode<synchronous>, transform_indices = @transform_11, window_bounds = array<i64: 1, 128>}, {pipeline_mode = #tpu.pipeline_mode<synchronous>, transform_indices = @transform_12, window_bounds = array<i64: 128, 128>}, {pipeline_mode = #tpu.pipeline_mode<synchronous>, transform_indices = @transform_13, window_bounds = array<i64: 1, 128>}, {pipeline_mode = #tpu.pipeline_mode<synchronous>, transform_indices = @transform_14, window_bounds = array<i64: 128, 256>}, {pipeline_mode = #tpu.pipeline_mode<synchronous>, transform_indices = @transform_15, window_bounds = array<i64: 1, 256>}, {pipeline_mode = #tpu.pipeline_mode<synchronous>, transform_indices = @transform_16, window_bounds = array<i64: 128, 128>}, {pipeline_mode = #tpu.pipeline_mode<synchronous>, transform_indices = @transform_17, window_bounds = array<i64: 1, 128>}, {pipeline_mode = #tpu.pipeline_mode<synchronous>, transform_indices = @transform_18, window_bounds = array<i64: 128, 128>}, {pipeline_mode = #tpu.pipeline_mode<synchronous>, transform_indices = @transform_19, window_bounds = array<i64: 1, 128>}, {pipeline_mode = #tpu.pipeline_mode<synchronous>, transform_indices = @transform_20, window_bounds = array<i64: 128, 256>}, {pipeline_mode = #tpu.pipeline_mode<synchronous>, transform_indices = @transform_21, window_bounds = array<i64: 1, 256>}, {pipeline_mode = #tpu.pipeline_mode<synchronous>, transform_indices = @transform_22, window_bounds = array<i64: 128, 256>}, {pipeline_mode = #tpu.pipeline_mode<synchronous>, transform_indices = @transform_23, window_bounds = array<i64: 1, 256>}, {pipeline_mode = #tpu.pipeline_mode<synchronous>, transform_indices = @transform_24, window_bounds = array<i64: 256, 256>}, {pipeline_mode = #tpu.pipeline_mode<synchronous>, transform_indices = @transform_25, window_bounds = array<i64: 1, 256>}, {pipeline_mode = #tpu.pipeline_mode<synchronous>, transform_indices = @transform_26, window_bounds = array<i64: 256, 256>}, {pipeline_mode = #tpu.pipeline_mode<synchronous>, transform_indices = @transform_27, window_bounds = array<i64: 1, 256>}, {transform_indices = @transform_28, window_bounds = array<i64: 128, 128>}, {transform_indices = @transform_29, window_bounds = array<i64: 128, 128>}, {transform_indices = @transform_30, window_bounds = array<i64: 128, 128>}, {transform_indices = @transform_31, window_bounds = array<i64: 128, 128>}, {transform_indices = @transform_32, window_bounds = array<i64: 128, 128>}, {transform_indices = @transform_33, window_bounds = array<i64: 128, 128>}, {transform_indices = @transform_34, window_bounds = array<i64: 128, 256>}]} {
    %c0 = arith.constant 0 : index
    %c0_0 = arith.constant 0 : index
    %0 = vector.load %arg1[%c0, %c0_0] : memref<128x256xf32, #tpu.memory_space<vmem>>, vector<128x256xf32>
    %1 = arith.truncf %0 : vector<128x256xf32> to vector<128x256xbf16>
    %c0_1 = arith.constant 0 : index
    %c0_2 = arith.constant 0 : index
    %2 = vector.load %arg5[%c0_1, %c0_2] : memref<256x256xbf16, #tpu.memory_space<vmem>>, vector<256x256xbf16>
    %cst = arith.constant dense<0.000000e+00> : vector<128x256xf32>
    %3 = tpu.matmul %1, %2, %cst {dimension_numbers = #tpu.dot_dimension_numbers<[1], [0], [0], [1], [0, 0, 1, 1], [], []>} : vector<128x256xbf16>, vector<256x256xbf16>, vector<128x256xf32> -> vector<128x256xf32>
    %c0_3 = arith.constant 0 : index
    %c0_4 = arith.constant 0 : index
    %4 = vector.load %arg6[%c0_3, %c0_4] : memref<1x256xf32, #tpu.memory_space<vmem>>, vector<1x256xf32>
    %5 = vector.broadcast %4 : vector<1x256xf32> to vector<128x256xf32>
    %6 = arith.addf %3, %5 : vector<128x256xf32>
    %7 = math.tanh %6 : vector<128x256xf32>
    %8 = arith.truncf %7 : vector<128x256xf32> to vector<128x256xbf16>
    %c0_5 = arith.constant 0 : index
    %c0_6 = arith.constant 0 : index
    %9 = vector.load %arg7[%c0_5, %c0_6] : memref<256x256xbf16, #tpu.memory_space<vmem>>, vector<256x256xbf16>
    %cst_7 = arith.constant dense<0.000000e+00> : vector<128x256xf32>
    %10 = tpu.matmul %8, %9, %cst_7 {dimension_numbers = #tpu.dot_dimension_numbers<[1], [0], [0], [1], [0, 0, 1, 1], [], []>} : vector<128x256xbf16>, vector<256x256xbf16>, vector<128x256xf32> -> vector<128x256xf32>
    %c0_8 = arith.constant 0 : index
    %c0_9 = arith.constant 0 : index
    %11 = vector.load %arg8[%c0_8, %c0_9] : memref<1x256xf32, #tpu.memory_space<vmem>>, vector<1x256xf32>
    %12 = vector.broadcast %11 : vector<1x256xf32> to vector<128x256xf32>
    %13 = arith.addf %10, %12 : vector<128x256xf32>
    %14 = math.tanh %13 : vector<128x256xf32>
    %15 = arith.truncf %14 : vector<128x256xf32> to vector<128x256xbf16>
    %c0_10 = arith.constant 0 : index
    %c0_11 = arith.constant 0 : index
    %16 = vector.load %arg9[%c0_10, %c0_11] : memref<256x256xbf16, #tpu.memory_space<vmem>>, vector<256x256xbf16>
    %cst_12 = arith.constant dense<0.000000e+00> : vector<128x256xf32>
    %17 = tpu.matmul %15, %16, %cst_12 {dimension_numbers = #tpu.dot_dimension_numbers<[1], [0], [0], [1], [0, 0, 1, 1], [], []>} : vector<128x256xbf16>, vector<256x256xbf16>, vector<128x256xf32> -> vector<128x256xf32>
    %c0_13 = arith.constant 0 : index
    %c0_14 = arith.constant 0 : index
    %18 = vector.load %arg10[%c0_13, %c0_14] : memref<1x256xf32, #tpu.memory_space<vmem>>, vector<1x256xf32>
    %19 = vector.broadcast %18 : vector<1x256xf32> to vector<128x256xf32>
    %20 = arith.addf %17, %19 : vector<128x256xf32>
    %21 = vector.extract_strided_slice %20 {offsets = [0, 0], sizes = [128, 128], strides = [1, 1]} : vector<128x256xf32> to vector<128x128xf32>
    %22 = vector.extract_strided_slice %20 {offsets = [0, 128], sizes = [128, 128], strides = [1, 1]} : vector<128x256xf32> to vector<128x128xf32>
    %c0_15 = arith.constant 0 : index
    %c0_16 = arith.constant 0 : index
    %23 = vector.load %arg2[%c0_15, %c0_16] : memref<128x128xf32, #tpu.memory_space<vmem>>, vector<128x128xf32>
    %cst_17 = arith.constant 5.000000e-01 : f32
    %24 = vector.broadcast %cst_17 : f32 to vector<128x128xf32>
    %25 = arith.mulf %24, %22 : vector<128x128xf32>
    %26 = math.exp %25 : vector<128x128xf32>
    %27 = arith.mulf %23, %26 : vector<128x128xf32>
    %28 = arith.addf %21, %27 : vector<128x128xf32>
    %29 = arith.truncf %28 : vector<128x128xf32> to vector<128x128xbf16>
    %c0_18 = arith.constant 0 : index
    %c0_19 = arith.constant 0 : index
    %30 = vector.load %arg11[%c0_18, %c0_19] : memref<128x128xbf16, #tpu.memory_space<vmem>>, vector<128x128xbf16>
    %cst_20 = arith.constant dense<0.000000e+00> : vector<128x128xf32>
    %31 = tpu.matmul %29, %30, %cst_20 {dimension_numbers = #tpu.dot_dimension_numbers<[1], [0], [0], [1], [0, 0, 1, 1], [], []>} : vector<128x128xbf16>, vector<128x128xbf16>, vector<128x128xf32> -> vector<128x128xf32>
    %c0_21 = arith.constant 0 : index
    %c0_22 = arith.constant 0 : index
    %32 = vector.load %arg12[%c0_21, %c0_22] : memref<1x128xf32, #tpu.memory_space<vmem>>, vector<1x128xf32>
    %33 = vector.broadcast %32 : vector<1x128xf32> to vector<128x128xf32>
    %34 = arith.addf %31, %33 : vector<128x128xf32>
    %35 = math.tanh %34 : vector<128x128xf32>
    %36 = arith.truncf %35 : vector<128x128xf32> to vector<128x128xbf16>
    %c0_23 = arith.constant 0 : index
    %c0_24 = arith.constant 0 : index
    %37 = vector.load %arg13[%c0_23, %c0_24] : memref<128x128xbf16, #tpu.memory_space<vmem>>, vector<128x128xbf16>
    %cst_25 = arith.constant dense<0.000000e+00> : vector<128x128xf32>
    %38 = tpu.matmul %36, %37, %cst_25 {dimension_numbers = #tpu.dot_dimension_numbers<[1], [0], [0], [1], [0, 0, 1, 1], [], []>} : vector<128x128xbf16>, vector<128x128xbf16>, vector<128x128xf32> -> vector<128x128xf32>
    %c0_26 = arith.constant 0 : index
    %c0_27 = arith.constant 0 : index
    %39 = vector.load %arg14[%c0_26, %c0_27] : memref<1x128xf32, #tpu.memory_space<vmem>>, vector<1x128xf32>
    %40 = vector.broadcast %39 : vector<1x128xf32> to vector<128x128xf32>
    %41 = arith.addf %38, %40 : vector<128x128xf32>
    %42 = math.tanh %41 : vector<128x128xf32>
    %43 = arith.truncf %42 : vector<128x128xf32> to vector<128x128xbf16>
    %c0_28 = arith.constant 0 : index
    %c0_29 = arith.constant 0 : index
    %44 = vector.load %arg15[%c0_28, %c0_29] : memref<128x256xbf16, #tpu.memory_space<vmem>>, vector<128x256xbf16>
    %cst_30 = arith.constant dense<0.000000e+00> : vector<128x256xf32>
    %45 = tpu.matmul %43, %44, %cst_30 {dimension_numbers = #tpu.dot_dimension_numbers<[1], [0], [0], [1], [0, 0, 1, 1], [], []>} : vector<128x128xbf16>, vector<128x256xbf16>, vector<128x256xf32> -> vector<128x256xf32>
    %c0_31 = arith.constant 0 : index
    %c0_32 = arith.constant 0 : index
    %46 = vector.load %arg16[%c0_31, %c0_32] : memref<1x256xf32, #tpu.memory_space<vmem>>, vector<1x256xf32>
    %47 = vector.broadcast %46 : vector<1x256xf32> to vector<128x256xf32>
    %48 = arith.addf %45, %47 : vector<128x256xf32>
    %49 = vector.extract_strided_slice %48 {offsets = [0, 0], sizes = [128, 128], strides = [1, 1]} : vector<128x256xf32> to vector<128x128xf32>
    %50 = vector.extract_strided_slice %48 {offsets = [0, 128], sizes = [128, 128], strides = [1, 1]} : vector<128x256xf32> to vector<128x128xf32>
    %c0_33 = arith.constant 0 : index
    %c0_34 = arith.constant 0 : index
    %51 = vector.load %arg3[%c0_33, %c0_34] : memref<128x128xf32, #tpu.memory_space<vmem>>, vector<128x128xf32>
    %cst_35 = arith.constant 5.000000e-01 : f32
    %52 = vector.broadcast %cst_35 : f32 to vector<128x128xf32>
    %53 = arith.mulf %52, %50 : vector<128x128xf32>
    %54 = math.exp %53 : vector<128x128xf32>
    %55 = arith.mulf %51, %54 : vector<128x128xf32>
    %56 = arith.addf %49, %55 : vector<128x128xf32>
    %57 = arith.truncf %56 : vector<128x128xf32> to vector<128x128xbf16>
    %c0_36 = arith.constant 0 : index
    %c0_37 = arith.constant 0 : index
    %58 = vector.load %arg17[%c0_36, %c0_37] : memref<128x128xbf16, #tpu.memory_space<vmem>>, vector<128x128xbf16>
    %cst_38 = arith.constant dense<0.000000e+00> : vector<128x128xf32>
    %59 = tpu.matmul %57, %58, %cst_38 {dimension_numbers = #tpu.dot_dimension_numbers<[1], [0], [0], [1], [0, 0, 1, 1], [], []>} : vector<128x128xbf16>, vector<128x128xbf16>, vector<128x128xf32> -> vector<128x128xf32>
    %c0_39 = arith.constant 0 : index
    %c0_40 = arith.constant 0 : index
    %60 = vector.load %arg18[%c0_39, %c0_40] : memref<1x128xf32, #tpu.memory_space<vmem>>, vector<1x128xf32>
    %61 = vector.broadcast %60 : vector<1x128xf32> to vector<128x128xf32>
    %62 = arith.addf %59, %61 : vector<128x128xf32>
    %63 = math.tanh %62 : vector<128x128xf32>
    %64 = arith.truncf %63 : vector<128x128xf32> to vector<128x128xbf16>
    %c0_41 = arith.constant 0 : index
    %c0_42 = arith.constant 0 : index
    %65 = vector.load %arg19[%c0_41, %c0_42] : memref<128x128xbf16, #tpu.memory_space<vmem>>, vector<128x128xbf16>
    %cst_43 = arith.constant dense<0.000000e+00> : vector<128x128xf32>
    %66 = tpu.matmul %64, %65, %cst_43 {dimension_numbers = #tpu.dot_dimension_numbers<[1], [0], [0], [1], [0, 0, 1, 1], [], []>} : vector<128x128xbf16>, vector<128x128xbf16>, vector<128x128xf32> -> vector<128x128xf32>
    %c0_44 = arith.constant 0 : index
    %c0_45 = arith.constant 0 : index
    %67 = vector.load %arg20[%c0_44, %c0_45] : memref<1x128xf32, #tpu.memory_space<vmem>>, vector<1x128xf32>
    %68 = vector.broadcast %67 : vector<1x128xf32> to vector<128x128xf32>
    %69 = arith.addf %66, %68 : vector<128x128xf32>
    %70 = math.tanh %69 : vector<128x128xf32>
    %71 = arith.truncf %70 : vector<128x128xf32> to vector<128x128xbf16>
    %c0_46 = arith.constant 0 : index
    %c0_47 = arith.constant 0 : index
    %72 = vector.load %arg21[%c0_46, %c0_47] : memref<128x256xbf16, #tpu.memory_space<vmem>>, vector<128x256xbf16>
    %cst_48 = arith.constant dense<0.000000e+00> : vector<128x256xf32>
    %73 = tpu.matmul %71, %72, %cst_48 {dimension_numbers = #tpu.dot_dimension_numbers<[1], [0], [0], [1], [0, 0, 1, 1], [], []>} : vector<128x128xbf16>, vector<128x256xbf16>, vector<128x256xf32> -> vector<128x256xf32>
    %c0_49 = arith.constant 0 : index
    %c0_50 = arith.constant 0 : index
    %74 = vector.load %arg22[%c0_49, %c0_50] : memref<1x256xf32, #tpu.memory_space<vmem>>, vector<1x256xf32>
    %75 = vector.broadcast %74 : vector<1x256xf32> to vector<128x256xf32>
    %76 = arith.addf %73, %75 : vector<128x256xf32>
    %77 = vector.extract_strided_slice %76 {offsets = [0, 0], sizes = [128, 128], strides = [1, 1]} : vector<128x256xf32> to vector<128x128xf32>
    %78 = vector.extract_strided_slice %76 {offsets = [0, 128], sizes = [128, 128], strides = [1, 1]} : vector<128x256xf32> to vector<128x128xf32>
    %c0_51 = arith.constant 0 : index
    %c0_52 = arith.constant 0 : index
    %79 = vector.load %arg4[%c0_51, %c0_52] : memref<128x128xf32, #tpu.memory_space<vmem>>, vector<128x128xf32>
    %cst_53 = arith.constant 5.000000e-01 : f32
    %80 = vector.broadcast %cst_53 : f32 to vector<128x128xf32>
    %81 = arith.mulf %80, %78 : vector<128x128xf32>
    %82 = math.exp %81 : vector<128x128xf32>
    %83 = arith.mulf %79, %82 : vector<128x128xf32>
    %84 = arith.addf %77, %83 : vector<128x128xf32>
    %85 = arith.truncf %84 : vector<128x128xf32> to vector<128x128xbf16>
    %c0_54 = arith.constant 0 : index
    %c0_55 = arith.constant 0 : index
    %86 = vector.load %arg23[%c0_54, %c0_55] : memref<128x256xbf16, #tpu.memory_space<vmem>>, vector<128x256xbf16>
    %cst_56 = arith.constant dense<0.000000e+00> : vector<128x256xf32>
    %87 = tpu.matmul %85, %86, %cst_56 {dimension_numbers = #tpu.dot_dimension_numbers<[1], [0], [0], [1], [0, 0, 1, 1], [], []>} : vector<128x128xbf16>, vector<128x256xbf16>, vector<128x256xf32> -> vector<128x256xf32>
    %c0_57 = arith.constant 0 : index
    %c0_58 = arith.constant 0 : index
    %88 = vector.load %arg24[%c0_57, %c0_58] : memref<1x256xf32, #tpu.memory_space<vmem>>, vector<1x256xf32>
    %89 = vector.broadcast %88 : vector<1x256xf32> to vector<128x256xf32>
    %90 = arith.addf %87, %89 : vector<128x256xf32>
    %91 = math.tanh %90 : vector<128x256xf32>
    %92 = arith.truncf %91 : vector<128x256xf32> to vector<128x256xbf16>
    %c0_59 = arith.constant 0 : index
    %c0_60 = arith.constant 0 : index
    %93 = vector.load %arg25[%c0_59, %c0_60] : memref<256x256xbf16, #tpu.memory_space<vmem>>, vector<256x256xbf16>
    %cst_61 = arith.constant dense<0.000000e+00> : vector<128x256xf32>
    %94 = tpu.matmul %92, %93, %cst_61 {dimension_numbers = #tpu.dot_dimension_numbers<[1], [0], [0], [1], [0, 0, 1, 1], [], []>} : vector<128x256xbf16>, vector<256x256xbf16>, vector<128x256xf32> -> vector<128x256xf32>
    %c0_62 = arith.constant 0 : index
    %c0_63 = arith.constant 0 : index
    %95 = vector.load %arg26[%c0_62, %c0_63] : memref<1x256xf32, #tpu.memory_space<vmem>>, vector<1x256xf32>
    %96 = vector.broadcast %95 : vector<1x256xf32> to vector<128x256xf32>
    %97 = arith.addf %94, %96 : vector<128x256xf32>
    %98 = math.tanh %97 : vector<128x256xf32>
    %99 = arith.truncf %98 : vector<128x256xf32> to vector<128x256xbf16>
    %c0_64 = arith.constant 0 : index
    %c0_65 = arith.constant 0 : index
    %100 = vector.load %arg27[%c0_64, %c0_65] : memref<256x256xbf16, #tpu.memory_space<vmem>>, vector<256x256xbf16>
    %cst_66 = arith.constant dense<0.000000e+00> : vector<128x256xf32>
    %101 = tpu.matmul %99, %100, %cst_66 {dimension_numbers = #tpu.dot_dimension_numbers<[1], [0], [0], [1], [0, 0, 1, 1], [], []>} : vector<128x256xbf16>, vector<256x256xbf16>, vector<128x256xf32> -> vector<128x256xf32>
    %c0_67 = arith.constant 0 : index
    %c0_68 = arith.constant 0 : index
    %102 = vector.load %arg28[%c0_67, %c0_68] : memref<1x256xf32, #tpu.memory_space<vmem>>, vector<1x256xf32>
    %103 = vector.broadcast %102 : vector<1x256xf32> to vector<128x256xf32>
    %104 = arith.addf %101, %103 : vector<128x256xf32>
    %105 = arith.negf %104 : vector<128x256xf32>
    %106 = math.exp %105 : vector<128x256xf32>
    %cst_69 = arith.constant 1.000000e+00 : f32
    %107 = vector.broadcast %cst_69 : f32 to vector<128x256xf32>
    %108 = arith.addf %107, %106 : vector<128x256xf32>
    %109 = arith.divf %107, %108 : vector<128x256xf32>
    %c0_70 = arith.constant 0 : index
    %c0_71 = arith.constant 0 : index
    %110 = vector.load %arg29[%c0_70, %c0_71] : memref<128x128xf32, #tpu.memory_space<vmem>>, vector<128x128xf32>
    tpu.vector_store %arg29[%c0_70, %c0_71], %28 {strides = array<i32>} : memref<128x128xf32, #tpu.memory_space<vmem>>, vector<128x128xf32>,
    %c0_72 = arith.constant 0 : index
    %c0_73 = arith.constant 0 : index
    %111 = vector.load %arg30[%c0_72, %c0_73] : memref<128x128xf32, #tpu.memory_space<vmem>>, vector<128x128xf32>
    tpu.vector_store %arg30[%c0_72, %c0_73], %21 {strides = array<i32>} : memref<128x128xf32, #tpu.memory_space<vmem>>, vector<128x128xf32>,
    %c0_74 = arith.constant 0 : index
    %c0_75 = arith.constant 0 : index
    %112 = vector.load %arg31[%c0_74, %c0_75] : memref<128x128xf32, #tpu.memory_space<vmem>>, vector<128x128xf32>
    tpu.vector_store %arg31[%c0_74, %c0_75], %22 {strides = array<i32>} : memref<128x128xf32, #tpu.memory_space<vmem>>, vector<128x128xf32>,
    %c0_76 = arith.constant 0 : index
    %c0_77 = arith.constant 0 : index
    %113 = vector.load %arg32[%c0_76, %c0_77] : memref<128x128xf32, #tpu.memory_space<vmem>>, vector<128x128xf32>
    tpu.vector_store %arg32[%c0_76, %c0_77], %56 {strides = array<i32>} : memref<128x128xf32, #tpu.memory_space<vmem>>, vector<128x128xf32>,
    %c0_78 = arith.constant 0 : index
    %c0_79 = arith.constant 0 : index
    %114 = vector.load %arg33[%c0_78, %c0_79] : memref<128x128xf32, #tpu.memory_space<vmem>>, vector<128x128xf32>
    tpu.vector_store %arg33[%c0_78, %c0_79], %49 {strides = array<i32>} : memref<128x128xf32, #tpu.memory_space<vmem>>, vector<128x128xf32>,
    %c0_80 = arith.constant 0 : index
    %c0_81 = arith.constant 0 : index
    %115 = vector.load %arg34[%c0_80, %c0_81] : memref<128x128xf32, #tpu.memory_space<vmem>>, vector<128x128xf32>
    tpu.vector_store %arg34[%c0_80, %c0_81], %50 {strides = array<i32>} : memref<128x128xf32, #tpu.memory_space<vmem>>, vector<128x128xf32>,
    %c0_82 = arith.constant 0 : index
    %c0_83 = arith.constant 0 : index
    %116 = vector.load %arg35[%c0_82, %c0_83] : memref<128x256xf32, #tpu.memory_space<vmem>>, vector<128x256xf32>
    tpu.vector_store %arg35[%c0_82, %c0_83], %109 {strides = array<i32>} : memref<128x256xf32, #tpu.memory_space<vmem>>, vector<128x256xf32>,
    return
  }
  func.func @transform_0(%arg0: i32) -> (i32, i32) {
    %c0_i32 = arith.constant 0 : i32
    %c0_i32_0 = arith.constant 0 : i32
    return %arg0, %c0_i32 : i32, i32
  }
  func.func @transform_1(%arg0: i32) -> (i32, i32) {
    %c0_i32 = arith.constant 0 : i32
    %c0_i32_0 = arith.constant 0 : i32
    return %arg0, %c0_i32 : i32, i32
  }
  func.func @transform_2(%arg0: i32) -> (i32, i32) {
    %c0_i32 = arith.constant 0 : i32
    %c0_i32_0 = arith.constant 0 : i32
    return %arg0, %c0_i32 : i32, i32
  }
  func.func @transform_3(%arg0: i32) -> (i32, i32) {
    %c0_i32 = arith.constant 0 : i32
    %c0_i32_0 = arith.constant 0 : i32
    return %arg0, %c0_i32 : i32, i32
  }
  func.func @transform_4(%arg0: i32) -> (i32, i32) {
    %c0_i32 = arith.constant 0 : i32
    %c0_i32_0 = arith.constant 0 : i32
    %c0_i32_1 = arith.constant 0 : i32
    return %c0_i32, %c0_i32_0 : i32, i32
  }
  func.func @transform_5(%arg0: i32) -> (i32, i32) {
    %c0_i32 = arith.constant 0 : i32
    %c0_i32_0 = arith.constant 0 : i32
    %c0_i32_1 = arith.constant 0 : i32
    return %c0_i32, %c0_i32_0 : i32, i32
  }
  func.func @transform_6(%arg0: i32) -> (i32, i32) {
    %c0_i32 = arith.constant 0 : i32
    %c0_i32_0 = arith.constant 0 : i32
    %c0_i32_1 = arith.constant 0 : i32
    return %c0_i32, %c0_i32_0 : i32, i32
  }
  func.func @transform_7(%arg0: i32) -> (i32, i32) {
    %c0_i32 = arith.constant 0 : i32
    %c0_i32_0 = arith.constant 0 : i32
    %c0_i32_1 = arith.constant 0 : i32
    return %c0_i32, %c0_i32_0 : i32, i32
  }
  func.func @transform_8(%arg0: i32) -> (i32, i32) {
    %c0_i32 = arith.constant 0 : i32
    %c0_i32_0 = arith.constant 0 : i32
    %c0_i32_1 = arith.constant 0 : i32
    return %c0_i32, %c0_i32_0 : i32, i32
  }
  func.func @transform_9(%arg0: i32) -> (i32, i32) {
    %c0_i32 = arith.constant 0 : i32
    %c0_i32_0 = arith.constant 0 : i32
    %c0_i32_1 = arith.constant 0 : i32
    return %c0_i32, %c0_i32_0 : i32, i32
  }
  func.func @transform_10(%arg0: i32) -> (i32, i32) {
    %c0_i32 = arith.constant 0 : i32
    %c0_i32_0 = arith.constant 0 : i32
    %c0_i32_1 = arith.constant 0 : i32
    return %c0_i32, %c0_i32_0 : i32, i32
  }
  func.func @transform_11(%arg0: i32) -> (i32, i32) {
    %c0_i32 = arith.constant 0 : i32
    %c0_i32_0 = arith.constant 0 : i32
    %c0_i32_1 = arith.constant 0 : i32
    return %c0_i32, %c0_i32_0 : i32, i32
  }
  func.func @transform_12(%arg0: i32) -> (i32, i32) {
    %c0_i32 = arith.constant 0 : i32
    %c0_i32_0 = arith.constant 0 : i32
    %c0_i32_1 = arith.constant 0 : i32
    return %c0_i32, %c0_i32_0 : i32, i32
  }
  func.func @transform_13(%arg0: i32) -> (i32, i32) {
    %c0_i32 = arith.constant 0 : i32
    %c0_i32_0 = arith.constant 0 : i32
    %c0_i32_1 = arith.constant 0 : i32
    return %c0_i32, %c0_i32_0 : i32, i32
  }
  func.func @transform_14(%arg0: i32) -> (i32, i32) {
    %c0_i32 = arith.constant 0 : i32
    %c0_i32_0 = arith.constant 0 : i32
    %c0_i32_1 = arith.constant 0 : i32
    return %c0_i32, %c0_i32_0 : i32, i32
  }
  func.func @transform_15(%arg0: i32) -> (i32, i32) {
    %c0_i32 = arith.constant 0 : i32
    %c0_i32_0 = arith.constant 0 : i32
    %c0_i32_1 = arith.constant 0 : i32
    return %c0_i32, %c0_i32_0 : i32, i32
  }
  func.func @transform_16(%arg0: i32) -> (i32, i32) {
    %c0_i32 = arith.constant 0 : i32
    %c0_i32_0 = arith.constant 0 : i32
    %c0_i32_1 = arith.constant 0 : i32
    return %c0_i32, %c0_i32_0 : i32, i32
  }
  func.func @transform_17(%arg0: i32) -> (i32, i32) {
    %c0_i32 = arith.constant 0 : i32
    %c0_i32_0 = arith.constant 0 : i32
    %c0_i32_1 = arith.constant 0 : i32
    return %c0_i32, %c0_i32_0 : i32, i32
  }
  func.func @transform_18(%arg0: i32) -> (i32, i32) {
    %c0_i32 = arith.constant 0 : i32
    %c0_i32_0 = arith.constant 0 : i32
    %c0_i32_1 = arith.constant 0 : i32
    return %c0_i32, %c0_i32_0 : i32, i32
  }
  func.func @transform_19(%arg0: i32) -> (i32, i32) {
    %c0_i32 = arith.constant 0 : i32
    %c0_i32_0 = arith.constant 0 : i32
    %c0_i32_1 = arith.constant 0 : i32
    return %c0_i32, %c0_i32_0 : i32, i32
  }
  func.func @transform_20(%arg0: i32) -> (i32, i32) {
    %c0_i32 = arith.constant 0 : i32
    %c0_i32_0 = arith.constant 0 : i32
    %c0_i32_1 = arith.constant 0 : i32
    return %c0_i32, %c0_i32_0 : i32, i32
  }
  func.func @transform_21(%arg0: i32) -> (i32, i32) {
    %c0_i32 = arith.constant 0 : i32
    %c0_i32_0 = arith.constant 0 : i32
    %c0_i32_1 = arith.constant 0 : i32
    return %c0_i32, %c0_i32_0 : i32, i32
  }
  func.func @transform_22(%arg0: i32) -> (i32, i32) {
    %c0_i32 = arith.constant 0 : i32
    %c0_i32_0 = arith.constant 0 : i32
    %c0_i32_1 = arith.constant 0 : i32
    return %c0_i32, %c0_i32_0 : i32, i32
  }
  func.func @transform_23(%arg0: i32) -> (i32, i32) {
    %c0_i32 = arith.constant 0 : i32
    %c0_i32_0 = arith.constant 0 : i32
    %c0_i32_1 = arith.constant 0 : i32
    return %c0_i32, %c0_i32_0 : i32, i32
  }
  func.func @transform_24(%arg0: i32) -> (i32, i32) {
    %c0_i32 = arith.constant 0 : i32
    %c0_i32_0 = arith.constant 0 : i32
    %c0_i32_1 = arith.constant 0 : i32
    return %c0_i32, %c0_i32_0 : i32, i32
  }
  func.func @transform_25(%arg0: i32) -> (i32, i32) {
    %c0_i32 = arith.constant 0 : i32
    %c0_i32_0 = arith.constant 0 : i32
    %c0_i32_1 = arith.constant 0 : i32
    return %c0_i32, %c0_i32_0 : i32, i32
  }
  func.func @transform_26(%arg0: i32) -> (i32, i32) {
    %c0_i32 = arith.constant 0 : i32
    %c0_i32_0 = arith.constant 0 : i32
    %c0_i32_1 = arith.constant 0 : i32
    return %c0_i32, %c0_i32_0 : i32, i32
  }
  func.func @transform_27(%arg0: i32) -> (i32, i32) {
    %c0_i32 = arith.constant 0 : i32
    %c0_i32_0 = arith.constant 0 : i32
    %c0_i32_1 = arith.constant 0 : i32
    return %c0_i32, %c0_i32_0 : i32, i32
  }
  func.func @transform_28(%arg0: i32) -> (i32, i32) {
    %c0_i32 = arith.constant 0 : i32
    %c0_i32_0 = arith.constant 0 : i32
    return %arg0, %c0_i32 : i32, i32
  }
  func.func @transform_29(%arg0: i32) -> (i32, i32) {
    %c0_i32 = arith.constant 0 : i32
    %c0_i32_0 = arith.constant 0 : i32
    return %arg0, %c0_i32 : i32, i32
  }
  func.func @transform_30(%arg0: i32) -> (i32, i32) {
    %c0_i32 = arith.constant 0 : i32
    %c0_i32_0 = arith.constant 0 : i32
    return %arg0, %c0_i32 : i32, i32
  }
  func.func @transform_31(%arg0: i32) -> (i32, i32) {
    %c0_i32 = arith.constant 0 : i32
    %c0_i32_0 = arith.constant 0 : i32
    return %arg0, %c0_i32 : i32, i32
  }
  func.func @transform_32(%arg0: i32) -> (i32, i32) {
    %c0_i32 = arith.constant 0 : i32
    %c0_i32_0 = arith.constant 0 : i32
    return %arg0, %c0_i32 : i32, i32
  }
  func.func @transform_33(%arg0: i32) -> (i32, i32) {
    %c0_i32 = arith.constant 0 : i32
    %c0_i32_0 = arith.constant 0 : i32
    return %arg0, %c0_i32 : i32, i32
  }
  func.func @transform_34(%arg0: i32) -> (i32, i32) {
    %c0_i32 = arith.constant 0 : i32
    %c0_i32_0 = arith.constant 0 : i32
    return %arg0, %c0_i32 : i32, i32
  }
}

</mosaic_0001>

<llo_original>
// kernel: tpu_custom_call.1
$region0: #{tpu_custom_call.1}
  #allocation0 [shape = 'u32[]', space=smem, size = 0x4, offset = 0x4, fixed_abs, tag = 'smem constant byte address 0x4 - core index']
  #allocation1 [shape = 'u32[144,128]{1,0:T(1,128)}', space=vmem, size = 0x12000, scoped, tag = 'internal scratch']
  %s0 = inlined_call_operand.smem [shape: u32[35], index: -1, kind: input, shape index: {}]
  %s1 = sld [smem:[%s0]]
  %s2 = scalar_lea.smem %s0, 1
  %s3 = sld [smem:[%s2]]
  %s4 = scalar_lea.smem %s0, 2
  %s5 = sld [smem:[%s4]]
  %s6 = scalar_lea.smem %s0, 3
  %s7 = sld [smem:[%s6]]
  %s8 = scalar_lea.smem %s0, 4
  %s9 = sld [smem:[%s8]]
  %s10 = scalar_lea.smem %s0, 5
  %s11 = sld [smem:[%s10]]
  %s12 = scalar_lea.smem %s0, 6
  %s13 = sld [smem:[%s12]]
  %s14 = scalar_lea.smem %s0, 7
  %s15 = sld [smem:[%s14]]
  %s16 = scalar_lea.smem %s0, 8
  %s17 = sld [smem:[%s16]]
  %s18 = scalar_lea.smem %s0, 9
  %s19 = sld [smem:[%s18]]
  %s20 = scalar_lea.smem %s0, 10
  %s21 = sld [smem:[%s20]]
  %s22 = scalar_lea.smem %s0, 11
  %s23 = sld [smem:[%s22]]
  %s24 = scalar_lea.smem %s0, 12
  %s25 = sld [smem:[%s24]]
  %s26 = scalar_lea.smem %s0, 13
  %s27 = sld [smem:[%s26]]
  %s28 = scalar_lea.smem %s0, 14
  %s29 = sld [smem:[%s28]]
  %s30 = scalar_lea.smem %s0, 15
  %s31 = sld [smem:[%s30]]
  %s32 = scalar_lea.smem %s0, 16
  %s33 = sld [smem:[%s32]]
  %s34 = scalar_lea.smem %s0, 17
  %s35 = sld [smem:[%s34]]
  %s36 = scalar_lea.smem %s0, 18
  %s37 = sld [smem:[%s36]]
  %s38 = scalar_lea.smem %s0, 19
  %s39 = sld [smem:[%s38]]
  %s40 = scalar_lea.smem %s0, 20
  %s41 = sld [smem:[%s40]]
  %s42 = scalar_lea.smem %s0, 21
  %s43 = sld [smem:[%s42]]
  %s44 = scalar_lea.smem %s0, 22
  %s45 = sld [smem:[%s44]]
  %s46 = scalar_lea.smem %s0, 23
  %s47 = sld [smem:[%s46]]
  %s48 = scalar_lea.smem %s0, 24
  %s49 = sld [smem:[%s48]]
  %s50 = scalar_lea.smem %s0, 25
  %s51 = sld [smem:[%s50]]
  %s52 = scalar_lea.smem %s0, 26
  %s53 = sld [smem:[%s52]]
  %s54 = scalar_lea.smem %s0, 27
  %s55 = sld [smem:[%s54]]
  %s56 = scalar_lea.smem %s0, 28
  %s57 = sld [smem:[%s56]]
  %s58 = scalar_lea.smem %s0, 29
  %s59 = sld [smem:[%s58]]
  %s60 = scalar_lea.smem %s0, 30
  %s61 = sld [smem:[%s60]]
  %s62 = scalar_lea.smem %s0, 31
  %s63 = sld [smem:[%s62]]
  %s64 = scalar_lea.smem %s0, 32
  %s65 = sld [smem:[%s64]]
  %s66 = scalar_lea.smem %s0, 33
  %s67 = sld [smem:[%s66]]
  %s68 = scalar_lea.smem %s0, 34
  %s69 = sld [smem:[%s68]]
  %70 = xla_tuple %s57, %s59, %s61, %s63, %s65, %s67, %s69
  %s71 = sld [smem:[#allocation0]]
  $region234: #{tpu_custom_call.1} parent=0
    _
  %s73 = ssub.s32 1, %s71
  %s74 = scalar_select 0, %s73, %s71
  $region1: #{tpu_custom_call.1} parent=0
    #allocation2 [shape = 'u8[131072]{0}', space=vmem, size = 0x20000, scoped, tag = 'input window, operand 0, single buffered']
    #allocation3 [shape = 's32[1]{0}', space=sflag, size = 0x4, scoped, tag = 'scoped memory for tpu_custom_call.1']
    #allocation4 [shape = 's32[1]{0}', space=sflag, size = 0x4, scoped, tag = 'scoped memory for tpu_custom_call.1']
    #allocation5 [shape = 'u8[65536]{0}', space=vmem, size = 0x10000, scoped, tag = 'input window, operand 1, single buffered']
    #allocation6 [shape = 's32[1]{0}', space=sflag, size = 0x4, scoped, tag = 'scoped memory for tpu_custom_call.1']
    #allocation7 [shape = 'u8[65536]{0}', space=vmem, size = 0x10000, scoped, tag = 'input window, operand 2, single buffered']
    #allocation8 [shape = 'u8[65536]{0}', space=vmem, size = 0x10000, scoped, tag = 'input window, operand 3, single buffered']
    #allocation9 [shape = 's32[1]{0}', space=sflag, size = 0x4, scoped, tag = 'scoped memory for tpu_custom_call.1']
    #allocation10 [shape = 'u8[131072]{0}', space=vmem, size = 0x20000, scoped, tag = 'input window, operand 4, single buffered']
    #allocation11 [shape = 'u8[131072]{0}', space=vmem, size = 0x20000, scoped, tag = 'input window, operand 6, single buffered']
    #allocation12 [shape = 's32[1]{0}', space=sflag, size = 0x4, scoped, tag = 'scoped memory for tpu_custom_call.1']
    #allocation13 [shape = 'u8[131072]{0}', space=vmem, size = 0x20000, scoped, tag = 'input window, operand 8, single buffered']
    #allocation14 [shape = 'u8[32768]{0}', space=vmem, size = 0x8000, scoped, tag = 'input window, operand 10, single buffered']
    #allocation15 [shape = 's32[1]{0}', space=sflag, size = 0x4, scoped, tag = 'scoped memory for tpu_custom_call.1']
    #allocation16 [shape = 'u8[32768]{0}', space=vmem, size = 0x8000, scoped, tag = 'input window, operand 12, single buffered']
    #allocation17 [shape = 'u8[65536]{0}', space=vmem, size = 0x10000, scoped, tag = 'input window, operand 14, single buffered']
    #allocation18 [shape = 's32[1]{0}', space=sflag, size = 0x4, scoped, tag = 'scoped memory for tpu_custom_call.1']
    #allocation19 [shape = 'u8[32768]{0}', space=vmem, size = 0x8000, scoped, tag = 'input window, operand 16, single buffered']
    #allocation20 [shape = 'u8[32768]{0}', space=vmem, size = 0x8000, scoped, tag = 'input window, operand 18, single buffered']
    #allocation21 [shape = 's32[1]{0}', space=sflag, size = 0x4, scoped, tag = 'scoped memory for tpu_custom_call.1']
    #allocation22 [shape = 'u8[65536]{0}', space=vmem, size = 0x10000, scoped, tag = 'input window, operand 20, single buffered']
    #allocation23 [shape = 'u8[65536]{0}', space=vmem, size = 0x10000, scoped, tag = 'input window, operand 22, single buffered']
    #allocation24 [shape = 's32[1]{0}', space=sflag, size = 0x4, scoped, tag = 'scoped memory for tpu_custom_call.1']
    #allocation25 [shape = 'u8[131072]{0}', space=vmem, size = 0x20000, scoped, tag = 'input window, operand 24, single buffered']
    #allocation26 [shape = 'u8[131072]{0}', space=vmem, size = 0x20000, scoped, tag = 'input window, operand 26, single buffered']
    #allocation27 [shape = 's32[1]{0}', space=sflag, size = 0x4, scoped, tag = 'scoped memory for tpu_custom_call.1']
    #allocation28 [shape = 'u8[65536]{0}', space=vmem, size = 0x10000, scoped, tag = 'output window, operand 0, single buffered']
    #allocation29 [shape = 'u8[65536]{0}', space=vmem, size = 0x10000, scoped, tag = 'output window, operand 1, single buffered']
    #allocation30 [shape = 's32[1]{0}', space=sflag, size = 0x4, scoped, tag = 'scoped memory for tpu_custom_call.1']
    #allocation31 [shape = 'u8[65536]{0}', space=vmem, size = 0x10000, scoped, tag = 'output window, operand 2, single buffered']
    #allocation32 [shape = 'u8[65536]{0}', space=vmem, size = 0x10000, scoped, tag = 'output window, operand 3, single buffered']
    #allocation33 [shape = 's32[1]{0}', space=sflag, size = 0x4, scoped, tag = 'scoped memory for tpu_custom_call.1']
    #allocation34 [shape = 'u8[65536]{0}', space=vmem, size = 0x10000, scoped, tag = 'output window, operand 4, single buffered']
    #allocation35 [shape = 'u8[65536]{0}', space=vmem, size = 0x10000, scoped, tag = 'output window, operand 5, single buffered']
    #allocation36 [shape = 's32[1]{0}', space=sflag, size = 0x4, scoped, tag = 'scoped memory for tpu_custom_call.1']
    #allocation37 [shape = 'u8[131072]{0}', space=vmem, size = 0x20000, scoped, tag = 'output window, operand 6, single buffered']
    %75 = vsyncpa [#allocation3], 0
    %76 = vsyncpa [#allocation6], 0
    %77 = vsyncpa [#allocation9], 0
    %78 = vsyncpa [#allocation12], 0
    %79 = vsyncpa [#allocation15], 0
    %80 = vsyncpa [#allocation18], 0
    %81 = vsyncpa [#allocation21], 0
    %82 = vsyncpa [#allocation24], 0
    %83 = vsyncpa [#allocation27], 0
    %84 = vsyncpa [#allocation4], 0
    %85 = vsyncpa [#allocation30], 0
    %86 = vsyncpa [#allocation33], 0
    %87 = vsyncpa [#allocation36], 0
    // Predicated region
    $region2: #{tpu_custom_call.1} parent=1 // pred_check
      _
    $region3: #{tpu_custom_call.1} parent=1 // pred_check_branch
      %89 = sbr.rel (0) target = $region5
    $region4: #{tpu_custom_call.1} parent=1 // pred_region
      %s91 = ssub.s32 4096, 4096
      %92 = vsyncadd [#allocation3], %s91
      %s93 = sshll.u32 [#allocation2], 4
      %s94 = int_to_ptr.vmem [resolvable:$true] %s93
      %99 = dma.hbm_to_vmem [thread:$0]  %s1, 4096, %s94, [#allocation3], 256, 256, 16
    $region5: #{tpu_custom_call.1} parent=1 // pred_fallthru
      _
    // Predicated region
    $region6: #{tpu_custom_call.1} parent=1 // pred_check
      _
    $region7: #{tpu_custom_call.1} parent=1 // pred_check_branch
      %101 = sbr.rel (0) target = $region9
    $region8: #{tpu_custom_call.1} parent=1 // pred_region
      %s103 = ssub.s32 2048, 2048
      %104 = vsyncadd [#allocation6], %s103
      %s105 = sshll.u32 [#allocation5], 4
      %s106 = int_to_ptr.vmem [resolvable:$true] %s105
      %111 = dma.hbm_to_vmem [thread:$0]  %s3, 2048, %s106, [#allocation6], 128, 128, 8
    $region9: #{tpu_custom_call.1} parent=1 // pred_fallthru
      _
    // Predicated region
    $region10: #{tpu_custom_call.1} parent=1 // pred_check
      _
    $region11: #{tpu_custom_call.1} parent=1 // pred_check_branch
      %113 = sbr.rel (0) target = $region13
    $region12: #{tpu_custom_call.1} parent=1 // pred_region
      %s115 = ssub.s32 2048, 2048
      %116 = vsyncadd [#allocation6], %s115
      %s117 = sshll.u32 [#allocation7], 4
      %s118 = int_to_ptr.vmem [resolvable:$true] %s117
      %123 = dma.hbm_to_vmem [thread:$0]  %s5, 2048, %s118, [#allocation6], 128, 128, 8
    $region13: #{tpu_custom_call.1} parent=1 // pred_fallthru
      _
    // Predicated region
    $region14: #{tpu_custom_call.1} parent=1 // pred_check
      _
    $region15: #{tpu_custom_call.1} parent=1 // pred_check_branch
      %125 = sbr.rel (0) target = $region17
    $region16: #{tpu_custom_call.1} parent=1 // pred_region
      %s127 = ssub.s32 2048, 2048
      %128 = vsyncadd [#allocation9], %s127
      %s129 = sshll.u32 [#allocation8], 4
      %s130 = int_to_ptr.vmem [resolvable:$true] %s129
      %135 = dma.hbm_to_vmem [thread:$0]  %s7, 2048, %s130, [#allocation9], 128, 128, 8
    $region17: #{tpu_custom_call.1} parent=1 // pred_fallthru
      _
    // Predicated region
    $region18: #{tpu_custom_call.1} parent=1 // pred_check
      _
    $region19: #{tpu_custom_call.1} parent=1 // pred_check_branch
      %137 = sbr.rel (0) target = $region21
    $region20: #{tpu_custom_call.1} parent=1 // pred_region
      %s139 = ssub.s32 4096, 4096
      %140 = vsyncadd [#allocation9], %s139
      %s141 = sshll.u32 [#allocation10], 4
      %s142 = int_to_ptr.vmem [resolvable:$true] %s141
      %147 = dma.hbm_to_vmem [thread:$0]  %s9, 4096, %s142, [#allocation9], 128, 128, 8
    $region21: #{tpu_custom_call.1} parent=1 // pred_fallthru
      _
    // Predicated region
    $region22: #{tpu_custom_call.1} parent=1 // pred_check
      _
    $region23: #{tpu_custom_call.1} parent=1 // pred_check_branch
      %149 = sbr.rel (0) target = $region25
    $region24: #{tpu_custom_call.1} parent=1 // pred_region
      _
    $region25: #{tpu_custom_call.1} parent=1 // pred_fallthru
      _
    // Predicated region
    $region26: #{tpu_custom_call.1} parent=1 // pred_check
      _
    $region27: #{tpu_custom_call.1} parent=1 // pred_check_branch
      %151 = sbr.rel (0) target = $region29
    $region28: #{tpu_custom_call.1} parent=1 // pred_region
      %s153 = ssub.s32 4096, 4096
      %154 = vsyncadd [#allocation12], %s153
      %s155 = sshll.u32 [#allocation11], 4
      %s156 = int_to_ptr.vmem [resolvable:$true] %s155
      %161 = dma.hbm_to_vmem [thread:$0]  %s13, 4096, %s156, [#allocation12], 128, 128, 8
    $region29: #{tpu_custom_call.1} parent=1 // pred_fallthru
      _
    // Predicated region
    $region30: #{tpu_custom_call.1} parent=1 // pred_check
      _
    $region31: #{tpu_custom_call.1} parent=1 // pred_check_branch
      %163 = sbr.rel (0) target = $region33
    $region32: #{tpu_custom_call.1} parent=1 // pred_region
      _
    $region33: #{tpu_custom_call.1} parent=1 // pred_fallthru
      _
    // Predicated region
    $region34: #{tpu_custom_call.1} parent=1 // pred_check
      _
    $region35: #{tpu_custom_call.1} parent=1 // pred_check_branch
      %165 = sbr.rel (0) target = $region37
    $region36: #{tpu_custom_call.1} parent=1 // pred_region
      %s167 = ssub.s32 4096, 4096
      %168 = vsyncadd [#allocation12], %s167
      %s169 = sshll.u32 [#allocation13], 4
      %s170 = int_to_ptr.vmem [resolvable:$true] %s169
      %175 = dma.hbm_to_vmem [thread:$0]  %s17, 4096, %s170, [#allocation12], 128, 128, 8
    $region37: #{tpu_custom_call.1} parent=1 // pred_fallthru
      _
    // Predicated region
    $region38: #{tpu_custom_call.1} parent=1 // pred_check
      _
    $region39: #{tpu_custom_call.1} parent=1 // pred_check_branch
      %177 = sbr.rel (0) target = $region41
    $region40: #{tpu_custom_call.1} parent=1 // pred_region
      _
    $region41: #{tpu_custom_call.1} parent=1 // pred_fallthru
      _
    // Predicated region
    $region42: #{tpu_custom_call.1} parent=1 // pred_check
      _
    $region43: #{tpu_custom_call.1} parent=1 // pred_check_branch
      %179 = sbr.rel (0) target = $region45
    $region44: #{tpu_custom_call.1} parent=1 // pred_region
      %s181 = ssub.s32 1024, 1024
      %182 = vsyncadd [#allocation15], %s181
      %s183 = sshll.u32 [#allocation14], 4
      %s184 = int_to_ptr.vmem [resolvable:$true] %s183
      %189 = dma.hbm_to_vmem [thread:$0]  %s21, 1024, %s184, [#allocation15], 64, 64, 4
    $region45: #{tpu_custom_call.1} parent=1 // pred_fallthru
      _
    // Predicated region
    $region46: #{tpu_custom_call.1} parent=1 // pred_check
      _
    $region47: #{tpu_custom_call.1} parent=1 // pred_check_branch
      %191 = sbr.rel (0) target = $region49
    $region48: #{tpu_custom_call.1} parent=1 // pred_region
      _
    $region49: #{tpu_custom_call.1} parent=1 // pred_fallthru
      _
    // Predicated region
    $region50: #{tpu_custom_call.1} parent=1 // pred_check
      _
    $region51: #{tpu_custom_call.1} parent=1 // pred_check_branch
      %193 = sbr.rel (0) target = $region53
    $region52: #{tpu_custom_call.1} parent=1 // pred_region
      %s195 = ssub.s32 1024, 1024
      %196 = vsyncadd [#allocation15], %s195
      %s197 = sshll.u32 [#allocation16], 4
      %s198 = int_to_ptr.vmem [resolvable:$true] %s197
      %203 = dma.hbm_to_vmem [thread:$0]  %s25, 1024, %s198, [#allocation15], 64, 64, 4
    $region53: #{tpu_custom_call.1} parent=1 // pred_fallthru
      _
    // Predicated region
    $region54: #{tpu_custom_call.1} parent=1 // pred_check
      _
    $region55: #{tpu_custom_call.1} parent=1 // pred_check_branch
      %205 = sbr.rel (0) target = $region57
    $region56: #{tpu_custom_call.1} parent=1 // pred_region
      _
    $region57: #{tpu_custom_call.1} parent=1 // pred_fallthru
      _
    // Predicated region
    $region58: #{tpu_custom_call.1} parent=1 // pred_check
      _
    $region59: #{tpu_custom_call.1} parent=1 // pred_check_branch
      %207 = sbr.rel (0) target = $region61
    $region60: #{tpu_custom_call.1} parent=1 // pred_region
      %s209 = ssub.s32 2048, 2048
      %210 = vsyncadd [#allocation18], %s209
      %s211 = sshll.u32 [#allocation17], 4
      %s212 = int_to_ptr.vmem [resolvable:$true] %s211
      %217 = dma.hbm_to_vmem [thread:$0]  %s29, 2048, %s212, [#allocation18], 128, 128, 8
    $region61: #{tpu_custom_call.1} parent=1 // pred_fallthru
      _
    // Predicated region
    $region62: #{tpu_custom_call.1} parent=1 // pred_check
      _
    $region63: #{tpu_custom_call.1} parent=1 // pred_check_branch
      %219 = sbr.rel (0) target = $region65
    $region64: #{tpu_custom_call.1} parent=1 // pred_region
      _
    $region65: #{tpu_custom_call.1} parent=1 // pred_fallthru
      _
    // Predicated region
    $region66: #{tpu_custom_call.1} parent=1 // pred_check
      _
    $region67: #{tpu_custom_call.1} parent=1 // pred_check_branch
      %221 = sbr.rel (0) target = $region69
    $region68: #{tpu_custom_call.1} parent=1 // pred_region
      %s223 = ssub.s32 1024, 1024
      %224 = vsyncadd [#allocation18], %s223
      %s225 = sshll.u32 [#allocation19], 4
      %s226 = int_to_ptr.vmem [resolvable:$true] %s225
      %231 = dma.hbm_to_vmem [thread:$0]  %s33, 1024, %s226, [#allocation18], 64, 64, 4
    $region69: #{tpu_custom_call.1} parent=1 // pred_fallthru
      _
    // Predicated region
    $region70: #{tpu_custom_call.1} parent=1 // pred_check
      _
    $region71: #{tpu_custom_call.1} parent=1 // pred_check_branch
      %233 = sbr.rel (0) target = $region73
    $region72: #{tpu_custom_call.1} parent=1 // pred_region
      _
    $region73: #{tpu_custom_call.1} parent=1 // pred_fallthru
      _
    // Predicated region
    $region74: #{tpu_custom_call.1} parent=1 // pred_check
      _
    $region75: #{tpu_custom_call.1} parent=1 // pred_check_branch
      %235 = sbr.rel (0) target = $region77
    $region76: #{tpu_custom_call.1} parent=1 // pred_region
      %s237 = ssub.s32 1024, 1024
      %238 = vsyncadd [#allocation21], %s237
      %s239 = sshll.u32 [#allocation20], 4
      %s240 = int_to_ptr.vmem [resolvable:$true] %s239
      %245 = dma.hbm_to_vmem [thread:$0]  %s37, 1024, %s240, [#allocation21], 64, 64, 4
    $region77: #{tpu_custom_call.1} parent=1 // pred_fallthru
      _
    // Predicated region
    $region78: #{tpu_custom_call.1} parent=1 // pred_check
      _
    $region79: #{tpu_custom_call.1} parent=1 // pred_check_branch
      %247 = sbr.rel (0) target = $region81
    $region80: #{tpu_custom_call.1} parent=1 // pred_region
      _
    $region81: #{tpu_custom_call.1} parent=1 // pred_fallthru
      _
    // Predicated region
    $region82: #{tpu_custom_call.1} parent=1 // pred_check
      _
    $region83: #{tpu_custom_call.1} parent=1 // pred_check_branch
      %249 = sbr.rel (0) target = $region85
    $region84: #{tpu_custom_call.1} parent=1 // pred_region
      %s251 = ssub.s32 2048, 2048
      %252 = vsyncadd [#allocation21], %s251
      %s253 = sshll.u32 [#allocation22], 4
      %s254 = int_to_ptr.vmem [resolvable:$true] %s253
      %259 = dma.hbm_to_vmem [thread:$0]  %s41, 2048, %s254, [#allocation21], 128, 128, 8
    $region85: #{tpu_custom_call.1} parent=1 // pred_fallthru
      _
    // Predicated region
    $region86: #{tpu_custom_call.1} parent=1 // pred_check
      _
    $region87: #{tpu_custom_call.1} parent=1 // pred_check_branch
      %261 = sbr.rel (0) target = $region89
    $region88: #{tpu_custom_call.1} parent=1 // pred_region
      _
    $region89: #{tpu_custom_call.1} parent=1 // pred_fallthru
      _
    // Predicated region
    $region90: #{tpu_custom_call.1} parent=1 // pred_check
      _
    $region91: #{tpu_custom_call.1} parent=1 // pred_check_branch
      %263 = sbr.rel (0) target = $region93
    $region92: #{tpu_custom_call.1} parent=1 // pred_region
      %s265 = ssub.s32 2048, 2048
      %266 = vsyncadd [#allocation24], %s265
      %s267 = sshll.u32 [#allocation23], 4
      %s268 = int_to_ptr.vmem [resolvable:$true] %s267
      %273 = dma.hbm_to_vmem [thread:$0]  %s45, 2048, %s268, [#allocation24], 128, 128, 8
    $region93: #{tpu_custom_call.1} parent=1 // pred_fallthru
      _
    // Predicated region
    $region94: #{tpu_custom_call.1} parent=1 // pred_check
      _
    $region95: #{tpu_custom_call.1} parent=1 // pred_check_branch
      %275 = sbr.rel (0) target = $region97
    $region96: #{tpu_custom_call.1} parent=1 // pred_region
      _
    $region97: #{tpu_custom_call.1} parent=1 // pred_fallthru
      _
    // Predicated region
    $region98: #{tpu_custom_call.1} parent=1 // pred_check
      _
    $region99: #{tpu_custom_call.1} parent=1 // pred_check_branch
      %277 = sbr.rel (0) target = $region101
    $region100: #{tpu_custom_call.1} parent=1 // pred_region
      %s279 = ssub.s32 4096, 4096
      %280 = vsyncadd [#allocation24], %s279
      %s281 = sshll.u32 [#allocation25], 4
      %s282 = int_to_ptr.vmem [resolvable:$true] %s281
      %287 = dma.hbm_to_vmem [thread:$0]  %s49, 4096, %s282, [#allocation24], 128, 128, 8
    $region101: #{tpu_custom_call.1} parent=1 // pred_fallthru
      _
    // Predicated region
    $region102: #{tpu_custom_call.1} parent=1 // pred_check
      _
    $region103: #{tpu_custom_call.1} parent=1 // pred_check_branch
      %289 = sbr.rel (0) target = $region105
    $region104: #{tpu_custom_call.1} parent=1 // pred_region
      _
    $region105: #{tpu_custom_call.1} parent=1 // pred_fallthru
      _
    // Predicated region
    $region106: #{tpu_custom_call.1} parent=1 // pred_check
      _
    $region107: #{tpu_custom_call.1} parent=1 // pred_check_branch
      %291 = sbr.rel (0) target = $region109
    $region108: #{tpu_custom_call.1} parent=1 // pred_region
      %s293 = ssub.s32 4096, 4096
      %294 = vsyncadd [#allocation27], %s293
      %s295 = sshll.u32 [#allocation26], 4
      %s296 = int_to_ptr.vmem [resolvable:$true] %s295
      %301 = dma.hbm_to_vmem [thread:$0]  %s53, 4096, %s296, [#allocation27], 128, 128, 8
    $region109: #{tpu_custom_call.1} parent=1 // pred_fallthru
      _
    // Predicated region
    $region110: #{tpu_custom_call.1} parent=1 // pred_check
      _
    $region111: #{tpu_custom_call.1} parent=1 // pred_check_branch
      %303 = sbr.rel (0) target = $region113
    $region112: #{tpu_custom_call.1} parent=1 // pred_region
      _
    $region113: #{tpu_custom_call.1} parent=1 // pred_fallthru
      _
    // Predicated region
    $region114: #{tpu_custom_call.1} parent=1 // pred_check
      _
    $region115: #{tpu_custom_call.1} parent=1 // pred_check_branch
      %305 = sbr.rel (0) target = $region117
    $region116: #{tpu_custom_call.1} parent=1 // pred_region
      %306 = dma.done [#allocation3], 4096
    $region117: #{tpu_custom_call.1} parent=1 // pred_fallthru
      _
    // Predicated region
    $region118: #{tpu_custom_call.1} parent=1 // pred_check
      _
    $region119: #{tpu_custom_call.1} parent=1 // pred_check_branch
      %308 = sbr.rel (0) target = $region121
    $region120: #{tpu_custom_call.1} parent=1 // pred_region
      %309 = dma.done [#allocation6], 2048
    $region121: #{tpu_custom_call.1} parent=1 // pred_fallthru
      _
    // Predicated region
    $region122: #{tpu_custom_call.1} parent=1 // pred_check
      _
    $region123: #{tpu_custom_call.1} parent=1 // pred_check_branch
      %311 = sbr.rel (0) target = $region125
    $region124: #{tpu_custom_call.1} parent=1 // pred_region
      %312 = dma.done [#allocation6], 2048
    $region125: #{tpu_custom_call.1} parent=1 // pred_fallthru
      _
    // Predicated region
    $region126: #{tpu_custom_call.1} parent=1 // pred_check
      _
    $region127: #{tpu_custom_call.1} parent=1 // pred_check_branch
      %314 = sbr.rel (0) target = $region129
    $region128: #{tpu_custom_call.1} parent=1 // pred_region
      %315 = dma.done [#allocation9], 2048
    $region129: #{tpu_custom_call.1} parent=1 // pred_fallthru
      _
    // Predicated region
    $region130: #{tpu_custom_call.1} parent=1 // pred_check
      _
    $region131: #{tpu_custom_call.1} parent=1 // pred_check_branch
      %317 = sbr.rel (0) target = $region133
    $region132: #{tpu_custom_call.1} parent=1 // pred_region
      %318 = dma.done [#allocation9], 4096
    $region133: #{tpu_custom_call.1} parent=1 // pred_fallthru
      _
    // Predicated region
    $region134: #{tpu_custom_call.1} parent=1 // pred_check
      _
    $region135: #{tpu_custom_call.1} parent=1 // pred_check_branch
      %320 = sbr.rel (0) target = $region137
    $region136: #{tpu_custom_call.1} parent=1 // pred_region
      %321 = dma.done [#allocation12], 4096
    $region137: #{tpu_custom_call.1} parent=1 // pred_fallthru
      _
    // Predicated region
    $region138: #{tpu_custom_call.1} parent=1 // pred_check
      _
    $region139: #{tpu_custom_call.1} parent=1 // pred_check_branch
      %323 = sbr.rel (0) target = $region141
    $region140: #{tpu_custom_call.1} parent=1 // pred_region
      %324 = dma.done [#allocation12], 4096
    $region141: #{tpu_custom_call.1} parent=1 // pred_fallthru
      _
    // Predicated region
    $region142: #{tpu_custom_call.1} parent=1 // pred_check
      _
    $region143: #{tpu_custom_call.1} parent=1 // pred_check_branch
      %326 = sbr.rel (0) target = $region145
    $region144: #{tpu_custom_call.1} parent=1 // pred_region
      %327 = dma.done [#allocation15], 1024
    $region145: #{tpu_custom_call.1} parent=1 // pred_fallthru
      _
    // Predicated region
    $region146: #{tpu_custom_call.1} parent=1 // pred_check
      _
    $region147: #{tpu_custom_call.1} parent=1 // pred_check_branch
      %329 = sbr.rel (0) target = $region149
    $region148: #{tpu_custom_call.1} parent=1 // pred_region
      %330 = dma.done [#allocation15], 1024
    $region149: #{tpu_custom_call.1} parent=1 // pred_fallthru
      _
    // Predicated region
    $region150: #{tpu_custom_call.1} parent=1 // pred_check
      _
    $region151: #{tpu_custom_call.1} parent=1 // pred_check_branch
      %332 = sbr.rel (0) target = $region153
    $region152: #{tpu_custom_call.1} parent=1 // pred_region
      %333 = dma.done [#allocation18], 2048
    $region153: #{tpu_custom_call.1} parent=1 // pred_fallthru
      _
    // Predicated region
    $region154: #{tpu_custom_call.1} parent=1 // pred_check
      _
    $region155: #{tpu_custom_call.1} parent=1 // pred_check_branch
      %335 = sbr.rel (0) target = $region157
    $region156: #{tpu_custom_call.1} parent=1 // pred_region
      %336 = dma.done [#allocation18], 1024
    $region157: #{tpu_custom_call.1} parent=1 // pred_fallthru
      _
    // Predicated region
    $region158: #{tpu_custom_call.1} parent=1 // pred_check
      _
    $region159: #{tpu_custom_call.1} parent=1 // pred_check_branch
      %338 = sbr.rel (0) target = $region161
    $region160: #{tpu_custom_call.1} parent=1 // pred_region
      %339 = dma.done [#allocation21], 1024
    $region161: #{tpu_custom_call.1} parent=1 // pred_fallthru
      _
    // Predicated region
    $region162: #{tpu_custom_call.1} parent=1 // pred_check
      _
    $region163: #{tpu_custom_call.1} parent=1 // pred_check_branch
      %341 = sbr.rel (0) target = $region165
    $region164: #{tpu_custom_call.1} parent=1 // pred_region
      %342 = dma.done [#allocation21], 2048
    $region165: #{tpu_custom_call.1} parent=1 // pred_fallthru
      _
    // Predicated region
    $region166: #{tpu_custom_call.1} parent=1 // pred_check
      _
    $region167: #{tpu_custom_call.1} parent=1 // pred_check_branch
      %344 = sbr.rel (0) target = $region169
    $region168: #{tpu_custom_call.1} parent=1 // pred_region
      %345 = dma.done [#allocation24], 2048
    $region169: #{tpu_custom_call.1} parent=1 // pred_fallthru
      _
    // Predicated region
    $region170: #{tpu_custom_call.1} parent=1 // pred_check
      _
    $region171: #{tpu_custom_call.1} parent=1 // pred_check_branch
      %347 = sbr.rel (0) target = $region173
    $region172: #{tpu_custom_call.1} parent=1 // pred_region
      %348 = dma.done [#allocation24], 4096
    $region173: #{tpu_custom_call.1} parent=1 // pred_fallthru
      _
    // Predicated region
    $region174: #{tpu_custom_call.1} parent=1 // pred_check
      _
    $region175: #{tpu_custom_call.1} parent=1 // pred_check_branch
      %350 = sbr.rel (0) target = $region177
    $region176: #{tpu_custom_call.1} parent=1 // pred_region
      %351 = dma.done [#allocation27], 4096
    $region177: #{tpu_custom_call.1} parent=1 // pred_fallthru
      _
    %v353 = vld [vmem:[#allocation2] sm:$0xff]
    %v354 = vld [vmem:[#allocation2 + $0x8] sm:$0xff]
    %v355 = vld [vmem:[#allocation2 + $0x10] sm:$0xff]
    %v356 = vld [vmem:[#allocation2 + $0x18] sm:$0xff]
    %v357 = vld [vmem:[#allocation2 + $0x20] sm:$0xff]
    %v358 = vld [vmem:[#allocation2 + $0x28] sm:$0xff]
    %v359 = vld [vmem:[#allocation2 + $0x30] sm:$0xff]
    %v360 = vld [vmem:[#allocation2 + $0x38] sm:$0xff]
    %v361 = vld [vmem:[#allocation2 + $0x40] sm:$0xff]
    %v362 = vld [vmem:[#allocation2 + $0x48] sm:$0xff]
    %v363 = vld [vmem:[#allocation2 + $0x50] sm:$0xff]
    %v364 = vld [vmem:[#allocation2 + $0x58] sm:$0xff]
    %v365 = vld [vmem:[#allocation2 + $0x60] sm:$0xff]
    %v366 = vld [vmem:[#allocation2 + $0x68] sm:$0xff]
    %v367 = vld [vmem:[#allocation2 + $0x70] sm:$0xff]
    %v368 = vld [vmem:[#allocation2 + $0x78] sm:$0xff]
    %v369 = vld [vmem:[#allocation2 + $0x80] sm:$0xff]
    %v370 = vld [vmem:[#allocation2 + $0x88] sm:$0xff]
    %v371 = vld [vmem:[#allocation2 + $0x90] sm:$0xff]
    %v372 = vld [vmem:[#allocation2 + $0x98] sm:$0xff]
    %v373 = vld [vmem:[#allocation2 + $0xa0] sm:$0xff]
    %v374 = vld [vmem:[#allocation2 + $0xa8] sm:$0xff]
    %v375 = vld [vmem:[#allocation2 + $0xb0] sm:$0xff]
    %v376 = vld [vmem:[#allocation2 + $0xb8] sm:$0xff]
    %v377 = vld [vmem:[#allocation2 + $0xc0] sm:$0xff]
    %v378 = vld [vmem:[#allocation2 + $0xc8] sm:$0xff]
    %v379 = vld [vmem:[#allocation2 + $0xd0] sm:$0xff]
    %v380 = vld [vmem:[#allocation2 + $0xd8] sm:$0xff]
    %v381 = vld [vmem:[#allocation2 + $0xe0] sm:$0xff]
    %v382 = vld [vmem:[#allocation2 + $0xe8] sm:$0xff]
    %v383 = vld [vmem:[#allocation2 + $0xf0] sm:$0xff]
    %v384 = vld [vmem:[#allocation2 + $0xf8] sm:$0xff]
    %v385 = vpack.c.bf16 %v355, %v353
    %v386 = vpack.c.bf16 %v356, %v354
    %v387 = vpack.c.bf16 %v359, %v357
    %v388 = vpack.c.bf16 %v360, %v358
    %v389 = vpack.c.bf16 %v363, %v361
    %v390 = vpack.c.bf16 %v364, %v362
    %v391 = vpack.c.bf16 %v367, %v365
    %v392 = vpack.c.bf16 %v368, %v366
    %v393 = vpack.c.bf16 %v371, %v369
    %v394 = vpack.c.bf16 %v372, %v370
    %v395 = vpack.c.bf16 %v375, %v373
    %v396 = vpack.c.bf16 %v376, %v374
    %v397 = vpack.c.bf16 %v379, %v377
    %v398 = vpack.c.bf16 %v380, %v378
    %v399 = vpack.c.bf16 %v383, %v381
    %v400 = vpack.c.bf16 %v384, %v382
    %v401 = vld [vmem:[#allocation10] sm:$0xff]
    %v402 = vld [vmem:[#allocation10 + $0x8] sm:$0xff]
    %v403 = vld [vmem:[#allocation10 + $0x10] sm:$0xff]
    %v404 = vld [vmem:[#allocation10 + $0x18] sm:$0xff]
    %v405 = vld [vmem:[#allocation10 + $0x20] sm:$0xff]
    %v406 = vld [vmem:[#allocation10 + $0x28] sm:$0xff]
    %v407 = vld [vmem:[#allocation10 + $0x30] sm:$0xff]
    %v408 = vld [vmem:[#allocation10 + $0x38] sm:$0xff]
    %v409 = vld [vmem:[#allocation10 + $0x40] sm:$0xff]
    %v410 = vld [vmem:[#allocation10 + $0x48] sm:$0xff]
    %v411 = vld [vmem:[#allocation10 + $0x50] sm:$0xff]
    %v412 = vld [vmem:[#allocation10 + $0x58] sm:$0xff]
    %v413 = vld [vmem:[#allocation10 + $0x60] sm:$0xff]
    %v414 = vld [vmem:[#allocation10 + $0x68] sm:$0xff]
    %v415 = vld [vmem:[#allocation10 + $0x70] sm:$0xff]
    %v416 = vld [vmem:[#allocation10 + $0x78] sm:$0xff]
    %v417 = vld [vmem:[#allocation10 + $0x80] sm:$0xff]
    %v418 = vld [vmem:[#allocation10 + $0x88] sm:$0xff]
    %v419 = vld [vmem:[#allocation10 + $0x90] sm:$0xff]
    %v420 = vld [vmem:[#allocation10 + $0x98] sm:$0xff]
    %v421 = vld [vmem:[#allocation10 + $0xa0] sm:$0xff]
    %v422 = vld [vmem:[#allocation10 + $0xa8] sm:$0xff]
    %v423 = vld [vmem:[#allocation10 + $0xb0] sm:$0xff]
    %v424 = vld [vmem:[#allocation10 + $0xb8] sm:$0xff]
    %v425 = vld [vmem:[#allocation10 + $0xc0] sm:$0xff]
    %v426 = vld [vmem:[#allocation10 + $0xc8] sm:$0xff]
    %v427 = vld [vmem:[#allocation10 + $0xd0] sm:$0xff]
    %v428 = vld [vmem:[#allocation10 + $0xd8] sm:$0xff]
    %v429 = vld [vmem:[#allocation10 + $0xe0] sm:$0xff]
    %v430 = vld [vmem:[#allocation10 + $0xe8] sm:$0xff]
    %v431 = vld [vmem:[#allocation10 + $0xf0] sm:$0xff]
    %v432 = vld [vmem:[#allocation10 + $0xf8] sm:$0xff]
    %v433 = vld [vmem:[%s11] sm:$0x3]
    %v435 = vlaneseq
    %v436 = vshrl.u32 %v435, 7
    %v437 = vsub.s32 0, %v436
    %v438 = vrot.slane %v433, %v437
    %v439 = vlaneseq
    %v440 = vshrl.u32 %v439, 7
    %v441 = vsub.s32 1, %v440
    %v442 = vrot.slane %v433, %v441
    %v477 = vunpack.c.l.b16 %v401
    %v478 = vunpack.c.h.b16 %v401
    %v479 = vunpack.c.l.b16 %v402
    %v480 = vunpack.c.h.b16 %v402
    %v481 = vunpack.c.l.b16 %v403
    %v482 = vunpack.c.h.b16 %v403
    %v483 = vunpack.c.l.b16 %v404
    %v484 = vunpack.c.h.b16 %v404
    %v485 = vunpack.c.l.b16 %v405
    %v486 = vunpack.c.h.b16 %v405
    %v487 = vunpack.c.l.b16 %v406
    %v488 = vunpack.c.h.b16 %v406
    %v489 = vunpack.c.l.b16 %v407
    %v490 = vunpack.c.h.b16 %v407
    %v491 = vunpack.c.l.b16 %v408
    %v492 = vunpack.c.h.b16 %v408
    %v493 = vunpack.c.l.b16 %v409
    %v494 = vunpack.c.h.b16 %v409
    %v495 = vunpack.c.l.b16 %v410
    %v496 = vunpack.c.h.b16 %v410
    %v497 = vunpack.c.l.b16 %v411
    %v498 = vunpack.c.h.b16 %v411
    %v499 = vunpack.c.l.b16 %v412
    %v500 = vunpack.c.h.b16 %v412
    %v501 = vunpack.c.l.b16 %v413
    %v502 = vunpack.c.h.b16 %v413
    %v503 = vunpack.c.l.b16 %v414
    %v504 = vunpack.c.h.b16 %v414
    %v505 = vunpack.c.l.b16 %v415
    %v506 = vunpack.c.h.b16 %v415
    %v507 = vunpack.c.l.b16 %v416
    %v508 = vunpack.c.h.b16 %v416
    %v509 = vunpack.c.l.b16 %v417
    %v510 = vunpack.c.h.b16 %v417
    %v511 = vunpack.c.l.b16 %v418
    %v512 = vunpack.c.h.b16 %v418
    %v513 = vunpack.c.l.b16 %v419
    %v514 = vunpack.c.h.b16 %v419
    %v515 = vunpack.c.l.b16 %v420
    %v516 = vunpack.c.h.b16 %v420
    %v517 = vunpack.c.l.b16 %v421
    %v518 = vunpack.c.h.b16 %v421
    %v519 = vunpack.c.l.b16 %v422
    %v520 = vunpack.c.h.b16 %v422
    %v521 = vunpack.c.l.b16 %v423
    %v522 = vunpack.c.h.b16 %v423
    %v523 = vunpack.c.l.b16 %v424
    %v524 = vunpack.c.h.b16 %v424
    %v525 = vunpack.c.l.b16 %v425
    %v526 = vunpack.c.h.b16 %v425
    %v527 = vunpack.c.l.b16 %v426
    %v528 = vunpack.c.h.b16 %v426
    %v529 = vunpack.c.l.b16 %v427
    %v530 = vunpack.c.h.b16 %v427
    %v531 = vunpack.c.l.b16 %v428
    %v532 = vunpack.c.h.b16 %v428
    %v533 = vunpack.c.l.b16 %v429
    %v534 = vunpack.c.h.b16 %v429
    %v535 = vunpack.c.l.b16 %v430
    %v536 = vunpack.c.h.b16 %v430
    %v537 = vunpack.c.l.b16 %v431
    %v538 = vunpack.c.h.b16 %v431
    %v539 = vunpack.c.l.b16 %v432
    %v540 = vunpack.c.h.b16 %v432
    %v541 = vpack.c.b16 %v479, %v477
    %v542 = vpack.c.b16 %v480, %v478
    %v543 = vpack.c.b16 %v483, %v481
    %v544 = vpack.c.b16 %v484, %v482
    %v545 = vpack.c.b16 %v487, %v485
    %v546 = vpack.c.b16 %v488, %v486
    %v547 = vpack.c.b16 %v491, %v489
    %v548 = vpack.c.b16 %v492, %v490
    %v549 = vpack.c.b16 %v495, %v493
    %v550 = vpack.c.b16 %v496, %v494
    %v551 = vpack.c.b16 %v499, %v497
    %v552 = vpack.c.b16 %v500, %v498
    %v553 = vpack.c.b16 %v503, %v501
    %v554 = vpack.c.b16 %v504, %v502
    %v555 = vpack.c.b16 %v507, %v505
    %v556 = vpack.c.b16 %v508, %v506
    %v557 = vpack.c.b16 %v511, %v509
    %v558 = vpack.c.b16 %v512, %v510
    %v559 = vpack.c.b16 %v515, %v513
    %v560 = vpack.c.b16 %v516, %v514
    %v561 = vpack.c.b16 %v519, %v517
    %v562 = vpack.c.b16 %v520, %v518
    %v563 = vpack.c.b16 %v523, %v521
    %v564 = vpack.c.b16 %v524, %v522
    %v565 = vpack.c.b16 %v527, %v525
    %v566 = vpack.c.b16 %v528, %v526
    %v567 = vpack.c.b16 %v531, %v529
    %v568 = vpack.c.b16 %v532, %v530
    %v569 = vpack.c.b16 %v535, %v533
    %v570 = vpack.c.b16 %v536, %v534
    %v571 = vpack.c.b16 %v539, %v537
    %v572 = vpack.c.b16 %v540, %v538
    %605 = vmatprep.subr.bf16.mxu0 %v556
    %606 = vmatpush1.bf16.msra.mxu0 %v555
    %607 = vmatprep.subr.bf16.mxu0 %v554
    %608 = vmatpush1.bf16.msra.mxu0 %v553
    %609 = vmatprep.subr.bf16.mxu0 %v552
    %610 = vmatpush1.bf16.msra.mxu0 %v551
    %611 = vmatprep.subr.bf16.mxu0 %v550
    %612 = vmatpush1.bf16.msra.mxu0 %v549
    %613 = vmatprep.subr.bf16.mxu0 %v548
    %614 = vmatpush1.bf16.msra.mxu0 %v547
    %615 = vmatprep.subr.bf16.mxu0 %v546
    %616 = vmatpush1.bf16.msra.mxu0 %v545
    %617 = vmatprep.subr.bf16.mxu0 %v544
    %618 = vmatpush1.bf16.msra.mxu0 %v543
    %619 = vmatprep.subr.bf16.mxu0 %v542
    %620 = vmatpush1.bf16.msra.mxu0 %v541
    %621 = vmatprep.subr.bf16.mxu0 %v572
    %622 = vmatpush2.bf16.msra.mxu0 %v571
    %623 = vmatprep.subr.bf16.mxu0 %v570
    %624 = vmatpush2.bf16.msra.mxu0 %v569
    %625 = vmatprep.subr.bf16.mxu0 %v568
    %626 = vmatpush2.bf16.msra.mxu0 %v567
    %627 = vmatprep.subr.bf16.mxu0 %v566
    %628 = vmatpush2.bf16.msra.mxu0 %v565
    %629 = vmatprep.subr.bf16.mxu0 %v564
    %630 = vmatpush2.bf16.msra.mxu0 %v563
    %631 = vmatprep.subr.bf16.mxu0 %v562
    %632 = vmatpush2.bf16.msra.mxu0 %v561
    %633 = vmatprep.subr.bf16.mxu0 %v560
    %634 = vmatpush2.bf16.msra.mxu0 %v559
    %635 = vmatprep.subr.bf16.mxu0 %v558
    %636 = vmatpush2.bf16.msra.mxu0 %v557
    %637 = vmatprep.mubr.bf16.mxu0 %v386
    %638 = vmatmul.mubr.bf16.gmra.mxu0 %v385
    %v639 = vpop.f32.mrf.mxu0
    %v640 = vadd.f32 %v438, %v639
    %v641 = vpop.f32.mrf.mxu0
    %v642 = vadd.f32 %v442, %v641
    %v643 = vpop.f32.mrf.mxu0
    %v644 = vadd.f32 %v438, %v643
    %v645 = vpop.f32.mrf.mxu0
    %v646 = vadd.f32 %v442, %v645
    %647 = vmatprep.mubr.bf16.mxu0 %v388
    %648 = vmatmul.mubr.bf16.gmra.mxu0 %v387
    %v649 = vpop.f32.mrf.mxu0
    %v650 = vadd.f32 %v438, %v649
    %v651 = vpop.f32.mrf.mxu0
    %v652 = vadd.f32 %v442, %v651
    %v653 = vpop.f32.mrf.mxu0
    %v654 = vadd.f32 %v438, %v653
    %v655 = vpop.f32.mrf.mxu0
    %v656 = vadd.f32 %v442, %v655
    %657 = vmatprep.mubr.bf16.mxu0 %v390
    %658 = vmatmul.mubr.bf16.gmra.mxu0 %v389
    %v659 = vpop.f32.mrf.mxu0
    %v660 = vadd.f32 %v438, %v659
    %v661 = vpop.f32.mrf.mxu0
    %v662 = vadd.f32 %v442, %v661
    %v663 = vpop.f32.mrf.mxu0
    %v664 = vadd.f32 %v438, %v663
    %v665 = vpop.f32.mrf.mxu0
    %v666 = vadd.f32 %v442, %v665
    %667 = vmatprep.mubr.bf16.mxu0 %v392
    %668 = vmatmul.mubr.bf16.gmra.mxu0 %v391
    %v669 = vpop.f32.mrf.mxu0
    %v670 = vadd.f32 %v438, %v669
    %v671 = vpop.f32.mrf.mxu0
    %v672 = vadd.f32 %v442, %v671
    %v673 = vpop.f32.mrf.mxu0
    %v674 = vadd.f32 %v438, %v673
    %v675 = vpop.f32.mrf.mxu0
    %v676 = vadd.f32 %v442, %v675
    %677 = vmatprep.mubr.bf16.mxu0 %v394
    %678 = vmatmul.mubr.bf16.gmra.mxu0 %v393
    %v679 = vpop.f32.mrf.mxu0
    %v680 = vadd.f32 %v438, %v679
    %v681 = vpop.f32.mrf.mxu0
    %v682 = vadd.f32 %v442, %v681
    %v683 = vpop.f32.mrf.mxu0
    %v684 = vadd.f32 %v438, %v683
    %v685 = vpop.f32.mrf.mxu0
    %v686 = vadd.f32 %v442, %v685
    %687 = vmatprep.mubr.bf16.mxu0 %v396
    %688 = vmatmul.mubr.bf16.gmra.mxu0 %v395
    %v689 = vpop.f32.mrf.mxu0
    %v690 = vadd.f32 %v438, %v689
    %v691 = vpop.f32.mrf.mxu0
    %v692 = vadd.f32 %v442, %v691
    %v693 = vpop.f32.mrf.mxu0
    %v694 = vadd.f32 %v438, %v693
    %v695 = vpop.f32.mrf.mxu0
    %v696 = vadd.f32 %v442, %v695
    %697 = vmatprep.mubr.bf16.mxu0 %v398
    %698 = vmatmul.mubr.bf16.gmra.mxu0 %v397
    %v699 = vpop.f32.mrf.mxu0
    %v700 = vadd.f32 %v438, %v699
    %v701 = vpop.f32.mrf.mxu0
    %v702 = vadd.f32 %v442, %v701
    %v703 = vpop.f32.mrf.mxu0
    %v704 = vadd.f32 %v438, %v703
    %v705 = vpop.f32.mrf.mxu0
    %v706 = vadd.f32 %v442, %v705
    %707 = vmatprep.mubr.bf16.mxu0 %v400
    %708 = vmatmul.mubr.bf16.gmra.mxu0 %v399
    %v709 = vpop.f32.mrf.mxu0
    %v710 = vadd.f32 %v438, %v709
    %v711 = vpop.f32.mrf.mxu0
    %v712 = vadd.f32 %v442, %v711
    %v713 = vpop.f32.mrf.mxu0
    %v714 = vadd.f32 %v438, %v713
    %v715 = vpop.f32.mrf.mxu0
    %v716 = vadd.f32 %v442, %v715
    %717 = vdwg.mxu0
    %v718 = vtanh.pop %v640
    %v719 = vtanh.pop %v642
    %v720 = vtanh.pop %v644
    %v721 = vtanh.pop %v646
    %v722 = vtanh.pop %v650
    %v723 = vtanh.pop %v652
    %v724 = vtanh.pop %v654
    %v725 = vtanh.pop %v656
    %v726 = vtanh.pop %v660
    %v727 = vtanh.pop %v662
    %v728 = vtanh.pop %v664
    %v729 = vtanh.pop %v666
    %v730 = vtanh.pop %v670
    %v731 = vtanh.pop %v672
    %v732 = vtanh.pop %v674
    %v733 = vtanh.pop %v676
    %v734 = vtanh.pop %v680
    %v735 = vtanh.pop %v682
    %v736 = vtanh.pop %v684
    %v737 = vtanh.pop %v686
    %v738 = vtanh.pop %v690
    %v739 = vtanh.pop %v692
    %v740 = vtanh.pop %v694
    %v741 = vtanh.pop %v696
    %v742 = vtanh.pop %v700
    %v743 = vtanh.pop %v702
    %v744 = vtanh.pop %v704
    %v745 = vtanh.pop %v706
    %v746 = vtanh.pop %v710
    %v747 = vtanh.pop %v712
    %v748 = vtanh.pop %v714
    %v749 = vtanh.pop %v716
    %v750 = vpack.c.bf16 %v720, %v718
    %v751 = vpack.c.bf16 %v721, %v719
    %v752 = vpack.c.bf16 %v724, %v722
    %v753 = vpack.c.bf16 %v725, %v723
    %v754 = vpack.c.bf16 %v728, %v726
    %v755 = vpack.c.bf16 %v729, %v727
    %v756 = vpack.c.bf16 %v732, %v730
    %v757 = vpack.c.bf16 %v733, %v731
    %v758 = vpack.c.bf16 %v736, %v734
    %v759 = vpack.c.bf16 %v737, %v735
    %v760 = vpack.c.bf16 %v740, %v738
    %v761 = vpack.c.bf16 %v741, %v739
    %v762 = vpack.c.bf16 %v744, %v742
    %v763 = vpack.c.bf16 %v745, %v743
    %v764 = vpack.c.bf16 %v748, %v746
    %v765 = vpack.c.bf16 %v749, %v747
    %v766 = vld [vmem:[#allocation11] sm:$0xff]
    %v767 = vld [vmem:[#allocation11 + $0x8] sm:$0xff]
    %v768 = vld [vmem:[#allocation11 + $0x10] sm:$0xff]
    %v769 = vld [vmem:[#allocation11 + $0x18] sm:$0xff]
    %v770 = vld [vmem:[#allocation11 + $0x20] sm:$0xff]
    %v771 = vld [vmem:[#allocation11 + $0x28] sm:$0xff]
    %v772 = vld [vmem:[#allocation11 + $0x30] sm:$0xff]
    %v773 = vld [vmem:[#allocation11 + $0x38] sm:$0xff]
    %v774 = vld [vmem:[#allocation11 + $0x40] sm:$0xff]
    %v775 = vld [vmem:[#allocation11 + $0x48] sm:$0xff]
    %v776 = vld [vmem:[#allocation11 + $0x50] sm:$0xff]
    %v777 = vld [vmem:[#allocation11 + $0x58] sm:$0xff]
    %v778 = vld [vmem:[#allocation11 + $0x60] sm:$0xff]
    %v779 = vld [vmem:[#allocation11 + $0x68] sm:$0xff]
    %v780 = vld [vmem:[#allocation11 + $0x70] sm:$0xff]
    %v781 = vld [vmem:[#allocation11 + $0x78] sm:$0xff]
    %v782 = vld [vmem:[#allocation11 + $0x80] sm:$0xff]
    %v783 = vld [vmem:[#allocation11 + $0x88] sm:$0xff]
    %v784 = vld [vmem:[#allocation11 + $0x90] sm:$0xff]
    %v785 = vld [vmem:[#allocation11 + $0x98] sm:$0xff]
    %v786 = vld [vmem:[#allocation11 + $0xa0] sm:$0xff]
    %v787 = vld [vmem:[#allocation11 + $0xa8] sm:$0xff]
    %v788 = vld [vmem:[#allocation11 + $0xb0] sm:$0xff]
    %v789 = vld [vmem:[#allocation11 + $0xb8] sm:$0xff]
    %v790 = vld [vmem:[#allocation11 + $0xc0] sm:$0xff]
    %v791 = vld [vmem:[#allocation11 + $0xc8] sm:$0xff]
    %v792 = vld [vmem:[#allocation11 + $0xd0] sm:$0xff]
    %v793 = vld [vmem:[#allocation11 + $0xd8] sm:$0xff]
    %v794 = vld [vmem:[#allocation11 + $0xe0] sm:$0xff]
    %v795 = vld [vmem:[#allocation11 + $0xe8] sm:$0xff]
    %v796 = vld [vmem:[#allocation11 + $0xf0] sm:$0xff]
    %v797 = vld [vmem:[#allocation11 + $0xf8] sm:$0xff]
    %v798 = vld [vmem:[%s15] sm:$0x3]
    %v800 = vlaneseq
    %v801 = vshrl.u32 %v800, 7
    %v802 = vsub.s32 0, %v801
    %v803 = vrot.slane %v798, %v802
    %v804 = vlaneseq
    %v805 = vshrl.u32 %v804, 7
    %v806 = vsub.s32 1, %v805
    %v807 = vrot.slane %v798, %v806
    %v842 = vunpack.c.l.b16 %v766
    %v843 = vunpack.c.h.b16 %v766
    %v844 = vunpack.c.l.b16 %v767
    %v845 = vunpack.c.h.b16 %v767
    %v846 = vunpack.c.l.b16 %v768
    %v847 = vunpack.c.h.b16 %v768
    %v848 = vunpack.c.l.b16 %v769
    %v849 = vunpack.c.h.b16 %v769
    %v850 = vunpack.c.l.b16 %v770
    %v851 = vunpack.c.h.b16 %v770
    %v852 = vunpack.c.l.b16 %v771
    %v853 = vunpack.c.h.b16 %v771
    %v854 = vunpack.c.l.b16 %v772
    %v855 = vunpack.c.h.b16 %v772
    %v856 = vunpack.c.l.b16 %v773
    %v857 = vunpack.c.h.b16 %v773
    %v858 = vunpack.c.l.b16 %v774
    %v859 = vunpack.c.h.b16 %v774
    %v860 = vunpack.c.l.b16 %v775
    %v861 = vunpack.c.h.b16 %v775
    %v862 = vunpack.c.l.b16 %v776
    %v863 = vunpack.c.h.b16 %v776
    %v864 = vunpack.c.l.b16 %v777
    %v865 = vunpack.c.h.b16 %v777
    %v866 = vunpack.c.l.b16 %v778
    %v867 = vunpack.c.h.b16 %v778
    %v868 = vunpack.c.l.b16 %v779
    %v869 = vunpack.c.h.b16 %v779
    %v870 = vunpack.c.l.b16 %v780
    %v871 = vunpack.c.h.b16 %v780
    %v872 = vunpack.c.l.b16 %v781
    %v873 = vunpack.c.h.b16 %v781
    %v874 = vunpack.c.l.b16 %v782
    %v875 = vunpack.c.h.b16 %v782
    %v876 = vunpack.c.l.b16 %v783
    %v877 = vunpack.c.h.b16 %v783
    %v878 = vunpack.c.l.b16 %v784
    %v879 = vunpack.c.h.b16 %v784
    %v880 = vunpack.c.l.b16 %v785
    %v881 = vunpack.c.h.b16 %v785
    %v882 = vunpack.c.l.b16 %v786
    %v883 = vunpack.c.h.b16 %v786
    %v884 = vunpack.c.l.b16 %v787
    %v885 = vunpack.c.h.b16 %v787
    %v886 = vunpack.c.l.b16 %v788
    %v887 = vunpack.c.h.b16 %v788
    %v888 = vunpack.c.l.b16 %v789
    %v889 = vunpack.c.h.b16 %v789
    %v890 = vunpack.c.l.b16 %v790
    %v891 = vunpack.c.h.b16 %v790
    %v892 = vunpack.c.l.b16 %v791
    %v893 = vunpack.c.h.b16 %v791
    %v894 = vunpack.c.l.b16 %v792
    %v895 = vunpack.c.h.b16 %v792
    %v896 = vunpack.c.l.b16 %v793
    %v897 = vunpack.c.h.b16 %v793
    %v898 = vunpack.c.l.b16 %v794
    %v899 = vunpack.c.h.b16 %v794
    %v900 = vunpack.c.l.b16 %v795
    %v901 = vunpack.c.h.b16 %v795
    %v902 = vunpack.c.l.b16 %v796
    %v903 = vunpack.c.h.b16 %v796
    %v904 = vunpack.c.l.b16 %v797
    %v905 = vunpack.c.h.b16 %v797
    %v906 = vpack.c.b16 %v844, %v842
    %v907 = vpack.c.b16 %v845, %v843
    %v908 = vpack.c.b16 %v848, %v846
    %v909 = vpack.c.b16 %v849, %v847
    %v910 = vpack.c.b16 %v852, %v850
    %v911 = vpack.c.b16 %v853, %v851
    %v912 = vpack.c.b16 %v856, %v854
    %v913 = vpack.c.b16 %v857, %v855
    %v914 = vpack.c.b16 %v860, %v858
    %v915 = vpack.c.b16 %v861, %v859
    %v916 = vpack.c.b16 %v864, %v862
    %v917 = vpack.c.b16 %v865, %v863
    %v918 = vpack.c.b16 %v868, %v866
    %v919 = vpack.c.b16 %v869, %v867
    %v920 = vpack.c.b16 %v872, %v870
    %v921 = vpack.c.b16 %v873, %v871
    %v922 = vpack.c.b16 %v876, %v874
    %v923 = vpack.c.b16 %v877, %v875
    %v924 = vpack.c.b16 %v880, %v878
    %v925 = vpack.c.b16 %v881, %v879
    %v926 = vpack.c.b16 %v884, %v882
    %v927 = vpack.c.b16 %v885, %v883
    %v928 = vpack.c.b16 %v888, %v886
    %v929 = vpack.c.b16 %v889, %v887
    %v930 = vpack.c.b16 %v892, %v890
    %v931 = vpack.c.b16 %v893, %v891
    %v932 = vpack.c.b16 %v896, %v894
    %v933 = vpack.c.b16 %v897, %v895
    %v934 = vpack.c.b16 %v900, %v898
    %v935 = vpack.c.b16 %v901, %v899
    %v936 = vpack.c.b16 %v904, %v902
    %v937 = vpack.c.b16 %v905, %v903
    %970 = vmatprep.subr.bf16.mxu0 %v921
    %971 = vmatpush1.bf16.msra.mxu0 %v920
    %972 = vmatprep.subr.bf16.mxu0 %v919
    %973 = vmatpush1.bf16.msra.mxu0 %v918
    %974 = vmatprep.subr.bf16.mxu0 %v917
    %975 = vmatpush1.bf16.msra.mxu0 %v916
    %976 = vmatprep.subr.bf16.mxu0 %v915
    %977 = vmatpush1.bf16.msra.mxu0 %v914
    %978 = vmatprep.subr.bf16.mxu0 %v913
    %979 = vmatpush1.bf16.msra.mxu0 %v912
    %980 = vmatprep.subr.bf16.mxu0 %v911
    %981 = vmatpush1.bf16.msra.mxu0 %v910
    %982 = vmatprep.subr.bf16.mxu0 %v909
    %983 = vmatpush1.bf16.msra.mxu0 %v908
    %984 = vmatprep.subr.bf16.mxu0 %v907
    %985 = vmatpush1.bf16.msra.mxu0 %v906
    %986 = vmatprep.subr.bf16.mxu0 %v937
    %987 = vmatpush2.bf16.msra.mxu0 %v936
    %988 = vmatprep.subr.bf16.mxu0 %v935
    %989 = vmatpush2.bf16.msra.mxu0 %v934
    %990 = vmatprep.subr.bf16.mxu0 %v933
    %991 = vmatpush2.bf16.msra.mxu0 %v932
    %992 = vmatprep.subr.bf16.mxu0 %v931
    %993 = vmatpush2.bf16.msra.mxu0 %v930
    %994 = vmatprep.subr.bf16.mxu0 %v929
    %995 = vmatpush2.bf16.msra.mxu0 %v928
    %996 = vmatprep.subr.bf16.mxu0 %v927
    %997 = vmatpush2.bf16.msra.mxu0 %v926
    %998 = vmatprep.subr.bf16.mxu0 %v925
    %999 = vmatpush2.bf16.msra.mxu0 %v924
    %1000 = vmatprep.subr.bf16.mxu0 %v923
    %1001 = vmatpush2.bf16.msra.mxu0 %v922
    %1002 = vmatprep.mubr.bf16.mxu0 %v751
    %1003 = vmatmul.mubr.bf16.gmra.mxu0 %v750
    %v1004 = vpop.f32.mrf.mxu0
    %v1005 = vadd.f32 %v803, %v1004
    %v1006 = vpop.f32.mrf.mxu0
    %v1007 = vadd.f32 %v807, %v1006
    %v1008 = vpop.f32.mrf.mxu0
    %v1009 = vadd.f32 %v803, %v1008
    %v1010 = vpop.f32.mrf.mxu0
    %v1011 = vadd.f32 %v807, %v1010
    %1012 = vmatprep.mubr.bf16.mxu0 %v753
    %1013 = vmatmul.mubr.bf16.gmra.mxu0 %v752
    %v1014 = vpop.f32.mrf.mxu0
    %v1015 = vadd.f32 %v803, %v1014
    %v1016 = vpop.f32.mrf.mxu0
    %v1017 = vadd.f32 %v807, %v1016
    %v1018 = vpop.f32.mrf.mxu0
    %v1019 = vadd.f32 %v803, %v1018
    %v1020 = vpop.f32.mrf.mxu0
    %v1021 = vadd.f32 %v807, %v1020
    %1022 = vmatprep.mubr.bf16.mxu0 %v755
    %1023 = vmatmul.mubr.bf16.gmra.mxu0 %v754
    %v1024 = vpop.f32.mrf.mxu0
    %v1025 = vadd.f32 %v803, %v1024
    %v1026 = vpop.f32.mrf.mxu0
    %v1027 = vadd.f32 %v807, %v1026
    %v1028 = vpop.f32.mrf.mxu0
    %v1029 = vadd.f32 %v803, %v1028
    %v1030 = vpop.f32.mrf.mxu0
    %v1031 = vadd.f32 %v807, %v1030
    %1032 = vmatprep.mubr.bf16.mxu0 %v757
    %1033 = vmatmul.mubr.bf16.gmra.mxu0 %v756
    %v1034 = vpop.f32.mrf.mxu0
    %v1035 = vadd.f32 %v803, %v1034
    %v1036 = vpop.f32.mrf.mxu0
    %v1037 = vadd.f32 %v807, %v1036
    %v1038 = vpop.f32.mrf.mxu0
    %v1039 = vadd.f32 %v803, %v1038
    %v1040 = vpop.f32.mrf.mxu0
    %v1041 = vadd.f32 %v807, %v1040
    %1042 = vmatprep.mubr.bf16.mxu0 %v759
    %1043 = vmatmul.mubr.bf16.gmra.mxu0 %v758
    %v1044 = vpop.f32.mrf.mxu0
    %v1045 = vadd.f32 %v803, %v1044
    %v1046 = vpop.f32.mrf.mxu0
    %v1047 = vadd.f32 %v807, %v1046
    %v1048 = vpop.f32.mrf.mxu0
    %v1049 = vadd.f32 %v803, %v1048
    %v1050 = vpop.f32.mrf.mxu0
    %v1051 = vadd.f32 %v807, %v1050
    %1052 = vmatprep.mubr.bf16.mxu0 %v761
    %1053 = vmatmul.mubr.bf16.gmra.mxu0 %v760
    %v1054 = vpop.f32.mrf.mxu0
    %v1055 = vadd.f32 %v803, %v1054
    %v1056 = vpop.f32.mrf.mxu0
    %v1057 = vadd.f32 %v807, %v1056
    %v1058 = vpop.f32.mrf.mxu0
    %v1059 = vadd.f32 %v803, %v1058
    %v1060 = vpop.f32.mrf.mxu0
    %v1061 = vadd.f32 %v807, %v1060
    %1062 = vmatprep.mubr.bf16.mxu0 %v763
    %1063 = vmatmul.mubr.bf16.gmra.mxu0 %v762
    %v1064 = vpop.f32.mrf.mxu0
    %v1065 = vadd.f32 %v803, %v1064
    %v1066 = vpop.f32.mrf.mxu0
    %v1067 = vadd.f32 %v807, %v1066
    %v1068 = vpop.f32.mrf.mxu0
    %v1069 = vadd.f32 %v803, %v1068
    %v1070 = vpop.f32.mrf.mxu0
    %v1071 = vadd.f32 %v807, %v1070
    %1072 = vmatprep.mubr.bf16.mxu0 %v765
    %1073 = vmatmul.mubr.bf16.gmra.mxu0 %v764
    %v1074 = vpop.f32.mrf.mxu0
    %v1075 = vadd.f32 %v803, %v1074
    %v1076 = vpop.f32.mrf.mxu0
    %v1077 = vadd.f32 %v807, %v1076
    %v1078 = vpop.f32.mrf.mxu0
    %v1079 = vadd.f32 %v803, %v1078
    %v1080 = vpop.f32.mrf.mxu0
    %v1081 = vadd.f32 %v807, %v1080
    %1082 = vdwg.mxu0
    %v1083 = vtanh.pop %v1005
    %v1084 = vtanh.pop %v1007
    %v1085 = vtanh.pop %v1009
    %v1086 = vtanh.pop %v1011
    %v1087 = vtanh.pop %v1015
    %v1088 = vtanh.pop %v1017
    %v1089 = vtanh.pop %v1019
    %v1090 = vtanh.pop %v1021
    %v1091 = vtanh.pop %v1025
    %v1092 = vtanh.pop %v1027
    %v1093 = vtanh.pop %v1029
    %v1094 = vtanh.pop %v1031
    %v1095 = vtanh.pop %v1035
    %v1096 = vtanh.pop %v1037
    %v1097 = vtanh.pop %v1039
    %v1098 = vtanh.pop %v1041
    %v1099 = vtanh.pop %v1045
    %v1100 = vtanh.pop %v1047
    %v1101 = vtanh.pop %v1049
    %v1102 = vtanh.pop %v1051
    %v1103 = vtanh.pop %v1055
    %v1104 = vtanh.pop %v1057
    %v1105 = vtanh.pop %v1059
    %v1106 = vtanh.pop %v1061
    %v1107 = vtanh.pop %v1065
    %v1108 = vtanh.pop %v1067
    %v1109 = vtanh.pop %v1069
    %v1110 = vtanh.pop %v1071
    %v1111 = vtanh.pop %v1075
    %v1112 = vtanh.pop %v1077
    %v1113 = vtanh.pop %v1079
    %v1114 = vtanh.pop %v1081
    %v1115 = vpack.c.bf16 %v1085, %v1083
    %v1116 = vpack.c.bf16 %v1086, %v1084
    %v1117 = vpack.c.bf16 %v1089, %v1087
    %v1118 = vpack.c.bf16 %v1090, %v1088
    %v1119 = vpack.c.bf16 %v1093, %v1091
    %v1120 = vpack.c.bf16 %v1094, %v1092
    %v1121 = vpack.c.bf16 %v1097, %v1095
    %v1122 = vpack.c.bf16 %v1098, %v1096
    %v1123 = vpack.c.bf16 %v1101, %v1099
    %v1124 = vpack.c.bf16 %v1102, %v1100
    %v1125 = vpack.c.bf16 %v1105, %v1103
    %v1126 = vpack.c.bf16 %v1106, %v1104
    %v1127 = vpack.c.bf16 %v1109, %v1107
    %v1128 = vpack.c.bf16 %v1110, %v1108
    %v1129 = vpack.c.bf16 %v1113, %v1111
    %v1130 = vpack.c.bf16 %v1114, %v1112
    %v1131 = vld [vmem:[#allocation13] sm:$0xff]
    %v1132 = vld [vmem:[#allocation13 + $0x8] sm:$0xff]
    %v1133 = vld [vmem:[#allocation13 + $0x10] sm:$0xff]
    %v1134 = vld [vmem:[#allocation13 + $0x18] sm:$0xff]
    %v1135 = vld [vmem:[#allocation13 + $0x20] sm:$0xff]
    %v1136 = vld [vmem:[#allocation13 + $0x28] sm:$0xff]
    %v1137 = vld [vmem:[#allocation13 + $0x30] sm:$0xff]
    %v1138 = vld [vmem:[#allocation13 + $0x38] sm:$0xff]
    %v1139 = vld [vmem:[#allocation13 + $0x40] sm:$0xff]
    %v1140 = vld [vmem:[#allocation13 + $0x48] sm:$0xff]
    %v1141 = vld [vmem:[#allocation13 + $0x50] sm:$0xff]
    %v1142 = vld [vmem:[#allocation13 + $0x58] sm:$0xff]
    %v1143 = vld [vmem:[#allocation13 + $0x60] sm:$0xff]
    %v1144 = vld [vmem:[#allocation13 + $0x68] sm:$0xff]
    %v1145 = vld [vmem:[#allocation13 + $0x70] sm:$0xff]
    %v1146 = vld [vmem:[#allocation13 + $0x78] sm:$0xff]
    %v1147 = vld [vmem:[#allocation13 + $0x80] sm:$0xff]
    %v1148 = vld [vmem:[#allocation13 + $0x88] sm:$0xff]
    %v1149 = vld [vmem:[#allocation13 + $0x90] sm:$0xff]
    %v1150 = vld [vmem:[#allocation13 + $0x98] sm:$0xff]
    %v1151 = vld [vmem:[#allocation13 + $0xa0] sm:$0xff]
    %v1152 = vld [vmem:[#allocation13 + $0xa8] sm:$0xff]
    %v1153 = vld [vmem:[#allocation13 + $0xb0] sm:$0xff]
    %v1154 = vld [vmem:[#allocation13 + $0xb8] sm:$0xff]
    %v1155 = vld [vmem:[#allocation13 + $0xc0] sm:$0xff]
    %v1156 = vld [vmem:[#allocation13 + $0xc8] sm:$0xff]
    %v1157 = vld [vmem:[#allocation13 + $0xd0] sm:$0xff]
    %v1158 = vld [vmem:[#allocation13 + $0xd8] sm:$0xff]
    %v1159 = vld [vmem:[#allocation13 + $0xe0] sm:$0xff]
    %v1160 = vld [vmem:[#allocation13 + $0xe8] sm:$0xff]
    %v1161 = vld [vmem:[#allocation13 + $0xf0] sm:$0xff]
    %v1162 = vld [vmem:[#allocation13 + $0xf8] sm:$0xff]
    %v1163 = vld [vmem:[%s19] sm:$0x3]
    %v1165 = vlaneseq
    %v1166 = vshrl.u32 %v1165, 7
    %v1167 = vsub.s32 0, %v1166
    %v1168 = vrot.slane %v1163, %v1167
    %v1169 = vlaneseq
    %v1170 = vshrl.u32 %v1169, 7
    %v1171 = vsub.s32 1, %v1170
    %v1172 = vrot.slane %v1163, %v1171
    %v1207 = vunpack.c.l.b16 %v1131
    %v1208 = vunpack.c.h.b16 %v1131
    %v1209 = vunpack.c.l.b16 %v1132
    %v1210 = vunpack.c.h.b16 %v1132
    %v1211 = vunpack.c.l.b16 %v1133
    %v1212 = vunpack.c.h.b16 %v1133
    %v1213 = vunpack.c.l.b16 %v1134
    %v1214 = vunpack.c.h.b16 %v1134
    %v1215 = vunpack.c.l.b16 %v1135
    %v1216 = vunpack.c.h.b16 %v1135
    %v1217 = vunpack.c.l.b16 %v1136
    %v1218 = vunpack.c.h.b16 %v1136
    %v1219 = vunpack.c.l.b16 %v1137
    %v1220 = vunpack.c.h.b16 %v1137
    %v1221 = vunpack.c.l.b16 %v1138
    %v1222 = vunpack.c.h.b16 %v1138
    %v1223 = vunpack.c.l.b16 %v1139
    %v1224 = vunpack.c.h.b16 %v1139
    %v1225 = vunpack.c.l.b16 %v1140
    %v1226 = vunpack.c.h.b16 %v1140
    %v1227 = vunpack.c.l.b16 %v1141
    %v1228 = vunpack.c.h.b16 %v1141
    %v1229 = vunpack.c.l.b16 %v1142
    %v1230 = vunpack.c.h.b16 %v1142
    %v1231 = vunpack.c.l.b16 %v1143
    %v1232 = vunpack.c.h.b16 %v1143
    %v1233 = vunpack.c.l.b16 %v1144
    %v1234 = vunpack.c.h.b16 %v1144
    %v1235 = vunpack.c.l.b16 %v1145
    %v1236 = vunpack.c.h.b16 %v1145
    %v1237 = vunpack.c.l.b16 %v1146
    %v1238 = vunpack.c.h.b16 %v1146
    %v1239 = vunpack.c.l.b16 %v1147
    %v1240 = vunpack.c.h.b16 %v1147
    %v1241 = vunpack.c.l.b16 %v1148
    %v1242 = vunpack.c.h.b16 %v1148
    %v1243 = vunpack.c.l.b16 %v1149
    %v1244 = vunpack.c.h.b16 %v1149
    %v1245 = vunpack.c.l.b16 %v1150
    %v1246 = vunpack.c.h.b16 %v1150
    %v1247 = vunpack.c.l.b16 %v1151
    %v1248 = vunpack.c.h.b16 %v1151
    %v1249 = vunpack.c.l.b16 %v1152
    %v1250 = vunpack.c.h.b16 %v1152
    %v1251 = vunpack.c.l.b16 %v1153
    %v1252 = vunpack.c.h.b16 %v1153
    %v1253 = vunpack.c.l.b16 %v1154
    %v1254 = vunpack.c.h.b16 %v1154
    %v1255 = vunpack.c.l.b16 %v1155
    %v1256 = vunpack.c.h.b16 %v1155
    %v1257 = vunpack.c.l.b16 %v1156
    %v1258 = vunpack.c.h.b16 %v1156
    %v1259 = vunpack.c.l.b16 %v1157
    %v1260 = vunpack.c.h.b16 %v1157
    %v1261 = vunpack.c.l.b16 %v1158
    %v1262 = vunpack.c.h.b16 %v1158
    %v1263 = vunpack.c.l.b16 %v1159
    %v1264 = vunpack.c.h.b16 %v1159
    %v1265 = vunpack.c.l.b16 %v1160
    %v1266 = vunpack.c.h.b16 %v1160
    %v1267 = vunpack.c.l.b16 %v1161
    %v1268 = vunpack.c.h.b16 %v1161
    %v1269 = vunpack.c.l.b16 %v1162
    %v1270 = vunpack.c.h.b16 %v1162
    %v1271 = vpack.c.b16 %v1209, %v1207
    %v1272 = vpack.c.b16 %v1210, %v1208
    %v1273 = vpack.c.b16 %v1213, %v1211
    %v1274 = vpack.c.b16 %v1214, %v1212
    %v1275 = vpack.c.b16 %v1217, %v1215
    %v1276 = vpack.c.b16 %v1218, %v1216
    %v1277 = vpack.c.b16 %v1221, %v1219
    %v1278 = vpack.c.b16 %v1222, %v1220
    %v1279 = vpack.c.b16 %v1225, %v1223
    %v1280 = vpack.c.b16 %v1226, %v1224
    %v1281 = vpack.c.b16 %v1229, %v1227
    %v1282 = vpack.c.b16 %v1230, %v1228
    %v1283 = vpack.c.b16 %v1233, %v1231
    %v1284 = vpack.c.b16 %v1234, %v1232
    %v1285 = vpack.c.b16 %v1237, %v1235
    %v1286 = vpack.c.b16 %v1238, %v1236
    %v1287 = vpack.c.b16 %v1241, %v1239
    %v1288 = vpack.c.b16 %v1242, %v1240
    %v1289 = vpack.c.b16 %v1245, %v1243
    %v1290 = vpack.c.b16 %v1246, %v1244
    %v1291 = vpack.c.b16 %v1249, %v1247
    %v1292 = vpack.c.b16 %v1250, %v1248
    %v1293 = vpack.c.b16 %v1253, %v1251
    %v1294 = vpack.c.b16 %v1254, %v1252
    %v1295 = vpack.c.b16 %v1257, %v1255
    %v1296 = vpack.c.b16 %v1258, %v1256
    %v1297 = vpack.c.b16 %v1261, %v1259
    %v1298 = vpack.c.b16 %v1262, %v1260
    %v1299 = vpack.c.b16 %v1265, %v1263
    %v1300 = vpack.c.b16 %v1266, %v1264
    %v1301 = vpack.c.b16 %v1269, %v1267
    %v1302 = vpack.c.b16 %v1270, %v1268
    %1335 = vmatprep.subr.bf16.mxu0 %v1286
    %1336 = vmatpush1.bf16.msra.mxu0 %v1285
    %1337 = vmatprep.subr.bf16.mxu0 %v1284
    %1338 = vmatpush1.bf16.msra.mxu0 %v1283
    %1339 = vmatprep.subr.bf16.mxu0 %v1282
    %1340 = vmatpush1.bf16.msra.mxu0 %v1281
    %1341 = vmatprep.subr.bf16.mxu0 %v1280
    %1342 = vmatpush1.bf16.msra.mxu0 %v1279
    %1343 = vmatprep.subr.bf16.mxu0 %v1278
    %1344 = vmatpush1.bf16.msra.mxu0 %v1277
    %1345 = vmatprep.subr.bf16.mxu0 %v1276
    %1346 = vmatpush1.bf16.msra.mxu0 %v1275
    %1347 = vmatprep.subr.bf16.mxu0 %v1274
    %1348 = vmatpush1.bf16.msra.mxu0 %v1273
    %1349 = vmatprep.subr.bf16.mxu0 %v1272
    %1350 = vmatpush1.bf16.msra.mxu0 %v1271
    %1351 = vmatprep.subr.bf16.mxu0 %v1302
    %1352 = vmatpush2.bf16.msra.mxu0 %v1301
    %1353 = vmatprep.subr.bf16.mxu0 %v1300
    %1354 = vmatpush2.bf16.msra.mxu0 %v1299
    %1355 = vmatprep.subr.bf16.mxu0 %v1298
    %1356 = vmatpush2.bf16.msra.mxu0 %v1297
    %1357 = vmatprep.subr.bf16.mxu0 %v1296
    %1358 = vmatpush2.bf16.msra.mxu0 %v1295
    %1359 = vmatprep.subr.bf16.mxu0 %v1294
    %1360 = vmatpush2.bf16.msra.mxu0 %v1293
    %1361 = vmatprep.subr.bf16.mxu0 %v1292
    %1362 = vmatpush2.bf16.msra.mxu0 %v1291
    %1363 = vmatprep.subr.bf16.mxu0 %v1290
    %1364 = vmatpush2.bf16.msra.mxu0 %v1289
    %1365 = vmatprep.subr.bf16.mxu0 %v1288
    %1366 = vmatpush2.bf16.msra.mxu0 %v1287
    %1367 = vmatprep.mubr.bf16.mxu0 %v1116
    %1368 = vmatmul.mubr.bf16.gmra.mxu0 %v1115
    %v1369 = vpop.f32.mrf.mxu0
    %v1370 = vadd.f32 %v1168, %v1369
    %v1371 = vpop.f32.mrf.mxu0
    %v1372 = vadd.f32 %v1172, %v1371
    %v1373 = vpop.f32.mrf.mxu0
    %v1374 = vadd.f32 %v1168, %v1373
    %v1375 = vpop.f32.mrf.mxu0
    %v1376 = vadd.f32 %v1172, %v1375
    %1377 = vmatprep.mubr.bf16.mxu0 %v1118
    %1378 = vmatmul.mubr.bf16.gmra.mxu0 %v1117
    %v1379 = vpop.f32.mrf.mxu0
    %v1380 = vadd.f32 %v1168, %v1379
    %v1381 = vpop.f32.mrf.mxu0
    %v1382 = vadd.f32 %v1172, %v1381
    %v1383 = vpop.f32.mrf.mxu0
    %v1384 = vadd.f32 %v1168, %v1383
    %v1385 = vpop.f32.mrf.mxu0
    %v1386 = vadd.f32 %v1172, %v1385
    %1387 = vmatprep.mubr.bf16.mxu0 %v1120
    %1388 = vmatmul.mubr.bf16.gmra.mxu0 %v1119
    %v1389 = vpop.f32.mrf.mxu0
    %v1390 = vadd.f32 %v1168, %v1389
    %v1391 = vpop.f32.mrf.mxu0
    %v1392 = vadd.f32 %v1172, %v1391
    %v1393 = vpop.f32.mrf.mxu0
    %v1394 = vadd.f32 %v1168, %v1393
    %v1395 = vpop.f32.mrf.mxu0
    %v1396 = vadd.f32 %v1172, %v1395
    %1397 = vmatprep.mubr.bf16.mxu0 %v1122
    %1398 = vmatmul.mubr.bf16.gmra.mxu0 %v1121
    %v1399 = vpop.f32.mrf.mxu0
    %v1400 = vadd.f32 %v1168, %v1399
    %v1401 = vpop.f32.mrf.mxu0
    %v1402 = vadd.f32 %v1172, %v1401
    %v1403 = vpop.f32.mrf.mxu0
    %v1404 = vadd.f32 %v1168, %v1403
    %v1405 = vpop.f32.mrf.mxu0
    %v1406 = vadd.f32 %v1172, %v1405
    %1407 = vmatprep.mubr.bf16.mxu0 %v1124
    %1408 = vmatmul.mubr.bf16.gmra.mxu0 %v1123
    %v1409 = vpop.f32.mrf.mxu0
    %v1410 = vadd.f32 %v1168, %v1409
    %v1411 = vpop.f32.mrf.mxu0
    %v1412 = vadd.f32 %v1172, %v1411
    %v1413 = vpop.f32.mrf.mxu0
    %v1414 = vadd.f32 %v1168, %v1413
    %v1415 = vpop.f32.mrf.mxu0
    %v1416 = vadd.f32 %v1172, %v1415
    %1417 = vmatprep.mubr.bf16.mxu0 %v1126
    %1418 = vmatmul.mubr.bf16.gmra.mxu0 %v1125
    %v1419 = vpop.f32.mrf.mxu0
    %v1420 = vadd.f32 %v1168, %v1419
    %v1421 = vpop.f32.mrf.mxu0
    %v1422 = vadd.f32 %v1172, %v1421
    %v1423 = vpop.f32.mrf.mxu0
    %v1424 = vadd.f32 %v1168, %v1423
    %v1425 = vpop.f32.mrf.mxu0
    %v1426 = vadd.f32 %v1172, %v1425
    %1427 = vmatprep.mubr.bf16.mxu0 %v1128
    %1428 = vmatmul.mubr.bf16.gmra.mxu0 %v1127
    %v1429 = vpop.f32.mrf.mxu0
    %v1430 = vadd.f32 %v1168, %v1429
    %v1431 = vpop.f32.mrf.mxu0
    %v1432 = vadd.f32 %v1172, %v1431
    %v1433 = vpop.f32.mrf.mxu0
    %v1434 = vadd.f32 %v1168, %v1433
    %v1435 = vpop.f32.mrf.mxu0
    %v1436 = vadd.f32 %v1172, %v1435
    %1437 = vmatprep.mubr.bf16.mxu0 %v1130
    %1438 = vmatmul.mubr.bf16.gmra.mxu0 %v1129
    %v1439 = vpop.f32.mrf.mxu0
    %v1440 = vadd.f32 %v1168, %v1439
    %v1441 = vpop.f32.mrf.mxu0
    %v1442 = vadd.f32 %v1172, %v1441
    %v1443 = vpop.f32.mrf.mxu0
    %v1444 = vadd.f32 %v1168, %v1443
    %v1445 = vpop.f32.mrf.mxu0
    %v1446 = vadd.f32 %v1172, %v1445
    %1447 = vdwg.mxu0
    %v1448 = vld [vmem:[#allocation5] sm:$0xff]
    %v1449 = vld [vmem:[#allocation5 + $0x8] sm:$0xff]
    %v1450 = vld [vmem:[#allocation5 + $0x10] sm:$0xff]
    %v1451 = vld [vmem:[#allocation5 + $0x18] sm:$0xff]
    %v1452 = vld [vmem:[#allocation5 + $0x20] sm:$0xff]
    %v1453 = vld [vmem:[#allocation5 + $0x28] sm:$0xff]
    %v1454 = vld [vmem:[#allocation5 + $0x30] sm:$0xff]
    %v1455 = vld [vmem:[#allocation5 + $0x38] sm:$0xff]
    %v1456 = vld [vmem:[#allocation5 + $0x40] sm:$0xff]
    %v1457 = vld [vmem:[#allocation5 + $0x48] sm:$0xff]
    %v1458 = vld [vmem:[#allocation5 + $0x50] sm:$0xff]
    %v1459 = vld [vmem:[#allocation5 + $0x58] sm:$0xff]
    %v1460 = vld [vmem:[#allocation5 + $0x60] sm:$0xff]
    %v1461 = vld [vmem:[#allocation5 + $0x68] sm:$0xff]
    %v1462 = vld [vmem:[#allocation5 + $0x70] sm:$0xff]
    %v1463 = vld [vmem:[#allocation5 + $0x78] sm:$0xff]
    %v1464 = vmul.f32 %v1372, 0.5
    %v1465 = vmul.f32 %v1376, 0.5
    %v1466 = vmul.f32 %v1382, 0.5
    %v1467 = vmul.f32 %v1386, 0.5
    %v1468 = vmul.f32 %v1392, 0.5
    %v1469 = vmul.f32 %v1396, 0.5
    %v1470 = vmul.f32 %v1402, 0.5
    %v1471 = vmul.f32 %v1406, 0.5
    %v1472 = vmul.f32 %v1412, 0.5
    %v1473 = vmul.f32 %v1416, 0.5
    %v1474 = vmul.f32 %v1422, 0.5
    %v1475 = vmul.f32 %v1426, 0.5
    %v1476 = vmul.f32 %v1432, 0.5
    %v1477 = vmul.f32 %v1436, 0.5
    %v1478 = vmul.f32 %v1442, 0.5
    %v1479 = vmul.f32 %v1446, 0.5
    %v1480 = vmul.f32 %v1464, 1.442695
    %v1481 = vpow.pop %v1480
    %v1482 = vmul.f32 %v1465, 1.442695
    %v1483 = vpow.pop %v1482
    %v1484 = vmul.f32 %v1466, 1.442695
    %v1485 = vpow.pop %v1484
    %v1486 = vmul.f32 %v1467, 1.442695
    %v1487 = vpow.pop %v1486
    %v1488 = vmul.f32 %v1468, 1.442695
    %v1489 = vpow.pop %v1488
    %v1490 = vmul.f32 %v1469, 1.442695
    %v1491 = vpow.pop %v1490
    %v1492 = vmul.f32 %v1470, 1.442695
    %v1493 = vpow.pop %v1492
    %v1494 = vmul.f32 %v1471, 1.442695
    %v1495 = vpow.pop %v1494
    %v1496 = vmul.f32 %v1472, 1.442695
    %v1497 = vpow.pop %v1496
    %v1498 = vmul.f32 %v1473, 1.442695
    %v1499 = vpow.pop %v1498
    %v1500 = vmul.f32 %v1474, 1.442695
    %v1501 = vpow.pop %v1500
    %v1502 = vmul.f32 %v1475, 1.442695
    %v1503 = vpow.pop %v1502
    %v1504 = vmul.f32 %v1476, 1.442695
    %v1505 = vpow.pop %v1504
    %v1506 = vmul.f32 %v1477, 1.442695
    %v1507 = vpow.pop %v1506
    %v1508 = vmul.f32 %v1478, 1.442695
    %v1509 = vpow.pop %v1508
    %v1510 = vmul.f32 %v1479, 1.442695
    %v1511 = vpow.pop %v1510
    %v1512 = vmul.f32 %v1448, %v1481
    %v1513 = vmul.f32 %v1449, %v1483
    %v1514 = vmul.f32 %v1450, %v1485
    %v1515 = vmul.f32 %v1451, %v1487
    %v1516 = vmul.f32 %v1452, %v1489
    %v1517 = vmul.f32 %v1453, %v1491
    %v1518 = vmul.f32 %v1454, %v1493
    %v1519 = vmul.f32 %v1455, %v1495
    %v1520 = vmul.f32 %v1456, %v1497
    %v1521 = vmul.f32 %v1457, %v1499
    %v1522 = vmul.f32 %v1458, %v1501
    %v1523 = vmul.f32 %v1459, %v1503
    %v1524 = vmul.f32 %v1460, %v1505
    %v1525 = vmul.f32 %v1461, %v1507
    %v1526 = vmul.f32 %v1462, %v1509
    %v1527 = vmul.f32 %v1463, %v1511
    %v1528 = vadd.f32 %v1370, %v1512
    %v1529 = vadd.f32 %v1374, %v1513
    %v1530 = vadd.f32 %v1380, %v1514
    %v1531 = vadd.f32 %v1384, %v1515
    %v1532 = vadd.f32 %v1390, %v1516
    %v1533 = vadd.f32 %v1394, %v1517
    %v1534 = vadd.f32 %v1400, %v1518
    %v1535 = vadd.f32 %v1404, %v1519
    %v1536 = vadd.f32 %v1410, %v1520
    %v1537 = vadd.f32 %v1414, %v1521
    %v1538 = vadd.f32 %v1420, %v1522
    %v1539 = vadd.f32 %v1424, %v1523
    %v1540 = vadd.f32 %v1430, %v1524
    %v1541 = vadd.f32 %v1434, %v1525
    %v1542 = vadd.f32 %v1440, %v1526
    %v1543 = vadd.f32 %v1444, %v1527
    %v1544 = vpack.c.bf16 %v1529, %v1528
    %v1545 = vpack.c.bf16 %v1531, %v1530
    %v1546 = vpack.c.bf16 %v1533, %v1532
    %v1547 = vpack.c.bf16 %v1535, %v1534
    %v1548 = vpack.c.bf16 %v1537, %v1536
    %v1549 = vpack.c.bf16 %v1539, %v1538
    %v1550 = vpack.c.bf16 %v1541, %v1540
    %v1551 = vpack.c.bf16 %v1543, %v1542
    %v1552 = vld [vmem:[#allocation14] sm:$0xf]
    %v1553 = vld [vmem:[#allocation14 + $0x4] sm:$0xf]
    %v1554 = vld [vmem:[#allocation14 + $0x8] sm:$0xf]
    %v1555 = vld [vmem:[#allocation14 + $0xc] sm:$0xf]
    %v1556 = vld [vmem:[#allocation14 + $0x10] sm:$0xf]
    %v1557 = vld [vmem:[#allocation14 + $0x14] sm:$0xf]
    %v1558 = vld [vmem:[#allocation14 + $0x18] sm:$0xf]
    %v1559 = vld [vmem:[#allocation14 + $0x1c] sm:$0xf]
    %v1560 = vld [vmem:[#allocation14 + $0x20] sm:$0xf]
    %v1561 = vld [vmem:[#allocation14 + $0x24] sm:$0xf]
    %v1562 = vld [vmem:[#allocation14 + $0x28] sm:$0xf]
    %v1563 = vld [vmem:[#allocation14 + $0x2c] sm:$0xf]
    %v1564 = vld [vmem:[#allocation14 + $0x30] sm:$0xf]
    %v1565 = vld [vmem:[#allocation14 + $0x34] sm:$0xf]
    %v1566 = vld [vmem:[#allocation14 + $0x38] sm:$0xf]
    %v1567 = vld [vmem:[#allocation14 + $0x3c] sm:$0xf]
    %v1568 = vld [vmem:[%s23] sm:$0x1]
    %v1570 = vlaneseq
    %v1571 = vshrl.u32 %v1570, 7
    %v1572 = vsub.s32 0, %v1571
    %v1573 = vrot.slane %v1568, %v1572
    %v1591 = vunpack.c.l.b16 %v1552
    %v1592 = vunpack.c.l.b16 %v1553
    %v1593 = vunpack.c.l.b16 %v1554
    %v1594 = vunpack.c.l.b16 %v1555
    %v1595 = vunpack.c.l.b16 %v1556
    %v1596 = vunpack.c.l.b16 %v1557
    %v1597 = vunpack.c.l.b16 %v1558
    %v1598 = vunpack.c.l.b16 %v1559
    %v1599 = vunpack.c.l.b16 %v1560
    %v1600 = vunpack.c.l.b16 %v1561
    %v1601 = vunpack.c.l.b16 %v1562
    %v1602 = vunpack.c.l.b16 %v1563
    %v1603 = vunpack.c.l.b16 %v1564
    %v1604 = vunpack.c.l.b16 %v1565
    %v1605 = vunpack.c.l.b16 %v1566
    %v1606 = vunpack.c.l.b16 %v1567
    %v1607 = vpack.c.b16 %v1592, %v1591
    %v1608 = vpack.c.b16 %v1594, %v1593
    %v1609 = vpack.c.b16 %v1596, %v1595
    %v1610 = vpack.c.b16 %v1598, %v1597
    %v1611 = vpack.c.b16 %v1600, %v1599
    %v1612 = vpack.c.b16 %v1602, %v1601
    %v1613 = vpack.c.b16 %v1604, %v1603
    %v1614 = vpack.c.b16 %v1606, %v1605
    %1623 = vmatprep.subr.bf16.mxu0 0
    %1624 = vmatpush1.bf16.msra.mxu0 %v1614
    %1625 = vmatprep.subr.bf16.mxu0 0
    %1626 = vmatpush1.bf16.msra.mxu0 %v1613
    %1627 = vmatprep.subr.bf16.mxu0 0
    %1628 = vmatpush1.bf16.msra.mxu0 %v1612
    %1629 = vmatprep.subr.bf16.mxu0 0
    %1630 = vmatpush1.bf16.msra.mxu0 %v1611
    %1631 = vmatprep.subr.bf16.mxu0 0
    %1632 = vmatpush1.bf16.msra.mxu0 %v1610
    %1633 = vmatprep.subr.bf16.mxu0 0
    %1634 = vmatpush1.bf16.msra.mxu0 %v1609
    %1635 = vmatprep.subr.bf16.mxu0 0
    %1636 = vmatpush1.bf16.msra.mxu0 %v1608
    %1637 = vmatprep.subr.bf16.mxu0 0
    %1638 = vmatpush1.bf16.msra.mxu0 %v1607
    %1639 = vmatprep.subr.bf16.mxu0 0
    %1640 = vmatpush2.bf16.msra.mxu0 0
    %1641 = vmatprep.subr.bf16.mxu0 0
    %1642 = vmatpush2.bf16.msra.mxu0 0
    %1643 = vmatprep.subr.bf16.mxu0 0
    %1644 = vmatpush2.bf16.msra.mxu0 0
    %1645 = vmatprep.subr.bf16.mxu0 0
    %1646 = vmatpush2.bf16.msra.mxu0 0
    %1647 = vmatprep.subr.bf16.mxu0 0
    %1648 = vmatpush2.bf16.msra.mxu0 0
    %1649 = vmatprep.subr.bf16.mxu0 0
    %1650 = vmatpush2.bf16.msra.mxu0 0
    %1651 = vmatprep.subr.bf16.mxu0 0
    %1652 = vmatpush2.bf16.msra.mxu0 0
    %1653 = vmatprep.subr.bf16.mxu0 0
    %1654 = vmatpush2.bf16.msra.mxu0 0
    %1655 = vmatprep.mubr.bf16.mxu0 0
    %1656 = vmatmul.mubr.bf16.gmra.mxu0 %v1544
    %v1657 = vpop.f32.mrf.mxu0
    %v1658 = vadd.f32 %v1573, %v1657
    %v1659 = vpop.f32.mrf.mxu0
    %v1660 = vpop.f32.mrf.mxu0
    %v1661 = vadd.f32 %v1573, %v1660
    %v1662 = vpop.f32.mrf.mxu0
    %1663 = vmatprep.mubr.bf16.mxu0 0
    %1664 = vmatmul.mubr.bf16.gmra.mxu0 %v1545
    %v1665 = vpop.f32.mrf.mxu0
    %v1666 = vadd.f32 %v1573, %v1665
    %v1667 = vpop.f32.mrf.mxu0
    %v1668 = vpop.f32.mrf.mxu0
    %v1669 = vadd.f32 %v1573, %v1668
    %v1670 = vpop.f32.mrf.mxu0
    %1671 = vmatprep.mubr.bf16.mxu0 0
    %1672 = vmatmul.mubr.bf16.gmra.mxu0 %v1546
    %v1673 = vpop.f32.mrf.mxu0
    %v1674 = vadd.f32 %v1573, %v1673
    %v1675 = vpop.f32.mrf.mxu0
    %v1676 = vpop.f32.mrf.mxu0
    %v1677 = vadd.f32 %v1573, %v1676
    %v1678 = vpop.f32.mrf.mxu0
    %1679 = vmatprep.mubr.bf16.mxu0 0
    %1680 = vmatmul.mubr.bf16.gmra.mxu0 %v1547
    %v1681 = vpop.f32.mrf.mxu0
    %v1682 = vadd.f32 %v1573, %v1681
    %v1683 = vpop.f32.mrf.mxu0
    %v1684 = vpop.f32.mrf.mxu0
    %v1685 = vadd.f32 %v1573, %v1684
    %v1686 = vpop.f32.mrf.mxu0
    %1687 = vmatprep.mubr.bf16.mxu0 0
    %1688 = vmatmul.mubr.bf16.gmra.mxu0 %v1548
    %v1689 = vpop.f32.mrf.mxu0
    %v1690 = vadd.f32 %v1573, %v1689
    %v1691 = vpop.f32.mrf.mxu0
    %v1692 = vpop.f32.mrf.mxu0
    %v1693 = vadd.f32 %v1573, %v1692
    %v1694 = vpop.f32.mrf.mxu0
    %1695 = vmatprep.mubr.bf16.mxu0 0
    %1696 = vmatmul.mubr.bf16.gmra.mxu0 %v1549
    %v1697 = vpop.f32.mrf.mxu0
    %v1698 = vadd.f32 %v1573, %v1697
    %v1699 = vpop.f32.mrf.mxu0
    %v1700 = vpop.f32.mrf.mxu0
    %v1701 = vadd.f32 %v1573, %v1700
    %v1702 = vpop.f32.mrf.mxu0
    %1703 = vmatprep.mubr.bf16.mxu0 0
    %1704 = vmatmul.mubr.bf16.gmra.mxu0 %v1550
    %v1705 = vpop.f32.mrf.mxu0
    %v1706 = vadd.f32 %v1573, %v1705
    %v1707 = vpop.f32.mrf.mxu0
    %v1708 = vpop.f32.mrf.mxu0
    %v1709 = vadd.f32 %v1573, %v1708
    %v1710 = vpop.f32.mrf.mxu0
    %1711 = vmatprep.mubr.bf16.mxu0 0
    %1712 = vmatmul.mubr.bf16.gmra.mxu0 %v1551
    %v1713 = vpop.f32.mrf.mxu0
    %v1714 = vadd.f32 %v1573, %v1713
    %v1715 = vpop.f32.mrf.mxu0
    %v1716 = vpop.f32.mrf.mxu0
    %v1717 = vadd.f32 %v1573, %v1716
    %v1718 = vpop.f32.mrf.mxu0
    %1719 = vdwg.mxu0
    %v1720 = vtanh.pop %v1658
    %v1721 = vtanh.pop %v1661
    %v1722 = vtanh.pop %v1666
    %v1723 = vtanh.pop %v1669
    %v1724 = vtanh.pop %v1674
    %v1725 = vtanh.pop %v1677
    %v1726 = vtanh.pop %v1682
    %v1727 = vtanh.pop %v1685
    %v1728 = vtanh.pop %v1690
    %v1729 = vtanh.pop %v1693
    %v1730 = vtanh.pop %v1698
    %v1731 = vtanh.pop %v1701
    %v1732 = vtanh.pop %v1706
    %v1733 = vtanh.pop %v1709
    %v1734 = vtanh.pop %v1714
    %v1735 = vtanh.pop %v1717
    %v1736 = vpack.c.bf16 %v1721, %v1720
    %v1737 = vpack.c.bf16 %v1723, %v1722
    %v1738 = vpack.c.bf16 %v1725, %v1724
    %v1739 = vpack.c.bf16 %v1727, %v1726
    %v1740 = vpack.c.bf16 %v1729, %v1728
    %v1741 = vpack.c.bf16 %v1731, %v1730
    %v1742 = vpack.c.bf16 %v1733, %v1732
    %v1743 = vpack.c.bf16 %v1735, %v1734
    %v1744 = vld [vmem:[#allocation16] sm:$0xf]
    %v1745 = vld [vmem:[#allocation16 + $0x4] sm:$0xf]
    %v1746 = vld [vmem:[#allocation16 + $0x8] sm:$0xf]
    %v1747 = vld [vmem:[#allocation16 + $0xc] sm:$0xf]
    %v1748 = vld [vmem:[#allocation16 + $0x10] sm:$0xf]
    %v1749 = vld [vmem:[#allocation16 + $0x14] sm:$0xf]
    %v1750 = vld [vmem:[#allocation16 + $0x18] sm:$0xf]
    %v1751 = vld [vmem:[#allocation16 + $0x1c] sm:$0xf]
    %v1752 = vld [vmem:[#allocation16 + $0x20] sm:$0xf]
    %v1753 = vld [vmem:[#allocation16 + $0x24] sm:$0xf]
    %v1754 = vld [vmem:[#allocation16 + $0x28] sm:$0xf]
    %v1755 = vld [vmem:[#allocation16 + $0x2c] sm:$0xf]
    %v1756 = vld [vmem:[#allocation16 + $0x30] sm:$0xf]
    %v1757 = vld [vmem:[#allocation16 + $0x34] sm:$0xf]
    %v1758 = vld [vmem:[#allocation16 + $0x38] sm:$0xf]
    %v1759 = vld [vmem:[#allocation16 + $0x3c] sm:$0xf]
    %v1760 = vld [vmem:[%s27] sm:$0x1]
    %v1762 = vlaneseq
    %v1763 = vshrl.u32 %v1762, 7
    %v1764 = vsub.s32 0, %v1763
    %v1765 = vrot.slane %v1760, %v1764
    %v1783 = vunpack.c.l.b16 %v1744
    %v1784 = vunpack.c.l.b16 %v1745
    %v1785 = vunpack.c.l.b16 %v1746
    %v1786 = vunpack.c.l.b16 %v1747
    %v1787 = vunpack.c.l.b16 %v1748
    %v1788 = vunpack.c.l.b16 %v1749
    %v1789 = vunpack.c.l.b16 %v1750
    %v1790 = vunpack.c.l.b16 %v1751
    %v1791 = vunpack.c.l.b16 %v1752
    %v1792 = vunpack.c.l.b16 %v1753
    %v1793 = vunpack.c.l.b16 %v1754
    %v1794 = vunpack.c.l.b16 %v1755
    %v1795 = vunpack.c.l.b16 %v1756
    %v1796 = vunpack.c.l.b16 %v1757
    %v1797 = vunpack.c.l.b16 %v1758
    %v1798 = vunpack.c.l.b16 %v1759
    %v1799 = vpack.c.b16 %v1784, %v1783
    %v1800 = vpack.c.b16 %v1786, %v1785
    %v1801 = vpack.c.b16 %v1788, %v1787
    %v1802 = vpack.c.b16 %v1790, %v1789
    %v1803 = vpack.c.b16 %v1792, %v1791
    %v1804 = vpack.c.b16 %v1794, %v1793
    %v1805 = vpack.c.b16 %v1796, %v1795
    %v1806 = vpack.c.b16 %v1798, %v1797
    %1815 = vmatprep.subr.bf16.mxu0 0
    %1816 = vmatpush1.bf16.msra.mxu0 %v1806
    %1817 = vmatprep.subr.bf16.mxu0 0
    %1818 = vmatpush1.bf16.msra.mxu0 %v1805
    %1819 = vmatprep.subr.bf16.mxu0 0
    %1820 = vmatpush1.bf16.msra.mxu0 %v1804
    %1821 = vmatprep.subr.bf16.mxu0 0
    %1822 = vmatpush1.bf16.msra.mxu0 %v1803
    %1823 = vmatprep.subr.bf16.mxu0 0
    %1824 = vmatpush1.bf16.msra.mxu0 %v1802
    %1825 = vmatprep.subr.bf16.mxu0 0
    %1826 = vmatpush1.bf16.msra.mxu0 %v1801
    %1827 = vmatprep.subr.bf16.mxu0 0
    %1828 = vmatpush1.bf16.msra.mxu0 %v1800
    %1829 = vmatprep.subr.bf16.mxu0 0
    %1830 = vmatpush1.bf16.msra.mxu0 %v1799
    %1831 = vmatprep.subr.bf16.mxu0 0
    %1832 = vmatpush2.bf16.msra.mxu0 0
    %1833 = vmatprep.subr.bf16.mxu0 0
    %1834 = vmatpush2.bf16.msra.mxu0 0
    %1835 = vmatprep.subr.bf16.mxu0 0
    %1836 = vmatpush2.bf16.msra.mxu0 0
    %1837 = vmatprep.subr.bf16.mxu0 0
    %1838 = vmatpush2.bf16.msra.mxu0 0
    %1839 = vmatprep.subr.bf16.mxu0 0
    %1840 = vmatpush2.bf16.msra.mxu0 0
    %1841 = vmatprep.subr.bf16.mxu0 0
    %1842 = vmatpush2.bf16.msra.mxu0 0
    %1843 = vmatprep.subr.bf16.mxu0 0
    %1844 = vmatpush2.bf16.msra.mxu0 0
    %1845 = vmatprep.subr.bf16.mxu0 0
    %1846 = vmatpush2.bf16.msra.mxu0 0
    %1847 = vmatprep.mubr.bf16.mxu0 0
    %1848 = vmatmul.mubr.bf16.gmra.mxu0 %v1736
    %v1849 = vpop.f32.mrf.mxu0
    %v1850 = vadd.f32 %v1765, %v1849
    %v1851 = vpop.f32.mrf.mxu0
    %v1852 = vpop.f32.mrf.mxu0
    %v1853 = vadd.f32 %v1765, %v1852
    %v1854 = vpop.f32.mrf.mxu0
    %1855 = vmatprep.mubr.bf16.mxu0 0
    %1856 = vmatmul.mubr.bf16.gmra.mxu0 %v1737
    %v1857 = vpop.f32.mrf.mxu0
    %v1858 = vadd.f32 %v1765, %v1857
    %v1859 = vpop.f32.mrf.mxu0
    %v1860 = vpop.f32.mrf.mxu0
    %v1861 = vadd.f32 %v1765, %v1860
    %v1862 = vpop.f32.mrf.mxu0
    %1863 = vmatprep.mubr.bf16.mxu0 0
    %1864 = vmatmul.mubr.bf16.gmra.mxu0 %v1738
    %v1865 = vpop.f32.mrf.mxu0
    %v1866 = vadd.f32 %v1765, %v1865
    %v1867 = vpop.f32.mrf.mxu0
    %v1868 = vpop.f32.mrf.mxu0
    %v1869 = vadd.f32 %v1765, %v1868
    %v1870 = vpop.f32.mrf.mxu0
    %1871 = vmatprep.mubr.bf16.mxu0 0
    %1872 = vmatmul.mubr.bf16.gmra.mxu0 %v1739
    %v1873 = vpop.f32.mrf.mxu0
    %v1874 = vadd.f32 %v1765, %v1873
    %v1875 = vpop.f32.mrf.mxu0
    %v1876 = vpop.f32.mrf.mxu0
    %v1877 = vadd.f32 %v1765, %v1876
    %v1878 = vpop.f32.mrf.mxu0
    %1879 = vmatprep.mubr.bf16.mxu0 0
    %1880 = vmatmul.mubr.bf16.gmra.mxu0 %v1740
    %v1881 = vpop.f32.mrf.mxu0
    %v1882 = vadd.f32 %v1765, %v1881
    %v1883 = vpop.f32.mrf.mxu0
    %v1884 = vpop.f32.mrf.mxu0
    %v1885 = vadd.f32 %v1765, %v1884
    %v1886 = vpop.f32.mrf.mxu0
    %1887 = vmatprep.mubr.bf16.mxu0 0
    %1888 = vmatmul.mubr.bf16.gmra.mxu0 %v1741
    %v1889 = vpop.f32.mrf.mxu0
    %v1890 = vadd.f32 %v1765, %v1889
    %v1891 = vpop.f32.mrf.mxu0
    %v1892 = vpop.f32.mrf.mxu0
    %v1893 = vadd.f32 %v1765, %v1892
    %v1894 = vpop.f32.mrf.mxu0
    %1895 = vmatprep.mubr.bf16.mxu0 0
    %1896 = vmatmul.mubr.bf16.gmra.mxu0 %v1742
    %v1897 = vpop.f32.mrf.mxu0
    %v1898 = vadd.f32 %v1765, %v1897
    %v1899 = vpop.f32.mrf.mxu0
    %v1900 = vpop.f32.mrf.mxu0
    %v1901 = vadd.f32 %v1765, %v1900
    %v1902 = vpop.f32.mrf.mxu0
    %1903 = vmatprep.mubr.bf16.mxu0 0
    %1904 = vmatmul.mubr.bf16.gmra.mxu0 %v1743
    %v1905 = vpop.f32.mrf.mxu0
    %v1906 = vadd.f32 %v1765, %v1905
    %v1907 = vpop.f32.mrf.mxu0
    %v1908 = vpop.f32.mrf.mxu0
    %v1909 = vadd.f32 %v1765, %v1908
    %v1910 = vpop.f32.mrf.mxu0
    %1911 = vdwg.mxu0
    %v1912 = vtanh.pop %v1850
    %v1913 = vtanh.pop %v1853
    %v1914 = vtanh.pop %v1858
    %v1915 = vtanh.pop %v1861
    %v1916 = vtanh.pop %v1866
    %v1917 = vtanh.pop %v1869
    %v1918 = vtanh.pop %v1874
    %v1919 = vtanh.pop %v1877
    %v1920 = vtanh.pop %v1882
    %v1921 = vtanh.pop %v1885
    %v1922 = vtanh.pop %v1890
    %v1923 = vtanh.pop %v1893
    %v1924 = vtanh.pop %v1898
    %v1925 = vtanh.pop %v1901
    %v1926 = vtanh.pop %v1906
    %v1927 = vtanh.pop %v1909
    %v1928 = vpack.c.bf16 %v1913, %v1912
    %v1929 = vpack.c.bf16 %v1915, %v1914
    %v1930 = vpack.c.bf16 %v1917, %v1916
    %v1931 = vpack.c.bf16 %v1919, %v1918
    %v1932 = vpack.c.bf16 %v1921, %v1920
    %v1933 = vpack.c.bf16 %v1923, %v1922
    %v1934 = vpack.c.bf16 %v1925, %v1924
    %v1935 = vpack.c.bf16 %v1927, %v1926
    %v1936 = vld [vmem:[#allocation17] sm:$0xff]
    %v1937 = vld [vmem:[#allocation17 + $0x8] sm:$0xff]
    %v1938 = vld [vmem:[#allocation17 + $0x10] sm:$0xff]
    %v1939 = vld [vmem:[#allocation17 + $0x18] sm:$0xff]
    %v1940 = vld [vmem:[#allocation17 + $0x20] sm:$0xff]
    %v1941 = vld [vmem:[#allocation17 + $0x28] sm:$0xff]
    %v1942 = vld [vmem:[#allocation17 + $0x30] sm:$0xff]
    %v1943 = vld [vmem:[#allocation17 + $0x38] sm:$0xff]
    %v1944 = vld [vmem:[#allocation17 + $0x40] sm:$0xff]
    %v1945 = vld [vmem:[#allocation17 + $0x48] sm:$0xff]
    %v1946 = vld [vmem:[#allocation17 + $0x50] sm:$0xff]
    %v1947 = vld [vmem:[#allocation17 + $0x58] sm:$0xff]
    %v1948 = vld [vmem:[#allocation17 + $0x60] sm:$0xff]
    %v1949 = vld [vmem:[#allocation17 + $0x68] sm:$0xff]
    %v1950 = vld [vmem:[#allocation17 + $0x70] sm:$0xff]
    %v1951 = vld [vmem:[#allocation17 + $0x78] sm:$0xff]
    %v1952 = vld [vmem:[%s31] sm:$0x3]
    %v1954 = vlaneseq
    %v1955 = vshrl.u32 %v1954, 7
    %v1956 = vsub.s32 0, %v1955
    %v1957 = vrot.slane %v1952, %v1956
    %v1958 = vlaneseq
    %v1959 = vshrl.u32 %v1958, 7
    %v1960 = vsub.s32 1, %v1959
    %v1961 = vrot.slane %v1952, %v1960
    %v1980 = vunpack.c.l.b16 %v1936
    %v1981 = vunpack.c.h.b16 %v1936
    %v1982 = vunpack.c.l.b16 %v1937
    %v1983 = vunpack.c.h.b16 %v1937
    %v1984 = vunpack.c.l.b16 %v1938
    %v1985 = vunpack.c.h.b16 %v1938
    %v1986 = vunpack.c.l.b16 %v1939
    %v1987 = vunpack.c.h.b16 %v1939
    %v1988 = vunpack.c.l.b16 %v1940
    %v1989 = vunpack.c.h.b16 %v1940
    %v1990 = vunpack.c.l.b16 %v1941
    %v1991 = vunpack.c.h.b16 %v1941
    %v1992 = vunpack.c.l.b16 %v1942
    %v1993 = vunpack.c.h.b16 %v1942
    %v1994 = vunpack.c.l.b16 %v1943
    %v1995 = vunpack.c.h.b16 %v1943
    %v1996 = vunpack.c.l.b16 %v1944
    %v1997 = vunpack.c.h.b16 %v1944
    %v1998 = vunpack.c.l.b16 %v1945
    %v1999 = vunpack.c.h.b16 %v1945
    %v2000 = vunpack.c.l.b16 %v1946
    %v2001 = vunpack.c.h.b16 %v1946
    %v2002 = vunpack.c.l.b16 %v1947
    %v2003 = vunpack.c.h.b16 %v1947
    %v2004 = vunpack.c.l.b16 %v1948
    %v2005 = vunpack.c.h.b16 %v1948
    %v2006 = vunpack.c.l.b16 %v1949
    %v2007 = vunpack.c.h.b16 %v1949
    %v2008 = vunpack.c.l.b16 %v1950
    %v2009 = vunpack.c.h.b16 %v1950
    %v2010 = vunpack.c.l.b16 %v1951
    %v2011 = vunpack.c.h.b16 %v1951
    %v2012 = vpack.c.b16 %v1982, %v1980
    %v2013 = vpack.c.b16 %v1983, %v1981
    %v2014 = vpack.c.b16 %v1986, %v1984
    %v2015 = vpack.c.b16 %v1987, %v1985
    %v2016 = vpack.c.b16 %v1990, %v1988
    %v2017 = vpack.c.b16 %v1991, %v1989
    %v2018 = vpack.c.b16 %v1994, %v1992
    %v2019 = vpack.c.b16 %v1995, %v1993
    %v2020 = vpack.c.b16 %v1998, %v1996
    %v2021 = vpack.c.b16 %v1999, %v1997
    %v2022 = vpack.c.b16 %v2002, %v2000
    %v2023 = vpack.c.b16 %v2003, %v2001
    %v2024 = vpack.c.b16 %v2006, %v2004
    %v2025 = vpack.c.b16 %v2007, %v2005
    %v2026 = vpack.c.b16 %v2010, %v2008
    %v2027 = vpack.c.b16 %v2011, %v2009
    %2044 = vmatprep.subr.bf16.mxu0 %v2027
    %2045 = vmatpush1.bf16.msra.mxu0 %v2026
    %2046 = vmatprep.subr.bf16.mxu0 %v2025
    %2047 = vmatpush1.bf16.msra.mxu0 %v2024
    %2048 = vmatprep.subr.bf16.mxu0 %v2023
    %2049 = vmatpush1.bf16.msra.mxu0 %v2022
    %2050 = vmatprep.subr.bf16.mxu0 %v2021
    %2051 = vmatpush1.bf16.msra.mxu0 %v2020
    %2052 = vmatprep.subr.bf16.mxu0 %v2019
    %2053 = vmatpush1.bf16.msra.mxu0 %v2018
    %2054 = vmatprep.subr.bf16.mxu0 %v2017
    %2055 = vmatpush1.bf16.msra.mxu0 %v2016
    %2056 = vmatprep.subr.bf16.mxu0 %v2015
    %2057 = vmatpush1.bf16.msra.mxu0 %v2014
    %2058 = vmatprep.subr.bf16.mxu0 %v2013
    %2059 = vmatpush1.bf16.msra.mxu0 %v2012
    %2060 = vmatprep.subr.bf16.mxu0 0
    %2061 = vmatpush2.bf16.msra.mxu0 0
    %2062 = vmatprep.subr.bf16.mxu0 0
    %2063 = vmatpush2.bf16.msra.mxu0 0
    %2064 = vmatprep.subr.bf16.mxu0 0
    %2065 = vmatpush2.bf16.msra.mxu0 0
    %2066 = vmatprep.subr.bf16.mxu0 0
    %2067 = vmatpush2.bf16.msra.mxu0 0
    %2068 = vmatprep.subr.bf16.mxu0 0
    %2069 = vmatpush2.bf16.msra.mxu0 0
    %2070 = vmatprep.subr.bf16.mxu0 0
    %2071 = vmatpush2.bf16.msra.mxu0 0
    %2072 = vmatprep.subr.bf16.mxu0 0
    %2073 = vmatpush2.bf16.msra.mxu0 0
    %2074 = vmatprep.subr.bf16.mxu0 0
    %2075 = vmatpush2.bf16.msra.mxu0 0
    %2076 = vmatprep.mubr.bf16.mxu0 0
    %2077 = vmatmul.mubr.bf16.gmra.mxu0 %v1928
    %v2078 = vpop.f32.mrf.mxu0
    %v2079 = vadd.f32 %v1957, %v2078
    %v2080 = vpop.f32.mrf.mxu0
    %v2081 = vadd.f32 %v1961, %v2080
    %v2082 = vpop.f32.mrf.mxu0
    %v2083 = vadd.f32 %v1957, %v2082
    %v2084 = vpop.f32.mrf.mxu0
    %v2085 = vadd.f32 %v1961, %v2084
    %2086 = vmatprep.mubr.bf16.mxu0 0
    %2087 = vmatmul.mubr.bf16.gmra.mxu0 %v1929
    %v2088 = vpop.f32.mrf.mxu0
    %v2089 = vadd.f32 %v1957, %v2088
    %v2090 = vpop.f32.mrf.mxu0
    %v2091 = vadd.f32 %v1961, %v2090
    %v2092 = vpop.f32.mrf.mxu0
    %v2093 = vadd.f32 %v1957, %v2092
    %v2094 = vpop.f32.mrf.mxu0
    %v2095 = vadd.f32 %v1961, %v2094
    %2096 = vmatprep.mubr.bf16.mxu0 0
    %2097 = vmatmul.mubr.bf16.gmra.mxu0 %v1930
    %v2098 = vpop.f32.mrf.mxu0
    %v2099 = vadd.f32 %v1957, %v2098
    %v2100 = vpop.f32.mrf.mxu0
    %v2101 = vadd.f32 %v1961, %v2100
    %v2102 = vpop.f32.mrf.mxu0
    %v2103 = vadd.f32 %v1957, %v2102
    %v2104 = vpop.f32.mrf.mxu0
    %v2105 = vadd.f32 %v1961, %v2104
    %2106 = vmatprep.mubr.bf16.mxu0 0
    %2107 = vmatmul.mubr.bf16.gmra.mxu0 %v1931
    %v2108 = vpop.f32.mrf.mxu0
    %v2109 = vadd.f32 %v1957, %v2108
    %v2110 = vpop.f32.mrf.mxu0
    %v2111 = vadd.f32 %v1961, %v2110
    %v2112 = vpop.f32.mrf.mxu0
    %v2113 = vadd.f32 %v1957, %v2112
    %v2114 = vpop.f32.mrf.mxu0
    %v2115 = vadd.f32 %v1961, %v2114
    %2116 = vmatprep.mubr.bf16.mxu0 0
    %2117 = vmatmul.mubr.bf16.gmra.mxu0 %v1932
    %v2118 = vpop.f32.mrf.mxu0
    %v2119 = vadd.f32 %v1957, %v2118
    %v2120 = vpop.f32.mrf.mxu0
    %v2121 = vadd.f32 %v1961, %v2120
    %v2122 = vpop.f32.mrf.mxu0
    %v2123 = vadd.f32 %v1957, %v2122
    %v2124 = vpop.f32.mrf.mxu0
    %v2125 = vadd.f32 %v1961, %v2124
    %2126 = vmatprep.mubr.bf16.mxu0 0
    %2127 = vmatmul.mubr.bf16.gmra.mxu0 %v1933
    %v2128 = vpop.f32.mrf.mxu0
    %v2129 = vadd.f32 %v1957, %v2128
    %v2130 = vpop.f32.mrf.mxu0
    %v2131 = vadd.f32 %v1961, %v2130
    %v2132 = vpop.f32.mrf.mxu0
    %v2133 = vadd.f32 %v1957, %v2132
    %v2134 = vpop.f32.mrf.mxu0
    %v2135 = vadd.f32 %v1961, %v2134
    %2136 = vmatprep.mubr.bf16.mxu0 0
    %2137 = vmatmul.mubr.bf16.gmra.mxu0 %v1934
    %v2138 = vpop.f32.mrf.mxu0
    %v2139 = vadd.f32 %v1957, %v2138
    %v2140 = vpop.f32.mrf.mxu0
    %v2141 = vadd.f32 %v1961, %v2140
    %v2142 = vpop.f32.mrf.mxu0
    %v2143 = vadd.f32 %v1957, %v2142
    %v2144 = vpop.f32.mrf.mxu0
    %v2145 = vadd.f32 %v1961, %v2144
    %2146 = vmatprep.mubr.bf16.mxu0 0
    %2147 = vmatmul.mubr.bf16.gmra.mxu0 %v1935
    %v2148 = vpop.f32.mrf.mxu0
    %v2149 = vadd.f32 %v1957, %v2148
    %v2150 = vpop.f32.mrf.mxu0
    %v2151 = vadd.f32 %v1961, %v2150
    %v2152 = vpop.f32.mrf.mxu0
    %v2153 = vadd.f32 %v1957, %v2152
    %v2154 = vpop.f32.mrf.mxu0
    %v2155 = vadd.f32 %v1961, %v2154
    %2156 = vdwg.mxu0
    %v2157 = vld [vmem:[#allocation7] sm:$0xff]
    %v2158 = vld [vmem:[#allocation7 + $0x8] sm:$0xff]
    %v2159 = vld [vmem:[#allocation7 + $0x10] sm:$0xff]
    %v2160 = vld [vmem:[#allocation7 + $0x18] sm:$0xff]
    %v2161 = vld [vmem:[#allocation7 + $0x20] sm:$0xff]
    %v2162 = vld [vmem:[#allocation7 + $0x28] sm:$0xff]
    %v2163 = vld [vmem:[#allocation7 + $0x30] sm:$0xff]
    %v2164 = vld [vmem:[#allocation7 + $0x38] sm:$0xff]
    %v2165 = vld [vmem:[#allocation7 + $0x40] sm:$0xff]
    %v2166 = vld [vmem:[#allocation7 + $0x48] sm:$0xff]
    %v2167 = vld [vmem:[#allocation7 + $0x50] sm:$0xff]
    %v2168 = vld [vmem:[#allocation7 + $0x58] sm:$0xff]
    %v2169 = vld [vmem:[#allocation7 + $0x60] sm:$0xff]
    %v2170 = vld [vmem:[#allocation7 + $0x68] sm:$0xff]
    %v2171 = vld [vmem:[#allocation7 + $0x70] sm:$0xff]
    %v2172 = vld [vmem:[#allocation7 + $0x78] sm:$0xff]
    %v2173 = vmul.f32 %v2081, 0.5
    %v2174 = vmul.f32 %v2085, 0.5
    %v2175 = vmul.f32 %v2091, 0.5
    %v2176 = vmul.f32 %v2095, 0.5
    %v2177 = vmul.f32 %v2101, 0.5
    %v2178 = vmul.f32 %v2105, 0.5
    %v2179 = vmul.f32 %v2111, 0.5
    %v2180 = vmul.f32 %v2115, 0.5
    %v2181 = vmul.f32 %v2121, 0.5
    %v2182 = vmul.f32 %v2125, 0.5
    %v2183 = vmul.f32 %v2131, 0.5
    %v2184 = vmul.f32 %v2135, 0.5
    %v2185 = vmul.f32 %v2141, 0.5
    %v2186 = vmul.f32 %v2145, 0.5
    %v2187 = vmul.f32 %v2151, 0.5
    %v2188 = vmul.f32 %v2155, 0.5
    %v2189 = vmul.f32 %v2173, 1.442695
    %v2190 = vpow.pop %v2189
    %v2191 = vmul.f32 %v2174, 1.442695
    %v2192 = vpow.pop %v2191
    %v2193 = vmul.f32 %v2175, 1.442695
    %v2194 = vpow.pop %v2193
    %v2195 = vmul.f32 %v2176, 1.442695
    %v2196 = vpow.pop %v2195
    %v2197 = vmul.f32 %v2177, 1.442695
    %v2198 = vpow.pop %v2197
    %v2199 = vmul.f32 %v2178, 1.442695
    %v2200 = vpow.pop %v2199
    %v2201 = vmul.f32 %v2179, 1.442695
    %v2202 = vpow.pop %v2201
    %v2203 = vmul.f32 %v2180, 1.442695
    %v2204 = vpow.pop %v2203
    %v2205 = vmul.f32 %v2181, 1.442695
    %v2206 = vpow.pop %v2205
    %v2207 = vmul.f32 %v2182, 1.442695
    %v2208 = vpow.pop %v2207
    %v2209 = vmul.f32 %v2183, 1.442695
    %v2210 = vpow.pop %v2209
    %v2211 = vmul.f32 %v2184, 1.442695
    %v2212 = vpow.pop %v2211
    %v2213 = vmul.f32 %v2185, 1.442695
    %v2214 = vpow.pop %v2213
    %v2215 = vmul.f32 %v2186, 1.442695
    %v2216 = vpow.pop %v2215
    %v2217 = vmul.f32 %v2187, 1.442695
    %v2218 = vpow.pop %v2217
    %v2219 = vmul.f32 %v2188, 1.442695
    %v2220 = vpow.pop %v2219
    %v2221 = vmul.f32 %v2157, %v2190
    %v2222 = vmul.f32 %v2158, %v2192
    %v2223 = vmul.f32 %v2159, %v2194
    %v2224 = vmul.f32 %v2160, %v2196
    %v2225 = vmul.f32 %v2161, %v2198
    %v2226 = vmul.f32 %v2162, %v2200
    %v2227 = vmul.f32 %v2163, %v2202
    %v2228 = vmul.f32 %v2164, %v2204
    %v2229 = vmul.f32 %v2165, %v2206
    %v2230 = vmul.f32 %v2166, %v2208
    %v2231 = vmul.f32 %v2167, %v2210
    %v2232 = vmul.f32 %v2168, %v2212
    %v2233 = vmul.f32 %v2169, %v2214
    %v2234 = vmul.f32 %v2170, %v2216
    %v2235 = vmul.f32 %v2171, %v2218
    %v2236 = vmul.f32 %v2172, %v2220
    %v2237 = vadd.f32 %v2079, %v2221
    %v2238 = vadd.f32 %v2083, %v2222
    %v2239 = vadd.f32 %v2089, %v2223
    %v2240 = vadd.f32 %v2093, %v2224
    %v2241 = vadd.f32 %v2099, %v2225
    %v2242 = vadd.f32 %v2103, %v2226
    %v2243 = vadd.f32 %v2109, %v2227
    %v2244 = vadd.f32 %v2113, %v2228
    %v2245 = vadd.f32 %v2119, %v2229
    %v2246 = vadd.f32 %v2123, %v2230
    %v2247 = vadd.f32 %v2129, %v2231
    %v2248 = vadd.f32 %v2133, %v2232
    %v2249 = vadd.f32 %v2139, %v2233
    %v2250 = vadd.f32 %v2143, %v2234
    %v2251 = vadd.f32 %v2149, %v2235
    %v2252 = vadd.f32 %v2153, %v2236
    %v2253 = vpack.c.bf16 %v2238, %v2237
    %v2254 = vpack.c.bf16 %v2240, %v2239
    %v2255 = vpack.c.bf16 %v2242, %v2241
    %v2256 = vpack.c.bf16 %v2244, %v2243
    %v2257 = vpack.c.bf16 %v2246, %v2245
    %v2258 = vpack.c.bf16 %v2248, %v2247
    %v2259 = vpack.c.bf16 %v2250, %v2249
    %v2260 = vpack.c.bf16 %v2252, %v2251
    %v2261 = vld [vmem:[#allocation19] sm:$0xf]
    %v2262 = vld [vmem:[#allocation19 + $0x4] sm:$0xf]
    %v2263 = vld [vmem:[#allocation19 + $0x8] sm:$0xf]
    %v2264 = vld [vmem:[#allocation19 + $0xc] sm:$0xf]
    %v2265 = vld [vmem:[#allocation19 + $0x10] sm:$0xf]
    %v2266 = vld [vmem:[#allocation19 + $0x14] sm:$0xf]
    %v2267 = vld [vmem:[#allocation19 + $0x18] sm:$0xf]
    %v2268 = vld [vmem:[#allocation19 + $0x1c] sm:$0xf]
    %v2269 = vld [vmem:[#allocation19 + $0x20] sm:$0xf]
    %v2270 = vld [vmem:[#allocation19 + $0x24] sm:$0xf]
    %v2271 = vld [vmem:[#allocation19 + $0x28] sm:$0xf]
    %v2272 = vld [vmem:[#allocation19 + $0x2c] sm:$0xf]
    %v2273 = vld [vmem:[#allocation19 + $0x30] sm:$0xf]
    %v2274 = vld [vmem:[#allocation19 + $0x34] sm:$0xf]
    %v2275 = vld [vmem:[#allocation19 + $0x38] sm:$0xf]
    %v2276 = vld [vmem:[#allocation19 + $0x3c] sm:$0xf]
    %v2277 = vld [vmem:[%s35] sm:$0x1]
    %v2279 = vlaneseq
    %v2280 = vshrl.u32 %v2279, 7
    %v2281 = vsub.s32 0, %v2280
    %v2282 = vrot.slane %v2277, %v2281
    %v2300 = vunpack.c.l.b16 %v2261
    %v2301 = vunpack.c.l.b16 %v2262
    %v2302 = vunpack.c.l.b16 %v2263
    %v2303 = vunpack.c.l.b16 %v2264
    %v2304 = vunpack.c.l.b16 %v2265
    %v2305 = vunpack.c.l.b16 %v2266
    %v2306 = vunpack.c.l.b16 %v2267
    %v2307 = vunpack.c.l.b16 %v2268
    %v2308 = vunpack.c.l.b16 %v2269
    %v2309 = vunpack.c.l.b16 %v2270
    %v2310 = vunpack.c.l.b16 %v2271
    %v2311 = vunpack.c.l.b16 %v2272
    %v2312 = vunpack.c.l.b16 %v2273
    %v2313 = vunpack.c.l.b16 %v2274
    %v2314 = vunpack.c.l.b16 %v2275
    %v2315 = vunpack.c.l.b16 %v2276
    %v2316 = vpack.c.b16 %v2301, %v2300
    %v2317 = vpack.c.b16 %v2303, %v2302
    %v2318 = vpack.c.b16 %v2305, %v2304
    %v2319 = vpack.c.b16 %v2307, %v2306
    %v2320 = vpack.c.b16 %v2309, %v2308
    %v2321 = vpack.c.b16 %v2311, %v2310
    %v2322 = vpack.c.b16 %v2313, %v2312
    %v2323 = vpack.c.b16 %v2315, %v2314
    %2332 = vmatprep.subr.bf16.mxu0 0
    %2333 = vmatpush1.bf16.msra.mxu0 %v2323
    %2334 = vmatprep.subr.bf16.mxu0 0
    %2335 = vmatpush1.bf16.msra.mxu0 %v2322
    %2336 = vmatprep.subr.bf16.mxu0 0
    %2337 = vmatpush1.bf16.msra.mxu0 %v2321
    %2338 = vmatprep.subr.bf16.mxu0 0
    %2339 = vmatpush1.bf16.msra.mxu0 %v2320
    %2340 = vmatprep.subr.bf16.mxu0 0
    %2341 = vmatpush1.bf16.msra.mxu0 %v2319
    %2342 = vmatprep.subr.bf16.mxu0 0
    %2343 = vmatpush1.bf16.msra.mxu0 %v2318
    %2344 = vmatprep.subr.bf16.mxu0 0
    %2345 = vmatpush1.bf16.msra.mxu0 %v2317
    %2346 = vmatprep.subr.bf16.mxu0 0
    %2347 = vmatpush1.bf16.msra.mxu0 %v2316
    %2348 = vmatprep.subr.bf16.mxu0 0
    %2349 = vmatpush2.bf16.msra.mxu0 0
    %2350 = vmatprep.subr.bf16.mxu0 0
    %2351 = vmatpush2.bf16.msra.mxu0 0
    %2352 = vmatprep.subr.bf16.mxu0 0
    %2353 = vmatpush2.bf16.msra.mxu0 0
    %2354 = vmatprep.subr.bf16.mxu0 0
    %2355 = vmatpush2.bf16.msra.mxu0 0
    %2356 = vmatprep.subr.bf16.mxu0 0
    %2357 = vmatpush2.bf16.msra.mxu0 0
    %2358 = vmatprep.subr.bf16.mxu0 0
    %2359 = vmatpush2.bf16.msra.mxu0 0
    %2360 = vmatprep.subr.bf16.mxu0 0
    %2361 = vmatpush2.bf16.msra.mxu0 0
    %2362 = vmatprep.subr.bf16.mxu0 0
    %2363 = vmatpush2.bf16.msra.mxu0 0
    %2364 = vmatprep.mubr.bf16.mxu0 0
    %2365 = vmatmul.mubr.bf16.gmra.mxu0 %v2253
    %v2366 = vpop.f32.mrf.mxu0
    %v2367 = vadd.f32 %v2282, %v2366
    %v2368 = vpop.f32.mrf.mxu0
    %v2369 = vpop.f32.mrf.mxu0
    %v2370 = vadd.f32 %v2282, %v2369
    %v2371 = vpop.f32.mrf.mxu0
    %2372 = vmatprep.mubr.bf16.mxu0 0
    %2373 = vmatmul.mubr.bf16.gmra.mxu0 %v2254
    %v2374 = vpop.f32.mrf.mxu0
    %v2375 = vadd.f32 %v2282, %v2374
    %v2376 = vpop.f32.mrf.mxu0
    %v2377 = vpop.f32.mrf.mxu0
    %v2378 = vadd.f32 %v2282, %v2377
    %v2379 = vpop.f32.mrf.mxu0
    %2380 = vmatprep.mubr.bf16.mxu0 0
    %2381 = vmatmul.mubr.bf16.gmra.mxu0 %v2255
    %v2382 = vpop.f32.mrf.mxu0
    %v2383 = vadd.f32 %v2282, %v2382
    %v2384 = vpop.f32.mrf.mxu0
    %v2385 = vpop.f32.mrf.mxu0
    %v2386 = vadd.f32 %v2282, %v2385
    %v2387 = vpop.f32.mrf.mxu0
    %2388 = vmatprep.mubr.bf16.mxu0 0
    %2389 = vmatmul.mubr.bf16.gmra.mxu0 %v2256
    %v2390 = vpop.f32.mrf.mxu0
    %v2391 = vadd.f32 %v2282, %v2390
    %v2392 = vpop.f32.mrf.mxu0
    %v2393 = vpop.f32.mrf.mxu0
    %v2394 = vadd.f32 %v2282, %v2393
    %v2395 = vpop.f32.mrf.mxu0
    %2396 = vmatprep.mubr.bf16.mxu0 0
    %2397 = vmatmul.mubr.bf16.gmra.mxu0 %v2257
    %v2398 = vpop.f32.mrf.mxu0
    %v2399 = vadd.f32 %v2282, %v2398
    %v2400 = vpop.f32.mrf.mxu0
    %v2401 = vpop.f32.mrf.mxu0
    %v2402 = vadd.f32 %v2282, %v2401
    %v2403 = vpop.f32.mrf.mxu0
    %2404 = vmatprep.mubr.bf16.mxu0 0
    %2405 = vmatmul.mubr.bf16.gmra.mxu0 %v2258
    %v2406 = vpop.f32.mrf.mxu0
    %v2407 = vadd.f32 %v2282, %v2406
    %v2408 = vpop.f32.mrf.mxu0
    %v2409 = vpop.f32.mrf.mxu0
    %v2410 = vadd.f32 %v2282, %v2409
    %v2411 = vpop.f32.mrf.mxu0
    %2412 = vmatprep.mubr.bf16.mxu0 0
    %2413 = vmatmul.mubr.bf16.gmra.mxu0 %v2259
    %v2414 = vpop.f32.mrf.mxu0
    %v2415 = vadd.f32 %v2282, %v2414
    %v2416 = vpop.f32.mrf.mxu0
    %v2417 = vpop.f32.mrf.mxu0
    %v2418 = vadd.f32 %v2282, %v2417
    %v2419 = vpop.f32.mrf.mxu0
    %2420 = vmatprep.mubr.bf16.mxu0 0
    %2421 = vmatmul.mubr.bf16.gmra.mxu0 %v2260
    %v2422 = vpop.f32.mrf.mxu0
    %v2423 = vadd.f32 %v2282, %v2422
    %v2424 = vpop.f32.mrf.mxu0
    %v2425 = vpop.f32.mrf.mxu0
    %v2426 = vadd.f32 %v2282, %v2425
    %v2427 = vpop.f32.mrf.mxu0
    %2428 = vdwg.mxu0
    %v2429 = vtanh.pop %v2367
    %v2430 = vtanh.pop %v2370
    %v2431 = vtanh.pop %v2375
    %v2432 = vtanh.pop %v2378
    %v2433 = vtanh.pop %v2383
    %v2434 = vtanh.pop %v2386
    %v2435 = vtanh.pop %v2391
    %v2436 = vtanh.pop %v2394
    %v2437 = vtanh.pop %v2399
    %v2438 = vtanh.pop %v2402
    %v2439 = vtanh.pop %v2407
    %v2440 = vtanh.pop %v2410
    %v2441 = vtanh.pop %v2415
    %v2442 = vtanh.pop %v2418
    %v2443 = vtanh.pop %v2423
    %v2444 = vtanh.pop %v2426
    %v2445 = vpack.c.bf16 %v2430, %v2429
    %v2446 = vpack.c.bf16 %v2432, %v2431
    %v2447 = vpack.c.bf16 %v2434, %v2433
    %v2448 = vpack.c.bf16 %v2436, %v2435
    %v2449 = vpack.c.bf16 %v2438, %v2437
    %v2450 = vpack.c.bf16 %v2440, %v2439
    %v2451 = vpack.c.bf16 %v2442, %v2441
    %v2452 = vpack.c.bf16 %v2444, %v2443
    %v2453 = vld [vmem:[#allocation20] sm:$0xf]
    %v2454 = vld [vmem:[#allocation20 + $0x4] sm:$0xf]
    %v2455 = vld [vmem:[#allocation20 + $0x8] sm:$0xf]
    %v2456 = vld [vmem:[#allocation20 + $0xc] sm:$0xf]
    %v2457 = vld [vmem:[#allocation20 + $0x10] sm:$0xf]
    %v2458 = vld [vmem:[#allocation20 + $0x14] sm:$0xf]
    %v2459 = vld [vmem:[#allocation20 + $0x18] sm:$0xf]
    %v2460 = vld [vmem:[#allocation20 + $0x1c] sm:$0xf]
    %v2461 = vld [vmem:[#allocation20 + $0x20] sm:$0xf]
    %v2462 = vld [vmem:[#allocation20 + $0x24] sm:$0xf]
    %v2463 = vld [vmem:[#allocation20 + $0x28] sm:$0xf]
    %v2464 = vld [vmem:[#allocation20 + $0x2c] sm:$0xf]
    %v2465 = vld [vmem:[#allocation20 + $0x30] sm:$0xf]
    %v2466 = vld [vmem:[#allocation20 + $0x34] sm:$0xf]
    %v2467 = vld [vmem:[#allocation20 + $0x38] sm:$0xf]
    %v2468 = vld [vmem:[#allocation20 + $0x3c] sm:$0xf]
    %v2469 = vld [vmem:[%s39] sm:$0x1]
    %v2471 = vlaneseq
    %v2472 = vshrl.u32 %v2471, 7
    %v2473 = vsub.s32 0, %v2472
    %v2474 = vrot.slane %v2469, %v2473
    %v2492 = vunpack.c.l.b16 %v2453
    %v2493 = vunpack.c.l.b16 %v2454
    %v2494 = vunpack.c.l.b16 %v2455
    %v2495 = vunpack.c.l.b16 %v2456
    %v2496 = vunpack.c.l.b16 %v2457
    %v2497 = vunpack.c.l.b16 %v2458
    %v2498 = vunpack.c.l.b16 %v2459
    %v2499 = vunpack.c.l.b16 %v2460
    %v2500 = vunpack.c.l.b16 %v2461
    %v2501 = vunpack.c.l.b16 %v2462
    %v2502 = vunpack.c.l.b16 %v2463
    %v2503 = vunpack.c.l.b16 %v2464
    %v2504 = vunpack.c.l.b16 %v2465
    %v2505 = vunpack.c.l.b16 %v2466
    %v2506 = vunpack.c.l.b16 %v2467
    %v2507 = vunpack.c.l.b16 %v2468
    %v2508 = vpack.c.b16 %v2493, %v2492
    %v2509 = vpack.c.b16 %v2495, %v2494
    %v2510 = vpack.c.b16 %v2497, %v2496
    %v2511 = vpack.c.b16 %v2499, %v2498
    %v2512 = vpack.c.b16 %v2501, %v2500
    %v2513 = vpack.c.b16 %v2503, %v2502
    %v2514 = vpack.c.b16 %v2505, %v2504
    %v2515 = vpack.c.b16 %v2507, %v2506
    %2524 = vmatprep.subr.bf16.mxu0 0
    %2525 = vmatpush1.bf16.msra.mxu0 %v2515
    %2526 = vmatprep.subr.bf16.mxu0 0
    %2527 = vmatpush1.bf16.msra.mxu0 %v2514
    %2528 = vmatprep.subr.bf16.mxu0 0
    %2529 = vmatpush1.bf16.msra.mxu0 %v2513
    %2530 = vmatprep.subr.bf16.mxu0 0
    %2531 = vmatpush1.bf16.msra.mxu0 %v2512
    %2532 = vmatprep.subr.bf16.mxu0 0
    %2533 = vmatpush1.bf16.msra.mxu0 %v2511
    %2534 = vmatprep.subr.bf16.mxu0 0
    %2535 = vmatpush1.bf16.msra.mxu0 %v2510
    %2536 = vmatprep.subr.bf16.mxu0 0
    %2537 = vmatpush1.bf16.msra.mxu0 %v2509
    %2538 = vmatprep.subr.bf16.mxu0 0
    %2539 = vmatpush1.bf16.msra.mxu0 %v2508
    %2540 = vmatprep.subr.bf16.mxu0 0
    %2541 = vmatpush2.bf16.msra.mxu0 0
    %2542 = vmatprep.subr.bf16.mxu0 0
    %2543 = vmatpush2.bf16.msra.mxu0 0
    %2544 = vmatprep.subr.bf16.mxu0 0
    %2545 = vmatpush2.bf16.msra.mxu0 0
    %2546 = vmatprep.subr.bf16.mxu0 0
    %2547 = vmatpush2.bf16.msra.mxu0 0
    %2548 = vmatprep.subr.bf16.mxu0 0
    %2549 = vmatpush2.bf16.msra.mxu0 0
    %2550 = vmatprep.subr.bf16.mxu0 0
    %2551 = vmatpush2.bf16.msra.mxu0 0
    %2552 = vmatprep.subr.bf16.mxu0 0
    %2553 = vmatpush2.bf16.msra.mxu0 0
    %2554 = vmatprep.subr.bf16.mxu0 0
    %2555 = vmatpush2.bf16.msra.mxu0 0
    %2556 = vmatprep.mubr.bf16.mxu0 0
    %2557 = vmatmul.mubr.bf16.gmra.mxu0 %v2445
    %v2558 = vpop.f32.mrf.mxu0
    %v2559 = vadd.f32 %v2474, %v2558
    %v2560 = vpop.f32.mrf.mxu0
    %v2561 = vpop.f32.mrf.mxu0
    %v2562 = vadd.f32 %v2474, %v2561
    %v2563 = vpop.f32.mrf.mxu0
    %2564 = vmatprep.mubr.bf16.mxu0 0
    %2565 = vmatmul.mubr.bf16.gmra.mxu0 %v2446
    %v2566 = vpop.f32.mrf.mxu0
    %v2567 = vadd.f32 %v2474, %v2566
    %v2568 = vpop.f32.mrf.mxu0
    %v2569 = vpop.f32.mrf.mxu0
    %v2570 = vadd.f32 %v2474, %v2569
    %v2571 = vpop.f32.mrf.mxu0
    %2572 = vmatprep.mubr.bf16.mxu0 0
    %2573 = vmatmul.mubr.bf16.gmra.mxu0 %v2447
    %v2574 = vpop.f32.mrf.mxu0
    %v2575 = vadd.f32 %v2474, %v2574
    %v2576 = vpop.f32.mrf.mxu0
    %v2577 = vpop.f32.mrf.mxu0
    %v2578 = vadd.f32 %v2474, %v2577
    %v2579 = vpop.f32.mrf.mxu0
    %2580 = vmatprep.mubr.bf16.mxu0 0
    %2581 = vmatmul.mubr.bf16.gmra.mxu0 %v2448
    %v2582 = vpop.f32.mrf.mxu0
    %v2583 = vadd.f32 %v2474, %v2582
    %v2584 = vpop.f32.mrf.mxu0
    %v2585 = vpop.f32.mrf.mxu0
    %v2586 = vadd.f32 %v2474, %v2585
    %v2587 = vpop.f32.mrf.mxu0
    %2588 = vmatprep.mubr.bf16.mxu0 0
    %2589 = vmatmul.mubr.bf16.gmra.mxu0 %v2449
    %v2590 = vpop.f32.mrf.mxu0
    %v2591 = vadd.f32 %v2474, %v2590
    %v2592 = vpop.f32.mrf.mxu0
    %v2593 = vpop.f32.mrf.mxu0
    %v2594 = vadd.f32 %v2474, %v2593
    %v2595 = vpop.f32.mrf.mxu0
    %2596 = vmatprep.mubr.bf16.mxu0 0
    %2597 = vmatmul.mubr.bf16.gmra.mxu0 %v2450
    %v2598 = vpop.f32.mrf.mxu0
    %v2599 = vadd.f32 %v2474, %v2598
    %v2600 = vpop.f32.mrf.mxu0
    %v2601 = vpop.f32.mrf.mxu0
    %v2602 = vadd.f32 %v2474, %v2601
    %v2603 = vpop.f32.mrf.mxu0
    %2604 = vmatprep.mubr.bf16.mxu0 0
    %2605 = vmatmul.mubr.bf16.gmra.mxu0 %v2451
    %v2606 = vpop.f32.mrf.mxu0
    %v2607 = vadd.f32 %v2474, %v2606
    %v2608 = vpop.f32.mrf.mxu0
    %v2609 = vpop.f32.mrf.mxu0
    %v2610 = vadd.f32 %v2474, %v2609
    %v2611 = vpop.f32.mrf.mxu0
    %2612 = vmatprep.mubr.bf16.mxu0 0
    %2613 = vmatmul.mubr.bf16.gmra.mxu0 %v2452
    %v2614 = vpop.f32.mrf.mxu0
    %v2615 = vadd.f32 %v2474, %v2614
    %v2616 = vpop.f32.mrf.mxu0
    %v2617 = vpop.f32.mrf.mxu0
    %v2618 = vadd.f32 %v2474, %v2617
    %v2619 = vpop.f32.mrf.mxu0
    %2620 = vdwg.mxu0
    %v2621 = vtanh.pop %v2559
    %v2622 = vtanh.pop %v2562
    %v2623 = vtanh.pop %v2567
    %v2624 = vtanh.pop %v2570
    %v2625 = vtanh.pop %v2575
    %v2626 = vtanh.pop %v2578
    %v2627 = vtanh.pop %v2583
    %v2628 = vtanh.pop %v2586
    %v2629 = vtanh.pop %v2591
    %v2630 = vtanh.pop %v2594
    %v2631 = vtanh.pop %v2599
    %v2632 = vtanh.pop %v2602
    %v2633 = vtanh.pop %v2607
    %v2634 = vtanh.pop %v2610
    %v2635 = vtanh.pop %v2615
    %v2636 = vtanh.pop %v2618
    %v2637 = vpack.c.bf16 %v2622, %v2621
    %v2638 = vpack.c.bf16 %v2624, %v2623
    %v2639 = vpack.c.bf16 %v2626, %v2625
    %v2640 = vpack.c.bf16 %v2628, %v2627
    %v2641 = vpack.c.bf16 %v2630, %v2629
    %v2642 = vpack.c.bf16 %v2632, %v2631
    %v2643 = vpack.c.bf16 %v2634, %v2633
    %v2644 = vpack.c.bf16 %v2636, %v2635
    %v2645 = vld [vmem:[#allocation22] sm:$0xff]
    %v2646 = vld [vmem:[#allocation22 + $0x8] sm:$0xff]
    %v2647 = vld [vmem:[#allocation22 + $0x10] sm:$0xff]
    %v2648 = vld [vmem:[#allocation22 + $0x18] sm:$0xff]
    %v2649 = vld [vmem:[#allocation22 + $0x20] sm:$0xff]
    %v2650 = vld [vmem:[#allocation22 + $0x28] sm:$0xff]
    %v2651 = vld [vmem:[#allocation22 + $0x30] sm:$0xff]
    %v2652 = vld [vmem:[#allocation22 + $0x38] sm:$0xff]
    %v2653 = vld [vmem:[#allocation22 + $0x40] sm:$0xff]
    %v2654 = vld [vmem:[#allocation22 + $0x48] sm:$0xff]
    %v2655 = vld [vmem:[#allocation22 + $0x50] sm:$0xff]
    %v2656 = vld [vmem:[#allocation22 + $0x58] sm:$0xff]
    %v2657 = vld [vmem:[#allocation22 + $0x60] sm:$0xff]
    %v2658 = vld [vmem:[#allocation22 + $0x68] sm:$0xff]
    %v2659 = vld [vmem:[#allocation22 + $0x70] sm:$0xff]
    %v2660 = vld [vmem:[#allocation22 + $0x78] sm:$0xff]
    %v2661 = vld [vmem:[%s43] sm:$0x3]
    %v2663 = vlaneseq
    %v2664 = vshrl.u32 %v2663, 7
    %v2665 = vsub.s32 0, %v2664
    %v2666 = vrot.slane %v2661, %v2665
    %v2667 = vlaneseq
    %v2668 = vshrl.u32 %v2667, 7
    %v2669 = vsub.s32 1, %v2668
    %v2670 = vrot.slane %v2661, %v2669
    %v2689 = vunpack.c.l.b16 %v2645
    %v2690 = vunpack.c.h.b16 %v2645
    %v2691 = vunpack.c.l.b16 %v2646
    %v2692 = vunpack.c.h.b16 %v2646
    %v2693 = vunpack.c.l.b16 %v2647
    %v2694 = vunpack.c.h.b16 %v2647
    %v2695 = vunpack.c.l.b16 %v2648
    %v2696 = vunpack.c.h.b16 %v2648
    %v2697 = vunpack.c.l.b16 %v2649
    %v2698 = vunpack.c.h.b16 %v2649
    %v2699 = vunpack.c.l.b16 %v2650
    %v2700 = vunpack.c.h.b16 %v2650
    %v2701 = vunpack.c.l.b16 %v2651
    %v2702 = vunpack.c.h.b16 %v2651
    %v2703 = vunpack.c.l.b16 %v2652
    %v2704 = vunpack.c.h.b16 %v2652
    %v2705 = vunpack.c.l.b16 %v2653
    %v2706 = vunpack.c.h.b16 %v2653
    %v2707 = vunpack.c.l.b16 %v2654
    %v2708 = vunpack.c.h.b16 %v2654
    %v2709 = vunpack.c.l.b16 %v2655
    %v2710 = vunpack.c.h.b16 %v2655
    %v2711 = vunpack.c.l.b16 %v2656
    %v2712 = vunpack.c.h.b16 %v2656
    %v2713 = vunpack.c.l.b16 %v2657
    %v2714 = vunpack.c.h.b16 %v2657
    %v2715 = vunpack.c.l.b16 %v2658
    %v2716 = vunpack.c.h.b16 %v2658
    %v2717 = vunpack.c.l.b16 %v2659
    %v2718 = vunpack.c.h.b16 %v2659
    %v2719 = vunpack.c.l.b16 %v2660
    %v2720 = vunpack.c.h.b16 %v2660
    %v2721 = vpack.c.b16 %v2691, %v2689
    %v2722 = vpack.c.b16 %v2692, %v2690
    %v2723 = vpack.c.b16 %v2695, %v2693
    %v2724 = vpack.c.b16 %v2696, %v2694
    %v2725 = vpack.c.b16 %v2699, %v2697
    %v2726 = vpack.c.b16 %v2700, %v2698
    %v2727 = vpack.c.b16 %v2703, %v2701
    %v2728 = vpack.c.b16 %v2704, %v2702
    %v2729 = vpack.c.b16 %v2707, %v2705
    %v2730 = vpack.c.b16 %v2708, %v2706
    %v2731 = vpack.c.b16 %v2711, %v2709
    %v2732 = vpack.c.b16 %v2712, %v2710
    %v2733 = vpack.c.b16 %v2715, %v2713
    %v2734 = vpack.c.b16 %v2716, %v2714
    %v2735 = vpack.c.b16 %v2719, %v2717
    %v2736 = vpack.c.b16 %v2720, %v2718
    %2753 = vmatprep.subr.bf16.mxu0 %v2736
    %2754 = vmatpush1.bf16.msra.mxu0 %v2735
    %2755 = vmatprep.subr.bf16.mxu0 %v2734
    %2756 = vmatpush1.bf16.msra.mxu0 %v2733
    %2757 = vmatprep.subr.bf16.mxu0 %v2732
    %2758 = vmatpush1.bf16.msra.mxu0 %v2731
    %2759 = vmatprep.subr.bf16.mxu0 %v2730
    %2760 = vmatpush1.bf16.msra.mxu0 %v2729
    %2761 = vmatprep.subr.bf16.mxu0 %v2728
    %2762 = vmatpush1.bf16.msra.mxu0 %v2727
    %2763 = vmatprep.subr.bf16.mxu0 %v2726
    %2764 = vmatpush1.bf16.msra.mxu0 %v2725
    %2765 = vmatprep.subr.bf16.mxu0 %v2724
    %2766 = vmatpush1.bf16.msra.mxu0 %v2723
    %2767 = vmatprep.subr.bf16.mxu0 %v2722
    %2768 = vmatpush1.bf16.msra.mxu0 %v2721
    %2769 = vmatprep.subr.bf16.mxu0 0
    %2770 = vmatpush2.bf16.msra.mxu0 0
    %2771 = vmatprep.subr.bf16.mxu0 0
    %2772 = vmatpush2.bf16.msra.mxu0 0
    %2773 = vmatprep.subr.bf16.mxu0 0
    %2774 = vmatpush2.bf16.msra.mxu0 0
    %2775 = vmatprep.subr.bf16.mxu0 0
    %2776 = vmatpush2.bf16.msra.mxu0 0
    %2777 = vmatprep.subr.bf16.mxu0 0
    %2778 = vmatpush2.bf16.msra.mxu0 0
    %2779 = vmatprep.subr.bf16.mxu0 0
    %2780 = vmatpush2.bf16.msra.mxu0 0
    %2781 = vmatprep.subr.bf16.mxu0 0
    %2782 = vmatpush2.bf16.msra.mxu0 0
    %2783 = vmatprep.subr.bf16.mxu0 0
    %2784 = vmatpush2.bf16.msra.mxu0 0
    %2785 = vmatprep.mubr.bf16.mxu0 0
    %2786 = vmatmul.mubr.bf16.gmra.mxu0 %v2637
    %v2787 = vpop.f32.mrf.mxu0
    %v2788 = vadd.f32 %v2666, %v2787
    %v2789 = vpop.f32.mrf.mxu0
    %v2790 = vadd.f32 %v2670, %v2789
    %v2791 = vpop.f32.mrf.mxu0
    %v2792 = vadd.f32 %v2666, %v2791
    %v2793 = vpop.f32.mrf.mxu0
    %v2794 = vadd.f32 %v2670, %v2793
    %2795 = vmatprep.mubr.bf16.mxu0 0
    %2796 = vmatmul.mubr.bf16.gmra.mxu0 %v2638
    %v2797 = vpop.f32.mrf.mxu0
    %v2798 = vadd.f32 %v2666, %v2797
    %v2799 = vpop.f32.mrf.mxu0
    %v2800 = vadd.f32 %v2670, %v2799
    %v2801 = vpop.f32.mrf.mxu0
    %v2802 = vadd.f32 %v2666, %v2801
    %v2803 = vpop.f32.mrf.mxu0
    %v2804 = vadd.f32 %v2670, %v2803
    %2805 = vmatprep.mubr.bf16.mxu0 0
    %2806 = vmatmul.mubr.bf16.gmra.mxu0 %v2639
    %v2807 = vpop.f32.mrf.mxu0
    %v2808 = vadd.f32 %v2666, %v2807
    %v2809 = vpop.f32.mrf.mxu0
    %v2810 = vadd.f32 %v2670, %v2809
    %v2811 = vpop.f32.mrf.mxu0
    %v2812 = vadd.f32 %v2666, %v2811
    %v2813 = vpop.f32.mrf.mxu0
    %v2814 = vadd.f32 %v2670, %v2813
    %2815 = vmatprep.mubr.bf16.mxu0 0
    %2816 = vmatmul.mubr.bf16.gmra.mxu0 %v2640
    %v2817 = vpop.f32.mrf.mxu0
    %v2818 = vadd.f32 %v2666, %v2817
    %v2819 = vpop.f32.mrf.mxu0
    %v2820 = vadd.f32 %v2670, %v2819
    %v2821 = vpop.f32.mrf.mxu0
    %v2822 = vadd.f32 %v2666, %v2821
    %v2823 = vpop.f32.mrf.mxu0
    %v2824 = vadd.f32 %v2670, %v2823
    %2825 = vmatprep.mubr.bf16.mxu0 0
    %2826 = vmatmul.mubr.bf16.gmra.mxu0 %v2641
    %v2827 = vpop.f32.mrf.mxu0
    %v2828 = vadd.f32 %v2666, %v2827
    %v2829 = vpop.f32.mrf.mxu0
    %v2830 = vadd.f32 %v2670, %v2829
    %v2831 = vpop.f32.mrf.mxu0
    %v2832 = vadd.f32 %v2666, %v2831
    %v2833 = vpop.f32.mrf.mxu0
    %v2834 = vadd.f32 %v2670, %v2833
    %2835 = vmatprep.mubr.bf16.mxu0 0
    %2836 = vmatmul.mubr.bf16.gmra.mxu0 %v2642
    %v2837 = vpop.f32.mrf.mxu0
    %v2838 = vadd.f32 %v2666, %v2837
    %v2839 = vpop.f32.mrf.mxu0
    %v2840 = vadd.f32 %v2670, %v2839
    %v2841 = vpop.f32.mrf.mxu0
    %v2842 = vadd.f32 %v2666, %v2841
    %v2843 = vpop.f32.mrf.mxu0
    %v2844 = vadd.f32 %v2670, %v2843
    %2845 = vmatprep.mubr.bf16.mxu0 0
    %2846 = vmatmul.mubr.bf16.gmra.mxu0 %v2643
    %v2847 = vpop.f32.mrf.mxu0
    %v2848 = vadd.f32 %v2666, %v2847
    %v2849 = vpop.f32.mrf.mxu0
    %v2850 = vadd.f32 %v2670, %v2849
    %v2851 = vpop.f32.mrf.mxu0
    %v2852 = vadd.f32 %v2666, %v2851
    %v2853 = vpop.f32.mrf.mxu0
    %v2854 = vadd.f32 %v2670, %v2853
    %2855 = vmatprep.mubr.bf16.mxu0 0
    %2856 = vmatmul.mubr.bf16.gmra.mxu0 %v2644
    %v2857 = vpop.f32.mrf.mxu0
    %v2858 = vadd.f32 %v2666, %v2857
    %v2859 = vpop.f32.mrf.mxu0
    %v2860 = vadd.f32 %v2670, %v2859
    %v2861 = vpop.f32.mrf.mxu0
    %v2862 = vadd.f32 %v2666, %v2861
    %v2863 = vpop.f32.mrf.mxu0
    %v2864 = vadd.f32 %v2670, %v2863
    %2865 = vdwg.mxu0
    %v2866 = vld [vmem:[#allocation8] sm:$0xff]
    %v2867 = vld [vmem:[#allocation8 + $0x8] sm:$0xff]
    %v2868 = vld [vmem:[#allocation8 + $0x10] sm:$0xff]
    %v2869 = vld [vmem:[#allocation8 + $0x18] sm:$0xff]
    %v2870 = vld [vmem:[#allocation8 + $0x20] sm:$0xff]
    %v2871 = vld [vmem:[#allocation8 + $0x28] sm:$0xff]
    %v2872 = vld [vmem:[#allocation8 + $0x30] sm:$0xff]
    %v2873 = vld [vmem:[#allocation8 + $0x38] sm:$0xff]
    %v2874 = vld [vmem:[#allocation8 + $0x40] sm:$0xff]
    %v2875 = vld [vmem:[#allocation8 + $0x48] sm:$0xff]
    %v2876 = vld [vmem:[#allocation8 + $0x50] sm:$0xff]
    %v2877 = vld [vmem:[#allocation8 + $0x58] sm:$0xff]
    %v2878 = vld [vmem:[#allocation8 + $0x60] sm:$0xff]
    %v2879 = vld [vmem:[#allocation8 + $0x68] sm:$0xff]
    %v2880 = vld [vmem:[#allocation8 + $0x70] sm:$0xff]
    %v2881 = vld [vmem:[#allocation8 + $0x78] sm:$0xff]
    %v2882 = vmul.f32 %v2790, 0.5
    %v2883 = vmul.f32 %v2794, 0.5
    %v2884 = vmul.f32 %v2800, 0.5
    %v2885 = vmul.f32 %v2804, 0.5
    %v2886 = vmul.f32 %v2810, 0.5
    %v2887 = vmul.f32 %v2814, 0.5
    %v2888 = vmul.f32 %v2820, 0.5
    %v2889 = vmul.f32 %v2824, 0.5
    %v2890 = vmul.f32 %v2830, 0.5
    %v2891 = vmul.f32 %v2834, 0.5
    %v2892 = vmul.f32 %v2840, 0.5
    %v2893 = vmul.f32 %v2844, 0.5
    %v2894 = vmul.f32 %v2850, 0.5
    %v2895 = vmul.f32 %v2854, 0.5
    %v2896 = vmul.f32 %v2860, 0.5
    %v2897 = vmul.f32 %v2864, 0.5
    %v2898 = vmul.f32 %v2882, 1.442695
    %v2899 = vpow.pop %v2898
    %v2900 = vmul.f32 %v2883, 1.442695
    %v2901 = vpow.pop %v2900
    %v2902 = vmul.f32 %v2884, 1.442695
    %v2903 = vpow.pop %v2902
    %v2904 = vmul.f32 %v2885, 1.442695
    %v2905 = vpow.pop %v2904
    %v2906 = vmul.f32 %v2886, 1.442695
    %v2907 = vpow.pop %v2906
    %v2908 = vmul.f32 %v2887, 1.442695
    %v2909 = vpow.pop %v2908
    %v2910 = vmul.f32 %v2888, 1.442695
    %v2911 = vpow.pop %v2910
    %v2912 = vmul.f32 %v2889, 1.442695
    %v2913 = vpow.pop %v2912
    %v2914 = vmul.f32 %v2890, 1.442695
    %v2915 = vpow.pop %v2914
    %v2916 = vmul.f32 %v2891, 1.442695
    %v2917 = vpow.pop %v2916
    %v2918 = vmul.f32 %v2892, 1.442695
    %v2919 = vpow.pop %v2918
    %v2920 = vmul.f32 %v2893, 1.442695
    %v2921 = vpow.pop %v2920
    %v2922 = vmul.f32 %v2894, 1.442695
    %v2923 = vpow.pop %v2922
    %v2924 = vmul.f32 %v2895, 1.442695
    %v2925 = vpow.pop %v2924
    %v2926 = vmul.f32 %v2896, 1.442695
    %v2927 = vpow.pop %v2926
    %v2928 = vmul.f32 %v2897, 1.442695
    %v2929 = vpow.pop %v2928
    %v2930 = vmul.f32 %v2866, %v2899
    %v2931 = vmul.f32 %v2867, %v2901
    %v2932 = vmul.f32 %v2868, %v2903
    %v2933 = vmul.f32 %v2869, %v2905
    %v2934 = vmul.f32 %v2870, %v2907
    %v2935 = vmul.f32 %v2871, %v2909
    %v2936 = vmul.f32 %v2872, %v2911
    %v2937 = vmul.f32 %v2873, %v2913
    %v2938 = vmul.f32 %v2874, %v2915
    %v2939 = vmul.f32 %v2875, %v2917
    %v2940 = vmul.f32 %v2876, %v2919
    %v2941 = vmul.f32 %v2877, %v2921
    %v2942 = vmul.f32 %v2878, %v2923
    %v2943 = vmul.f32 %v2879, %v2925
    %v2944 = vmul.f32 %v2880, %v2927
    %v2945 = vmul.f32 %v2881, %v2929
    %v2946 = vadd.f32 %v2788, %v2930
    %v2947 = vadd.f32 %v2792, %v2931
    %v2948 = vadd.f32 %v2798, %v2932
    %v2949 = vadd.f32 %v2802, %v2933
    %v2950 = vadd.f32 %v2808, %v2934
    %v2951 = vadd.f32 %v2812, %v2935
    %v2952 = vadd.f32 %v2818, %v2936
    %v2953 = vadd.f32 %v2822, %v2937
    %v2954 = vadd.f32 %v2828, %v2938
    %v2955 = vadd.f32 %v2832, %v2939
    %v2956 = vadd.f32 %v2838, %v2940
    %v2957 = vadd.f32 %v2842, %v2941
    %v2958 = vadd.f32 %v2848, %v2942
    %v2959 = vadd.f32 %v2852, %v2943
    %v2960 = vadd.f32 %v2858, %v2944
    %v2961 = vadd.f32 %v2862, %v2945
    %v2962 = vpack.c.bf16 %v2947, %v2946
    %v2963 = vpack.c.bf16 %v2949, %v2948
    %v2964 = vpack.c.bf16 %v2951, %v2950
    %v2965 = vpack.c.bf16 %v2953, %v2952
    %v2966 = vpack.c.bf16 %v2955, %v2954
    %v2967 = vpack.c.bf16 %v2957, %v2956
    %v2968 = vpack.c.bf16 %v2959, %v2958
    %v2969 = vpack.c.bf16 %v2961, %v2960
    %v2970 = vld [vmem:[#allocation23] sm:$0xff]
    %v2971 = vld [vmem:[#allocation23 + $0x8] sm:$0xff]
    %v2972 = vld [vmem:[#allocation23 + $0x10] sm:$0xff]
    %v2973 = vld [vmem:[#allocation23 + $0x18] sm:$0xff]
    %v2974 = vld [vmem:[#allocation23 + $0x20] sm:$0xff]
    %v2975 = vld [vmem:[#allocation23 + $0x28] sm:$0xff]
    %v2976 = vld [vmem:[#allocation23 + $0x30] sm:$0xff]
    %v2977 = vld [vmem:[#allocation23 + $0x38] sm:$0xff]
    %v2978 = vld [vmem:[#allocation23 + $0x40] sm:$0xff]
    %v2979 = vld [vmem:[#allocation23 + $0x48] sm:$0xff]
    %v2980 = vld [vmem:[#allocation23 + $0x50] sm:$0xff]
    %v2981 = vld [vmem:[#allocation23 + $0x58] sm:$0xff]
    %v2982 = vld [vmem:[#allocation23 + $0x60] sm:$0xff]
    %v2983 = vld [vmem:[#allocation23 + $0x68] sm:$0xff]
    %v2984 = vld [vmem:[#allocation23 + $0x70] sm:$0xff]
    %v2985 = vld [vmem:[#allocation23 + $0x78] sm:$0xff]
    %v2986 = vld [vmem:[%s47] sm:$0x3]
    %v2988 = vlaneseq
    %v2989 = vshrl.u32 %v2988, 7
    %v2990 = vsub.s32 0, %v2989
    %v2991 = vrot.slane %v2986, %v2990
    %v2992 = vlaneseq
    %v2993 = vshrl.u32 %v2992, 7
    %v2994 = vsub.s32 1, %v2993
    %v2995 = vrot.slane %v2986, %v2994
    %v3014 = vunpack.c.l.b16 %v2970
    %v3015 = vunpack.c.h.b16 %v2970
    %v3016 = vunpack.c.l.b16 %v2971
    %v3017 = vunpack.c.h.b16 %v2971
    %v3018 = vunpack.c.l.b16 %v2972
    %v3019 = vunpack.c.h.b16 %v2972
    %v3020 = vunpack.c.l.b16 %v2973
    %v3021 = vunpack.c.h.b16 %v2973
    %v3022 = vunpack.c.l.b16 %v2974
    %v3023 = vunpack.c.h.b16 %v2974
    %v3024 = vunpack.c.l.b16 %v2975
    %v3025 = vunpack.c.h.b16 %v2975
    %v3026 = vunpack.c.l.b16 %v2976
    %v3027 = vunpack.c.h.b16 %v2976
    %v3028 = vunpack.c.l.b16 %v2977
    %v3029 = vunpack.c.h.b16 %v2977
    %v3030 = vunpack.c.l.b16 %v2978
    %v3031 = vunpack.c.h.b16 %v2978
    %v3032 = vunpack.c.l.b16 %v2979
    %v3033 = vunpack.c.h.b16 %v2979
    %v3034 = vunpack.c.l.b16 %v2980
    %v3035 = vunpack.c.h.b16 %v2980
    %v3036 = vunpack.c.l.b16 %v2981
    %v3037 = vunpack.c.h.b16 %v2981
    %v3038 = vunpack.c.l.b16 %v2982
    %v3039 = vunpack.c.h.b16 %v2982
    %v3040 = vunpack.c.l.b16 %v2983
    %v3041 = vunpack.c.h.b16 %v2983
    %v3042 = vunpack.c.l.b16 %v2984
    %v3043 = vunpack.c.h.b16 %v2984
    %v3044 = vunpack.c.l.b16 %v2985
    %v3045 = vunpack.c.h.b16 %v2985
    %v3046 = vpack.c.b16 %v3016, %v3014
    %v3047 = vpack.c.b16 %v3017, %v3015
    %v3048 = vpack.c.b16 %v3020, %v3018
    %v3049 = vpack.c.b16 %v3021, %v3019
    %v3050 = vpack.c.b16 %v3024, %v3022
    %v3051 = vpack.c.b16 %v3025, %v3023
    %v3052 = vpack.c.b16 %v3028, %v3026
    %v3053 = vpack.c.b16 %v3029, %v3027
    %v3054 = vpack.c.b16 %v3032, %v3030
    %v3055 = vpack.c.b16 %v3033, %v3031
    %v3056 = vpack.c.b16 %v3036, %v3034
    %v3057 = vpack.c.b16 %v3037, %v3035
    %v3058 = vpack.c.b16 %v3040, %v3038
    %v3059 = vpack.c.b16 %v3041, %v3039
    %v3060 = vpack.c.b16 %v3044, %v3042
    %v3061 = vpack.c.b16 %v3045, %v3043
    %3078 = vmatprep.subr.bf16.mxu0 %v3061
    %3079 = vmatpush1.bf16.msra.mxu0 %v3060
    %3080 = vmatprep.subr.bf16.mxu0 %v3059
    %3081 = vmatpush1.bf16.msra.mxu0 %v3058
    %3082 = vmatprep.subr.bf16.mxu0 %v3057
    %3083 = vmatpush1.bf16.msra.mxu0 %v3056
    %3084 = vmatprep.subr.bf16.mxu0 %v3055
    %3085 = vmatpush1.bf16.msra.mxu0 %v3054
    %3086 = vmatprep.subr.bf16.mxu0 %v3053
    %3087 = vmatpush1.bf16.msra.mxu0 %v3052
    %3088 = vmatprep.subr.bf16.mxu0 %v3051
    %3089 = vmatpush1.bf16.msra.mxu0 %v3050
    %3090 = vmatprep.subr.bf16.mxu0 %v3049
    %3091 = vmatpush1.bf16.msra.mxu0 %v3048
    %3092 = vmatprep.subr.bf16.mxu0 %v3047
    %3093 = vmatpush1.bf16.msra.mxu0 %v3046
    %3094 = vmatprep.subr.bf16.mxu0 0
    %3095 = vmatpush2.bf16.msra.mxu0 0
    %3096 = vmatprep.subr.bf16.mxu0 0
    %3097 = vmatpush2.bf16.msra.mxu0 0
    %3098 = vmatprep.subr.bf16.mxu0 0
    %3099 = vmatpush2.bf16.msra.mxu0 0
    %3100 = vmatprep.subr.bf16.mxu0 0
    %3101 = vmatpush2.bf16.msra.mxu0 0
    %3102 = vmatprep.subr.bf16.mxu0 0
    %3103 = vmatpush2.bf16.msra.mxu0 0
    %3104 = vmatprep.subr.bf16.mxu0 0
    %3105 = vmatpush2.bf16.msra.mxu0 0
    %3106 = vmatprep.subr.bf16.mxu0 0
    %3107 = vmatpush2.bf16.msra.mxu0 0
    %3108 = vmatprep.subr.bf16.mxu0 0
    %3109 = vmatpush2.bf16.msra.mxu0 0
    %3110 = vmatprep.mubr.bf16.mxu0 0
    %3111 = vmatmul.mubr.bf16.gmra.mxu0 %v2962
    %v3112 = vpop.f32.mrf.mxu0
    %v3113 = vadd.f32 %v2991, %v3112
    %v3114 = vpop.f32.mrf.mxu0
    %v3115 = vadd.f32 %v2995, %v3114
    %v3116 = vpop.f32.mrf.mxu0
    %v3117 = vadd.f32 %v2991, %v3116
    %v3118 = vpop.f32.mrf.mxu0
    %v3119 = vadd.f32 %v2995, %v3118
    %3120 = vmatprep.mubr.bf16.mxu0 0
    %3121 = vmatmul.mubr.bf16.gmra.mxu0 %v2963
    %v3122 = vpop.f32.mrf.mxu0
    %v3123 = vadd.f32 %v2991, %v3122
    %v3124 = vpop.f32.mrf.mxu0
    %v3125 = vadd.f32 %v2995, %v3124
    %v3126 = vpop.f32.mrf.mxu0
    %v3127 = vadd.f32 %v2991, %v3126
    %v3128 = vpop.f32.mrf.mxu0
    %v3129 = vadd.f32 %v2995, %v3128
    %3130 = vmatprep.mubr.bf16.mxu0 0
    %3131 = vmatmul.mubr.bf16.gmra.mxu0 %v2964
    %v3132 = vpop.f32.mrf.mxu0
    %v3133 = vadd.f32 %v2991, %v3132
    %v3134 = vpop.f32.mrf.mxu0
    %v3135 = vadd.f32 %v2995, %v3134
    %v3136 = vpop.f32.mrf.mxu0
    %v3137 = vadd.f32 %v2991, %v3136
    %v3138 = vpop.f32.mrf.mxu0
    %v3139 = vadd.f32 %v2995, %v3138
    %3140 = vmatprep.mubr.bf16.mxu0 0
    %3141 = vmatmul.mubr.bf16.gmra.mxu0 %v2965
    %v3142 = vpop.f32.mrf.mxu0
    %v3143 = vadd.f32 %v2991, %v3142
    %v3144 = vpop.f32.mrf.mxu0
    %v3145 = vadd.f32 %v2995, %v3144
    %v3146 = vpop.f32.mrf.mxu0
    %v3147 = vadd.f32 %v2991, %v3146
    %v3148 = vpop.f32.mrf.mxu0
    %v3149 = vadd.f32 %v2995, %v3148
    %3150 = vmatprep.mubr.bf16.mxu0 0
    %3151 = vmatmul.mubr.bf16.gmra.mxu0 %v2966
    %v3152 = vpop.f32.mrf.mxu0
    %v3153 = vadd.f32 %v2991, %v3152
    %v3154 = vpop.f32.mrf.mxu0
    %v3155 = vadd.f32 %v2995, %v3154
    %v3156 = vpop.f32.mrf.mxu0
    %v3157 = vadd.f32 %v2991, %v3156
    %v3158 = vpop.f32.mrf.mxu0
    %v3159 = vadd.f32 %v2995, %v3158
    %3160 = vmatprep.mubr.bf16.mxu0 0
    %3161 = vmatmul.mubr.bf16.gmra.mxu0 %v2967
    %v3162 = vpop.f32.mrf.mxu0
    %v3163 = vadd.f32 %v2991, %v3162
    %v3164 = vpop.f32.mrf.mxu0
    %v3165 = vadd.f32 %v2995, %v3164
    %v3166 = vpop.f32.mrf.mxu0
    %v3167 = vadd.f32 %v2991, %v3166
    %v3168 = vpop.f32.mrf.mxu0
    %v3169 = vadd.f32 %v2995, %v3168
    %3170 = vmatprep.mubr.bf16.mxu0 0
    %3171 = vmatmul.mubr.bf16.gmra.mxu0 %v2968
    %v3172 = vpop.f32.mrf.mxu0
    %v3173 = vadd.f32 %v2991, %v3172
    %v3174 = vpop.f32.mrf.mxu0
    %v3175 = vadd.f32 %v2995, %v3174
    %v3176 = vpop.f32.mrf.mxu0
    %v3177 = vadd.f32 %v2991, %v3176
    %v3178 = vpop.f32.mrf.mxu0
    %v3179 = vadd.f32 %v2995, %v3178
    %3180 = vmatprep.mubr.bf16.mxu0 0
    %3181 = vmatmul.mubr.bf16.gmra.mxu0 %v2969
    %v3182 = vpop.f32.mrf.mxu0
    %v3183 = vadd.f32 %v2991, %v3182
    %v3184 = vpop.f32.mrf.mxu0
    %v3185 = vadd.f32 %v2995, %v3184
    %v3186 = vpop.f32.mrf.mxu0
    %v3187 = vadd.f32 %v2991, %v3186
    %v3188 = vpop.f32.mrf.mxu0
    %v3189 = vadd.f32 %v2995, %v3188
    %3190 = vdwg.mxu0
    %v3191 = vtanh.pop %v3113
    %v3192 = vtanh.pop %v3115
    %v3193 = vtanh.pop %v3117
    %v3194 = vtanh.pop %v3119
    %v3195 = vtanh.pop %v3123
    %v3196 = vtanh.pop %v3125
    %v3197 = vtanh.pop %v3127
    %v3198 = vtanh.pop %v3129
    %v3199 = vtanh.pop %v3133
    %v3200 = vtanh.pop %v3135
    %v3201 = vtanh.pop %v3137
    %v3202 = vtanh.pop %v3139
    %v3203 = vtanh.pop %v3143
    %v3204 = vtanh.pop %v3145
    %v3205 = vtanh.pop %v3147
    %v3206 = vtanh.pop %v3149
    %v3207 = vtanh.pop %v3153
    %v3208 = vtanh.pop %v3155
    %v3209 = vtanh.pop %v3157
    %v3210 = vtanh.pop %v3159
    %v3211 = vtanh.pop %v3163
    %v3212 = vtanh.pop %v3165
    %v3213 = vtanh.pop %v3167
    %v3214 = vtanh.pop %v3169
    %v3215 = vtanh.pop %v3173
    %v3216 = vtanh.pop %v3175
    %v3217 = vtanh.pop %v3177
    %v3218 = vtanh.pop %v3179
    %v3219 = vtanh.pop %v3183
    %v3220 = vtanh.pop %v3185
    %v3221 = vtanh.pop %v3187
    %v3222 = vtanh.pop %v3189
    %v3223 = vpack.c.bf16 %v3193, %v3191
    %v3224 = vpack.c.bf16 %v3194, %v3192
    %v3225 = vpack.c.bf16 %v3197, %v3195
    %v3226 = vpack.c.bf16 %v3198, %v3196
    %v3227 = vpack.c.bf16 %v3201, %v3199
    %v3228 = vpack.c.bf16 %v3202, %v3200
    %v3229 = vpack.c.bf16 %v3205, %v3203
    %v3230 = vpack.c.bf16 %v3206, %v3204
    %v3231 = vpack.c.bf16 %v3209, %v3207
    %v3232 = vpack.c.bf16 %v3210, %v3208
    %v3233 = vpack.c.bf16 %v3213, %v3211
    %v3234 = vpack.c.bf16 %v3214, %v3212
    %v3235 = vpack.c.bf16 %v3217, %v3215
    %v3236 = vpack.c.bf16 %v3218, %v3216
    %v3237 = vpack.c.bf16 %v3221, %v3219
    %v3238 = vpack.c.bf16 %v3222, %v3220
    %v3239 = vld [vmem:[#allocation25] sm:$0xff]
    %v3240 = vld [vmem:[#allocation25 + $0x8] sm:$0xff]
    %v3241 = vld [vmem:[#allocation25 + $0x10] sm:$0xff]
    %v3242 = vld [vmem:[#allocation25 + $0x18] sm:$0xff]
    %v3243 = vld [vmem:[#allocation25 + $0x20] sm:$0xff]
    %v3244 = vld [vmem:[#allocation25 + $0x28] sm:$0xff]
    %v3245 = vld [vmem:[#allocation25 + $0x30] sm:$0xff]
    %v3246 = vld [vmem:[#allocation25 + $0x38] sm:$0xff]
    %v3247 = vld [vmem:[#allocation25 + $0x40] sm:$0xff]
    %v3248 = vld [vmem:[#allocation25 + $0x48] sm:$0xff]
    %v3249 = vld [vmem:[#allocation25 + $0x50] sm:$0xff]
    %v3250 = vld [vmem:[#allocation25 + $0x58] sm:$0xff]
    %v3251 = vld [vmem:[#allocation25 + $0x60] sm:$0xff]
    %v3252 = vld [vmem:[#allocation25 + $0x68] sm:$0xff]
    %v3253 = vld [vmem:[#allocation25 + $0x70] sm:$0xff]
    %v3254 = vld [vmem:[#allocation25 + $0x78] sm:$0xff]
    %v3255 = vld [vmem:[#allocation25 + $0x80] sm:$0xff]
    %v3256 = vld [vmem:[#allocation25 + $0x88] sm:$0xff]
    %v3257 = vld [vmem:[#allocation25 + $0x90] sm:$0xff]
    %v3258 = vld [vmem:[#allocation25 + $0x98] sm:$0xff]
    %v3259 = vld [vmem:[#allocation25 + $0xa0] sm:$0xff]
    %v3260 = vld [vmem:[#allocation25 + $0xa8] sm:$0xff]
    %v3261 = vld [vmem:[#allocation25 + $0xb0] sm:$0xff]
    %v3262 = vld [vmem:[#allocation25 + $0xb8] sm:$0xff]
    %v3263 = vld [vmem:[#allocation25 + $0xc0] sm:$0xff]
    %v3264 = vld [vmem:[#allocation25 + $0xc8] sm:$0xff]
    %v3265 = vld [vmem:[#allocation25 + $0xd0] sm:$0xff]
    %v3266 = vld [vmem:[#allocation25 + $0xd8] sm:$0xff]
    %v3267 = vld [vmem:[#allocation25 + $0xe0] sm:$0xff]
    %v3268 = vld [vmem:[#allocation25 + $0xe8] sm:$0xff]
    %v3269 = vld [vmem:[#allocation25 + $0xf0] sm:$0xff]
    %v3270 = vld [vmem:[#allocation25 + $0xf8] sm:$0xff]
    %v3271 = vld [vmem:[%s51] sm:$0x3]
    %v3273 = vlaneseq
    %v3274 = vshrl.u32 %v3273, 7
    %v3275 = vsub.s32 0, %v3274
    %v3276 = vrot.slane %v3271, %v3275
    %v3277 = vlaneseq
    %v3278 = vshrl.u32 %v3277, 7
    %v3279 = vsub.s32 1, %v3278
    %v3280 = vrot.slane %v3271, %v3279
    %v3315 = vunpack.c.l.b16 %v3239
    %v3316 = vunpack.c.h.b16 %v3239
    %v3317 = vunpack.c.l.b16 %v3240
    %v3318 = vunpack.c.h.b16 %v3240
    %v3319 = vunpack.c.l.b16 %v3241
    %v3320 = vunpack.c.h.b16 %v3241
    %v3321 = vunpack.c.l.b16 %v3242
    %v3322 = vunpack.c.h.b16 %v3242
    %v3323 = vunpack.c.l.b16 %v3243
    %v3324 = vunpack.c.h.b16 %v3243
    %v3325 = vunpack.c.l.b16 %v3244
    %v3326 = vunpack.c.h.b16 %v3244
    %v3327 = vunpack.c.l.b16 %v3245
    %v3328 = vunpack.c.h.b16 %v3245
    %v3329 = vunpack.c.l.b16 %v3246
    %v3330 = vunpack.c.h.b16 %v3246
    %v3331 = vunpack.c.l.b16 %v3247
    %v3332 = vunpack.c.h.b16 %v3247
    %v3333 = vunpack.c.l.b16 %v3248
    %v3334 = vunpack.c.h.b16 %v3248
    %v3335 = vunpack.c.l.b16 %v3249
    %v3336 = vunpack.c.h.b16 %v3249
    %v3337 = vunpack.c.l.b16 %v3250
    %v3338 = vunpack.c.h.b16 %v3250
    %v3339 = vunpack.c.l.b16 %v3251
    %v3340 = vunpack.c.h.b16 %v3251
    %v3341 = vunpack.c.l.b16 %v3252
    %v3342 = vunpack.c.h.b16 %v3252
    %v3343 = vunpack.c.l.b16 %v3253
    %v3344 = vunpack.c.h.b16 %v3253
    %v3345 = vunpack.c.l.b16 %v3254
    %v3346 = vunpack.c.h.b16 %v3254
    %v3347 = vunpack.c.l.b16 %v3255
    %v3348 = vunpack.c.h.b16 %v3255
    %v3349 = vunpack.c.l.b16 %v3256
    %v3350 = vunpack.c.h.b16 %v3256
    %v3351 = vunpack.c.l.b16 %v3257
    %v3352 = vunpack.c.h.b16 %v3257
    %v3353 = vunpack.c.l.b16 %v3258
    %v3354 = vunpack.c.h.b16 %v3258
    %v3355 = vunpack.c.l.b16 %v3259
    %v3356 = vunpack.c.h.b16 %v3259
    %v3357 = vunpack.c.l.b16 %v3260
    %v3358 = vunpack.c.h.b16 %v3260
    %v3359 = vunpack.c.l.b16 %v3261
    %v3360 = vunpack.c.h.b16 %v3261
    %v3361 = vunpack.c.l.b16 %v3262
    %v3362 = vunpack.c.h.b16 %v3262
    %v3363 = vunpack.c.l.b16 %v3263
    %v3364 = vunpack.c.h.b16 %v3263
    %v3365 = vunpack.c.l.b16 %v3264
    %v3366 = vunpack.c.h.b16 %v3264
    %v3367 = vunpack.c.l.b16 %v3265
    %v3368 = vunpack.c.h.b16 %v3265
    %v3369 = vunpack.c.l.b16 %v3266
    %v3370 = vunpack.c.h.b16 %v3266
    %v3371 = vunpack.c.l.b16 %v3267
    %v3372 = vunpack.c.h.b16 %v3267
    %v3373 = vunpack.c.l.b16 %v3268
    %v3374 = vunpack.c.h.b16 %v3268
    %v3375 = vunpack.c.l.b16 %v3269
    %v3376 = vunpack.c.h.b16 %v3269
    %v3377 = vunpack.c.l.b16 %v3270
    %v3378 = vunpack.c.h.b16 %v3270
    %v3379 = vpack.c.b16 %v3317, %v3315
    %v3380 = vpack.c.b16 %v3318, %v3316
    %v3381 = vpack.c.b16 %v3321, %v3319
    %v3382 = vpack.c.b16 %v3322, %v3320
    %v3383 = vpack.c.b16 %v3325, %v3323
    %v3384 = vpack.c.b16 %v3326, %v3324
    %v3385 = vpack.c.b16 %v3329, %v3327
    %v3386 = vpack.c.b16 %v3330, %v3328
    %v3387 = vpack.c.b16 %v3333, %v3331
    %v3388 = vpack.c.b16 %v3334, %v3332
    %v3389 = vpack.c.b16 %v3337, %v3335
    %v3390 = vpack.c.b16 %v3338, %v3336
    %v3391 = vpack.c.b16 %v3341, %v3339
    %v3392 = vpack.c.b16 %v3342, %v3340
    %v3393 = vpack.c.b16 %v3345, %v3343
    %v3394 = vpack.c.b16 %v3346, %v3344
    %v3395 = vpack.c.b16 %v3349, %v3347
    %v3396 = vpack.c.b16 %v3350, %v3348
    %v3397 = vpack.c.b16 %v3353, %v3351
    %v3398 = vpack.c.b16 %v3354, %v3352
    %v3399 = vpack.c.b16 %v3357, %v3355
    %v3400 = vpack.c.b16 %v3358, %v3356
    %v3401 = vpack.c.b16 %v3361, %v3359
    %v3402 = vpack.c.b16 %v3362, %v3360
    %v3403 = vpack.c.b16 %v3365, %v3363
    %v3404 = vpack.c.b16 %v3366, %v3364
    %v3405 = vpack.c.b16 %v3369, %v3367
    %v3406 = vpack.c.b16 %v3370, %v3368
    %v3407 = vpack.c.b16 %v3373, %v3371
    %v3408 = vpack.c.b16 %v3374, %v3372
    %v3409 = vpack.c.b16 %v3377, %v3375
    %v3410 = vpack.c.b16 %v3378, %v3376
    %3443 = vmatprep.subr.bf16.mxu0 %v3394
    %3444 = vmatpush1.bf16.msra.mxu0 %v3393
    %3445 = vmatprep.subr.bf16.mxu0 %v3392
    %3446 = vmatpush1.bf16.msra.mxu0 %v3391
    %3447 = vmatprep.subr.bf16.mxu0 %v3390
    %3448 = vmatpush1.bf16.msra.mxu0 %v3389
    %3449 = vmatprep.subr.bf16.mxu0 %v3388
    %3450 = vmatpush1.bf16.msra.mxu0 %v3387
    %3451 = vmatprep.subr.bf16.mxu0 %v3386
    %3452 = vmatpush1.bf16.msra.mxu0 %v3385
    %3453 = vmatprep.subr.bf16.mxu0 %v3384
    %3454 = vmatpush1.bf16.msra.mxu0 %v3383
    %3455 = vmatprep.subr.bf16.mxu0 %v3382
    %3456 = vmatpush1.bf16.msra.mxu0 %v3381
    %3457 = vmatprep.subr.bf16.mxu0 %v3380
    %3458 = vmatpush1.bf16.msra.mxu0 %v3379
    %3459 = vmatprep.subr.bf16.mxu0 %v3410
    %3460 = vmatpush2.bf16.msra.mxu0 %v3409
    %3461 = vmatprep.subr.bf16.mxu0 %v3408
    %3462 = vmatpush2.bf16.msra.mxu0 %v3407
    %3463 = vmatprep.subr.bf16.mxu0 %v3406
    %3464 = vmatpush2.bf16.msra.mxu0 %v3405
    %3465 = vmatprep.subr.bf16.mxu0 %v3404
    %3466 = vmatpush2.bf16.msra.mxu0 %v3403
    %3467 = vmatprep.subr.bf16.mxu0 %v3402
    %3468 = vmatpush2.bf16.msra.mxu0 %v3401
    %3469 = vmatprep.subr.bf16.mxu0 %v3400
    %3470 = vmatpush2.bf16.msra.mxu0 %v3399
    %3471 = vmatprep.subr.bf16.mxu0 %v3398
    %3472 = vmatpush2.bf16.msra.mxu0 %v3397
    %3473 = vmatprep.subr.bf16.mxu0 %v3396
    %3474 = vmatpush2.bf16.msra.mxu0 %v3395
    %3475 = vmatprep.mubr.bf16.mxu0 %v3224
    %3476 = vmatmul.mubr.bf16.gmra.mxu0 %v3223
    %v3477 = vpop.f32.mrf.mxu0
    %v3478 = vadd.f32 %v3276, %v3477
    %v3479 = vpop.f32.mrf.mxu0
    %v3480 = vadd.f32 %v3280, %v3479
    %v3481 = vpop.f32.mrf.mxu0
    %v3482 = vadd.f32 %v3276, %v3481
    %v3483 = vpop.f32.mrf.mxu0
    %v3484 = vadd.f32 %v3280, %v3483
    %3485 = vmatprep.mubr.bf16.mxu0 %v3226
    %3486 = vmatmul.mubr.bf16.gmra.mxu0 %v3225
    %v3487 = vpop.f32.mrf.mxu0
    %v3488 = vadd.f32 %v3276, %v3487
    %v3489 = vpop.f32.mrf.mxu0
    %v3490 = vadd.f32 %v3280, %v3489
    %v3491 = vpop.f32.mrf.mxu0
    %v3492 = vadd.f32 %v3276, %v3491
    %v3493 = vpop.f32.mrf.mxu0
    %v3494 = vadd.f32 %v3280, %v3493
    %3495 = vmatprep.mubr.bf16.mxu0 %v3228
    %3496 = vmatmul.mubr.bf16.gmra.mxu0 %v3227
    %v3497 = vpop.f32.mrf.mxu0
    %v3498 = vadd.f32 %v3276, %v3497
    %v3499 = vpop.f32.mrf.mxu0
    %v3500 = vadd.f32 %v3280, %v3499
    %v3501 = vpop.f32.mrf.mxu0
    %v3502 = vadd.f32 %v3276, %v3501
    %v3503 = vpop.f32.mrf.mxu0
    %v3504 = vadd.f32 %v3280, %v3503
    %3505 = vmatprep.mubr.bf16.mxu0 %v3230
    %3506 = vmatmul.mubr.bf16.gmra.mxu0 %v3229
    %v3507 = vpop.f32.mrf.mxu0
    %v3508 = vadd.f32 %v3276, %v3507
    %v3509 = vpop.f32.mrf.mxu0
    %v3510 = vadd.f32 %v3280, %v3509
    %v3511 = vpop.f32.mrf.mxu0
    %v3512 = vadd.f32 %v3276, %v3511
    %v3513 = vpop.f32.mrf.mxu0
    %v3514 = vadd.f32 %v3280, %v3513
    %3515 = vmatprep.mubr.bf16.mxu0 %v3232
    %3516 = vmatmul.mubr.bf16.gmra.mxu0 %v3231
    %v3517 = vpop.f32.mrf.mxu0
    %v3518 = vadd.f32 %v3276, %v3517
    %v3519 = vpop.f32.mrf.mxu0
    %v3520 = vadd.f32 %v3280, %v3519
    %v3521 = vpop.f32.mrf.mxu0
    %v3522 = vadd.f32 %v3276, %v3521
    %v3523 = vpop.f32.mrf.mxu0
    %v3524 = vadd.f32 %v3280, %v3523
    %3525 = vmatprep.mubr.bf16.mxu0 %v3234
    %3526 = vmatmul.mubr.bf16.gmra.mxu0 %v3233
    %v3527 = vpop.f32.mrf.mxu0
    %v3528 = vadd.f32 %v3276, %v3527
    %v3529 = vpop.f32.mrf.mxu0
    %v3530 = vadd.f32 %v3280, %v3529
    %v3531 = vpop.f32.mrf.mxu0
    %v3532 = vadd.f32 %v3276, %v3531
    %v3533 = vpop.f32.mrf.mxu0
    %v3534 = vadd.f32 %v3280, %v3533
    %3535 = vmatprep.mubr.bf16.mxu0 %v3236
    %3536 = vmatmul.mubr.bf16.gmra.mxu0 %v3235
    %v3537 = vpop.f32.mrf.mxu0
    %v3538 = vadd.f32 %v3276, %v3537
    %v3539 = vpop.f32.mrf.mxu0
    %v3540 = vadd.f32 %v3280, %v3539
    %v3541 = vpop.f32.mrf.mxu0
    %v3542 = vadd.f32 %v3276, %v3541
    %v3543 = vpop.f32.mrf.mxu0
    %v3544 = vadd.f32 %v3280, %v3543
    %3545 = vmatprep.mubr.bf16.mxu0 %v3238
    %3546 = vmatmul.mubr.bf16.gmra.mxu0 %v3237
    %v3547 = vpop.f32.mrf.mxu0
    %v3548 = vadd.f32 %v3276, %v3547
    %v3549 = vpop.f32.mrf.mxu0
    %v3550 = vadd.f32 %v3280, %v3549
    %v3551 = vpop.f32.mrf.mxu0
    %v3552 = vadd.f32 %v3276, %v3551
    %v3553 = vpop.f32.mrf.mxu0
    %v3554 = vadd.f32 %v3280, %v3553
    %3555 = vdwg.mxu0
    %v3556 = vtanh.pop %v3478
    %v3557 = vtanh.pop %v3480
    %v3558 = vtanh.pop %v3482
    %v3559 = vtanh.pop %v3484
    %v3560 = vtanh.pop %v3488
    %v3561 = vtanh.pop %v3490
    %v3562 = vtanh.pop %v3492
    %v3563 = vtanh.pop %v3494
    %v3564 = vtanh.pop %v3498
    %v3565 = vtanh.pop %v3500
    %v3566 = vtanh.pop %v3502
    %v3567 = vtanh.pop %v3504
    %v3568 = vtanh.pop %v3508
    %v3569 = vtanh.pop %v3510
    %v3570 = vtanh.pop %v3512
    %v3571 = vtanh.pop %v3514
    %v3572 = vtanh.pop %v3518
    %v3573 = vtanh.pop %v3520
    %v3574 = vtanh.pop %v3522
    %v3575 = vtanh.pop %v3524
    %v3576 = vtanh.pop %v3528
    %v3577 = vtanh.pop %v3530
    %v3578 = vtanh.pop %v3532
    %v3579 = vtanh.pop %v3534
    %v3580 = vtanh.pop %v3538
    %v3581 = vtanh.pop %v3540
    %v3582 = vtanh.pop %v3542
    %v3583 = vtanh.pop %v3544
    %v3584 = vtanh.pop %v3548
    %v3585 = vtanh.pop %v3550
    %v3586 = vtanh.pop %v3552
    %v3587 = vtanh.pop %v3554
    %v3588 = vpack.c.bf16 %v3558, %v3556
    %v3589 = vpack.c.bf16 %v3559, %v3557
    %v3590 = vpack.c.bf16 %v3562, %v3560
    %v3591 = vpack.c.bf16 %v3563, %v3561
    %v3592 = vpack.c.bf16 %v3566, %v3564
    %v3593 = vpack.c.bf16 %v3567, %v3565
    %v3594 = vpack.c.bf16 %v3570, %v3568
    %v3595 = vpack.c.bf16 %v3571, %v3569
    %v3596 = vpack.c.bf16 %v3574, %v3572
    %v3597 = vpack.c.bf16 %v3575, %v3573
    %v3598 = vpack.c.bf16 %v3578, %v3576
    %v3599 = vpack.c.bf16 %v3579, %v3577
    %v3600 = vpack.c.bf16 %v3582, %v3580
    %v3601 = vpack.c.bf16 %v3583, %v3581
    %v3602 = vpack.c.bf16 %v3586, %v3584
    %v3603 = vpack.c.bf16 %v3587, %v3585
    %v3604 = vld [vmem:[#allocation26] sm:$0xff]
    %v3605 = vld [vmem:[#allocation26 + $0x8] sm:$0xff]
    %v3606 = vld [vmem:[#allocation26 + $0x10] sm:$0xff]
    %v3607 = vld [vmem:[#allocation26 + $0x18] sm:$0xff]
    %v3608 = vld [vmem:[#allocation26 + $0x20] sm:$0xff]
    %v3609 = vld [vmem:[#allocation26 + $0x28] sm:$0xff]
    %v3610 = vld [vmem:[#allocation26 + $0x30] sm:$0xff]
    %v3611 = vld [vmem:[#allocation26 + $0x38] sm:$0xff]
    %v3612 = vld [vmem:[#allocation26 + $0x40] sm:$0xff]
    %v3613 = vld [vmem:[#allocation26 + $0x48] sm:$0xff]
    %v3614 = vld [vmem:[#allocation26 + $0x50] sm:$0xff]
    %v3615 = vld [vmem:[#allocation26 + $0x58] sm:$0xff]
    %v3616 = vld [vmem:[#allocation26 + $0x60] sm:$0xff]
    %v3617 = vld [vmem:[#allocation26 + $0x68] sm:$0xff]
    %v3618 = vld [vmem:[#allocation26 + $0x70] sm:$0xff]
    %v3619 = vld [vmem:[#allocation26 + $0x78] sm:$0xff]
    %v3620 = vld [vmem:[#allocation26 + $0x80] sm:$0xff]
    %v3621 = vld [vmem:[#allocation26 + $0x88] sm:$0xff]
    %v3622 = vld [vmem:[#allocation26 + $0x90] sm:$0xff]
    %v3623 = vld [vmem:[#allocation26 + $0x98] sm:$0xff]
    %v3624 = vld [vmem:[#allocation26 + $0xa0] sm:$0xff]
    %v3625 = vld [vmem:[#allocation26 + $0xa8] sm:$0xff]
    %v3626 = vld [vmem:[#allocation26 + $0xb0] sm:$0xff]
    %v3627 = vld [vmem:[#allocation26 + $0xb8] sm:$0xff]
    %v3628 = vld [vmem:[#allocation26 + $0xc0] sm:$0xff]
    %v3629 = vld [vmem:[#allocation26 + $0xc8] sm:$0xff]
    %v3630 = vld [vmem:[#allocation26 + $0xd0] sm:$0xff]
    %v3631 = vld [vmem:[#allocation26 + $0xd8] sm:$0xff]
    %v3632 = vld [vmem:[#allocation26 + $0xe0] sm:$0xff]
    %v3633 = vld [vmem:[#allocation26 + $0xe8] sm:$0xff]
    %v3634 = vld [vmem:[#allocation26 + $0xf0] sm:$0xff]
    %v3635 = vld [vmem:[#allocation26 + $0xf8] sm:$0xff]
    %v3636 = vld [vmem:[%s55] sm:$0x3]
    %v3638 = vlaneseq
    %v3639 = vshrl.u32 %v3638, 7
    %v3640 = vsub.s32 0, %v3639
    %v3641 = vrot.slane %v3636, %v3640
    %v3642 = vlaneseq
    %v3643 = vshrl.u32 %v3642, 7
    %v3644 = vsub.s32 1, %v3643
    %v3645 = vrot.slane %v3636, %v3644
    %v3680 = vunpack.c.l.b16 %v3604
    %v3681 = vunpack.c.h.b16 %v3604
    %v3682 = vunpack.c.l.b16 %v3605
    %v3683 = vunpack.c.h.b16 %v3605
    %v3684 = vunpack.c.l.b16 %v3606
    %v3685 = vunpack.c.h.b16 %v3606
    %v3686 = vunpack.c.l.b16 %v3607
    %v3687 = vunpack.c.h.b16 %v3607
    %v3688 = vunpack.c.l.b16 %v3608
    %v3689 = vunpack.c.h.b16 %v3608
    %v3690 = vunpack.c.l.b16 %v3609
    %v3691 = vunpack.c.h.b16 %v3609
    %v3692 = vunpack.c.l.b16 %v3610
    %v3693 = vunpack.c.h.b16 %v3610
    %v3694 = vunpack.c.l.b16 %v3611
    %v3695 = vunpack.c.h.b16 %v3611
    %v3696 = vunpack.c.l.b16 %v3612
    %v3697 = vunpack.c.h.b16 %v3612
    %v3698 = vunpack.c.l.b16 %v3613
    %v3699 = vunpack.c.h.b16 %v3613
    %v3700 = vunpack.c.l.b16 %v3614
    %v3701 = vunpack.c.h.b16 %v3614
    %v3702 = vunpack.c.l.b16 %v3615
    %v3703 = vunpack.c.h.b16 %v3615
    %v3704 = vunpack.c.l.b16 %v3616
    %v3705 = vunpack.c.h.b16 %v3616
    %v3706 = vunpack.c.l.b16 %v3617
    %v3707 = vunpack.c.h.b16 %v3617
    %v3708 = vunpack.c.l.b16 %v3618
    %v3709 = vunpack.c.h.b16 %v3618
    %v3710 = vunpack.c.l.b16 %v3619
    %v3711 = vunpack.c.h.b16 %v3619
    %v3712 = vunpack.c.l.b16 %v3620
    %v3713 = vunpack.c.h.b16 %v3620
    %v3714 = vunpack.c.l.b16 %v3621
    %v3715 = vunpack.c.h.b16 %v3621
    %v3716 = vunpack.c.l.b16 %v3622
    %v3717 = vunpack.c.h.b16 %v3622
    %v3718 = vunpack.c.l.b16 %v3623
    %v3719 = vunpack.c.h.b16 %v3623
    %v3720 = vunpack.c.l.b16 %v3624
    %v3721 = vunpack.c.h.b16 %v3624
    %v3722 = vunpack.c.l.b16 %v3625
    %v3723 = vunpack.c.h.b16 %v3625
    %v3724 = vunpack.c.l.b16 %v3626
    %v3725 = vunpack.c.h.b16 %v3626
    %v3726 = vunpack.c.l.b16 %v3627
    %v3727 = vunpack.c.h.b16 %v3627
    %v3728 = vunpack.c.l.b16 %v3628
    %v3729 = vunpack.c.h.b16 %v3628
    %v3730 = vunpack.c.l.b16 %v3629
    %v3731 = vunpack.c.h.b16 %v3629
    %v3732 = vunpack.c.l.b16 %v3630
    %v3733 = vunpack.c.h.b16 %v3630
    %v3734 = vunpack.c.l.b16 %v3631
    %v3735 = vunpack.c.h.b16 %v3631
    %v3736 = vunpack.c.l.b16 %v3632
    %v3737 = vunpack.c.h.b16 %v3632
    %v3738 = vunpack.c.l.b16 %v3633
    %v3739 = vunpack.c.h.b16 %v3633
    %v3740 = vunpack.c.l.b16 %v3634
    %v3741 = vunpack.c.h.b16 %v3634
    %v3742 = vunpack.c.l.b16 %v3635
    %v3743 = vunpack.c.h.b16 %v3635
    %v3744 = vpack.c.b16 %v3682, %v3680
    %v3745 = vpack.c.b16 %v3683, %v3681
    %v3746 = vpack.c.b16 %v3686, %v3684
    %v3747 = vpack.c.b16 %v3687, %v3685
    %v3748 = vpack.c.b16 %v3690, %v3688
    %v3749 = vpack.c.b16 %v3691, %v3689
    %v3750 = vpack.c.b16 %v3694, %v3692
    %v3751 = vpack.c.b16 %v3695, %v3693
    %v3752 = vpack.c.b16 %v3698, %v3696
    %v3753 = vpack.c.b16 %v3699, %v3697
    %v3754 = vpack.c.b16 %v3702, %v3700
    %v3755 = vpack.c.b16 %v3703, %v3701
    %v3756 = vpack.c.b16 %v3706, %v3704
    %v3757 = vpack.c.b16 %v3707, %v3705
    %v3758 = vpack.c.b16 %v3710, %v3708
    %v3759 = vpack.c.b16 %v3711, %v3709
    %v3760 = vpack.c.b16 %v3714, %v3712
    %v3761 = vpack.c.b16 %v3715, %v3713
    %v3762 = vpack.c.b16 %v3718, %v3716
    %v3763 = vpack.c.b16 %v3719, %v3717
    %v3764 = vpack.c.b16 %v3722, %v3720
    %v3765 = vpack.c.b16 %v3723, %v3721
    %v3766 = vpack.c.b16 %v3726, %v3724
    %v3767 = vpack.c.b16 %v3727, %v3725
    %v3768 = vpack.c.b16 %v3730, %v3728
    %v3769 = vpack.c.b16 %v3731, %v3729
    %v3770 = vpack.c.b16 %v3734, %v3732
    %v3771 = vpack.c.b16 %v3735, %v3733
    %v3772 = vpack.c.b16 %v3738, %v3736
    %v3773 = vpack.c.b16 %v3739, %v3737
    %v3774 = vpack.c.b16 %v3742, %v3740
    %v3775 = vpack.c.b16 %v3743, %v3741
    %3808 = vmatprep.subr.bf16.mxu0 %v3759
    %3809 = vmatpush1.bf16.msra.mxu0 %v3758
    %3810 = vmatprep.subr.bf16.mxu0 %v3757
    %3811 = vmatpush1.bf16.msra.mxu0 %v3756
    %3812 = vmatprep.subr.bf16.mxu0 %v3755
    %3813 = vmatpush1.bf16.msra.mxu0 %v3754
    %3814 = vmatprep.subr.bf16.mxu0 %v3753
    %3815 = vmatpush1.bf16.msra.mxu0 %v3752
    %3816 = vmatprep.subr.bf16.mxu0 %v3751
    %3817 = vmatpush1.bf16.msra.mxu0 %v3750
    %3818 = vmatprep.subr.bf16.mxu0 %v3749
    %3819 = vmatpush1.bf16.msra.mxu0 %v3748
    %3820 = vmatprep.subr.bf16.mxu0 %v3747
    %3821 = vmatpush1.bf16.msra.mxu0 %v3746
    %3822 = vmatprep.subr.bf16.mxu0 %v3745
    %3823 = vmatpush1.bf16.msra.mxu0 %v3744
    %3824 = vmatprep.subr.bf16.mxu0 %v3775
    %3825 = vmatpush2.bf16.msra.mxu0 %v3774
    %3826 = vmatprep.subr.bf16.mxu0 %v3773
    %3827 = vmatpush2.bf16.msra.mxu0 %v3772
    %3828 = vmatprep.subr.bf16.mxu0 %v3771
    %3829 = vmatpush2.bf16.msra.mxu0 %v3770
    %3830 = vmatprep.subr.bf16.mxu0 %v3769
    %3831 = vmatpush2.bf16.msra.mxu0 %v3768
    %3832 = vmatprep.subr.bf16.mxu0 %v3767
    %3833 = vmatpush2.bf16.msra.mxu0 %v3766
    %3834 = vmatprep.subr.bf16.mxu0 %v3765
    %3835 = vmatpush2.bf16.msra.mxu0 %v3764
    %3836 = vmatprep.subr.bf16.mxu0 %v3763
    %3837 = vmatpush2.bf16.msra.mxu0 %v3762
    %3838 = vmatprep.subr.bf16.mxu0 %v3761
    %3839 = vmatpush2.bf16.msra.mxu0 %v3760
    %3840 = vmatprep.mubr.bf16.mxu0 %v3589
    %3841 = vmatmul.mubr.bf16.gmra.mxu0 %v3588
    %v3842 = vpop.f32.mrf.mxu0
    %v3843 = vadd.f32 %v3641, %v3842
    %v3844 = vpop.f32.mrf.mxu0
    %v3845 = vadd.f32 %v3645, %v3844
    %v3846 = vpop.f32.mrf.mxu0
    %v3847 = vadd.f32 %v3641, %v3846
    %v3848 = vpop.f32.mrf.mxu0
    %v3849 = vadd.f32 %v3645, %v3848
    %3850 = vmatprep.mubr.bf16.mxu0 %v3591
    %3851 = vmatmul.mubr.bf16.gmra.mxu0 %v3590
    %v3852 = vpop.f32.mrf.mxu0
    %v3853 = vadd.f32 %v3641, %v3852
    %v3854 = vpop.f32.mrf.mxu0
    %v3855 = vadd.f32 %v3645, %v3854
    %v3856 = vpop.f32.mrf.mxu0
    %v3857 = vadd.f32 %v3641, %v3856
    %v3858 = vpop.f32.mrf.mxu0
    %v3859 = vadd.f32 %v3645, %v3858
    %3860 = vmatprep.mubr.bf16.mxu0 %v3593
    %3861 = vmatmul.mubr.bf16.gmra.mxu0 %v3592
    %v3862 = vpop.f32.mrf.mxu0
    %v3863 = vadd.f32 %v3641, %v3862
    %v3864 = vpop.f32.mrf.mxu0
    %v3865 = vadd.f32 %v3645, %v3864
    %v3866 = vpop.f32.mrf.mxu0
    %v3867 = vadd.f32 %v3641, %v3866
    %v3868 = vpop.f32.mrf.mxu0
    %v3869 = vadd.f32 %v3645, %v3868
    %3870 = vmatprep.mubr.bf16.mxu0 %v3595
    %3871 = vmatmul.mubr.bf16.gmra.mxu0 %v3594
    %v3872 = vpop.f32.mrf.mxu0
    %v3873 = vadd.f32 %v3641, %v3872
    %v3874 = vpop.f32.mrf.mxu0
    %v3875 = vadd.f32 %v3645, %v3874
    %v3876 = vpop.f32.mrf.mxu0
    %v3877 = vadd.f32 %v3641, %v3876
    %v3878 = vpop.f32.mrf.mxu0
    %v3879 = vadd.f32 %v3645, %v3878
    %3880 = vmatprep.mubr.bf16.mxu0 %v3597
    %3881 = vmatmul.mubr.bf16.gmra.mxu0 %v3596
    %v3882 = vpop.f32.mrf.mxu0
    %v3883 = vadd.f32 %v3641, %v3882
    %v3884 = vpop.f32.mrf.mxu0
    %v3885 = vadd.f32 %v3645, %v3884
    %v3886 = vpop.f32.mrf.mxu0
    %v3887 = vadd.f32 %v3641, %v3886
    %v3888 = vpop.f32.mrf.mxu0
    %v3889 = vadd.f32 %v3645, %v3888
    %3890 = vmatprep.mubr.bf16.mxu0 %v3599
    %3891 = vmatmul.mubr.bf16.gmra.mxu0 %v3598
    %v3892 = vpop.f32.mrf.mxu0
    %v3893 = vadd.f32 %v3641, %v3892
    %v3894 = vpop.f32.mrf.mxu0
    %v3895 = vadd.f32 %v3645, %v3894
    %v3896 = vpop.f32.mrf.mxu0
    %v3897 = vadd.f32 %v3641, %v3896
    %v3898 = vpop.f32.mrf.mxu0
    %v3899 = vadd.f32 %v3645, %v3898
    %3900 = vmatprep.mubr.bf16.mxu0 %v3601
    %3901 = vmatmul.mubr.bf16.gmra.mxu0 %v3600
    %v3902 = vpop.f32.mrf.mxu0
    %v3903 = vadd.f32 %v3641, %v3902
    %v3904 = vpop.f32.mrf.mxu0
    %v3905 = vadd.f32 %v3645, %v3904
    %v3906 = vpop.f32.mrf.mxu0
    %v3907 = vadd.f32 %v3641, %v3906
    %v3908 = vpop.f32.mrf.mxu0
    %v3909 = vadd.f32 %v3645, %v3908
    %3910 = vmatprep.mubr.bf16.mxu0 %v3603
    %3911 = vmatmul.mubr.bf16.gmra.mxu0 %v3602
    %v3912 = vpop.f32.mrf.mxu0
    %v3913 = vadd.f32 %v3641, %v3912
    %v3914 = vpop.f32.mrf.mxu0
    %v3915 = vadd.f32 %v3645, %v3914
    %v3916 = vpop.f32.mrf.mxu0
    %v3917 = vadd.f32 %v3641, %v3916
    %v3918 = vpop.f32.mrf.mxu0
    %v3919 = vadd.f32 %v3645, %v3918
    %3920 = vdwg.mxu0
    %v3921 = vxor.u32 %v3843, 2147483648
    %v3922 = vxor.u32 %v3845, 2147483648
    %v3923 = vxor.u32 %v3847, 2147483648
    %v3924 = vxor.u32 %v3849, 2147483648
    %v3925 = vxor.u32 %v3853, 2147483648
    %v3926 = vxor.u32 %v3855, 2147483648
    %v3927 = vxor.u32 %v3857, 2147483648
    %v3928 = vxor.u32 %v3859, 2147483648
    %v3929 = vxor.u32 %v3863, 2147483648
    %v3930 = vxor.u32 %v3865, 2147483648
    %v3931 = vxor.u32 %v3867, 2147483648
    %v3932 = vxor.u32 %v3869, 2147483648
    %v3933 = vxor.u32 %v3873, 2147483648
    %v3934 = vxor.u32 %v3875, 2147483648
    %v3935 = vxor.u32 %v3877, 2147483648
    %v3936 = vxor.u32 %v3879, 2147483648
    %v3937 = vxor.u32 %v3883, 2147483648
    %v3938 = vxor.u32 %v3885, 2147483648
    %v3939 = vxor.u32 %v3887, 2147483648
    %v3940 = vxor.u32 %v3889, 2147483648
    %v3941 = vxor.u32 %v3893, 2147483648
    %v3942 = vxor.u32 %v3895, 2147483648
    %v3943 = vxor.u32 %v3897, 2147483648
    %v3944 = vxor.u32 %v3899, 2147483648
    %v3945 = vxor.u32 %v3903, 2147483648
    %v3946 = vxor.u32 %v3905, 2147483648
    %v3947 = vxor.u32 %v3907, 2147483648
    %v3948 = vxor.u32 %v3909, 2147483648
    %v3949 = vxor.u32 %v3913, 2147483648
    %v3950 = vxor.u32 %v3915, 2147483648
    %v3951 = vxor.u32 %v3917, 2147483648
    %v3952 = vxor.u32 %v3919, 2147483648
    %v3953 = vmul.f32 %v3921, 1.442695
    %v3954 = vpow.pop %v3953
    %v3955 = vmul.f32 %v3922, 1.442695
    %v3956 = vpow.pop %v3955
    %v3957 = vmul.f32 %v3923, 1.442695
    %v3958 = vpow.pop %v3957
    %v3959 = vmul.f32 %v3924, 1.442695
    %v3960 = vpow.pop %v3959
    %v3961 = vmul.f32 %v3925, 1.442695
    %v3962 = vpow.pop %v3961
    %v3963 = vmul.f32 %v3926, 1.442695
    %v3964 = vpow.pop %v3963
    %v3965 = vmul.f32 %v3927, 1.442695
    %v3966 = vpow.pop %v3965
    %v3967 = vmul.f32 %v3928, 1.442695
    %v3968 = vpow.pop %v3967
    %v3969 = vmul.f32 %v3929, 1.442695
    %v3970 = vpow.pop %v3969
    %v3971 = vmul.f32 %v3930, 1.442695
    %v3972 = vpow.pop %v3971
    %v3973 = vmul.f32 %v3931, 1.442695
    %v3974 = vpow.pop %v3973
    %v3975 = vmul.f32 %v3932, 1.442695
    %v3976 = vpow.pop %v3975
    %v3977 = vmul.f32 %v3933, 1.442695
    %v3978 = vpow.pop %v3977
    %v3979 = vmul.f32 %v3934, 1.442695
    %v3980 = vpow.pop %v3979
    %v3981 = vmul.f32 %v3935, 1.442695
    %v3982 = vpow.pop %v3981
    %v3983 = vmul.f32 %v3936, 1.442695
    %v3984 = vpow.pop %v3983
    %v3985 = vmul.f32 %v3937, 1.442695
    %v3986 = vpow.pop %v3985
    %v3987 = vmul.f32 %v3938, 1.442695
    %v3988 = vpow.pop %v3987
    %v3989 = vmul.f32 %v3939, 1.442695
    %v3990 = vpow.pop %v3989
    %v3991 = vmul.f32 %v3940, 1.442695
    %v3992 = vpow.pop %v3991
    %v3993 = vmul.f32 %v3941, 1.442695
    %v3994 = vpow.pop %v3993
    %v3995 = vmul.f32 %v3942, 1.442695
    %v3996 = vpow.pop %v3995
    %v3997 = vmul.f32 %v3943, 1.442695
    %v3998 = vpow.pop %v3997
    %v3999 = vmul.f32 %v3944, 1.442695
    %v4000 = vpow.pop %v3999
    %v4001 = vmul.f32 %v3945, 1.442695
    %v4002 = vpow.pop %v4001
    %v4003 = vmul.f32 %v3946, 1.442695
    %v4004 = vpow.pop %v4003
    %v4005 = vmul.f32 %v3947, 1.442695
    %v4006 = vpow.pop %v4005
    %v4007 = vmul.f32 %v3948, 1.442695
    %v4008 = vpow.pop %v4007
    %v4009 = vmul.f32 %v3949, 1.442695
    %v4010 = vpow.pop %v4009
    %v4011 = vmul.f32 %v3950, 1.442695
    %v4012 = vpow.pop %v4011
    %v4013 = vmul.f32 %v3951, 1.442695
    %v4014 = vpow.pop %v4013
    %v4015 = vmul.f32 %v3952, 1.442695
    %v4016 = vpow.pop %v4015
    %v4017 = vadd.f32 %v3954, 1.0
    %v4018 = vadd.f32 %v3956, 1.0
    %v4019 = vadd.f32 %v3958, 1.0
    %v4020 = vadd.f32 %v3960, 1.0
    %v4021 = vadd.f32 %v3962, 1.0
    %v4022 = vadd.f32 %v3964, 1.0
    %v4023 = vadd.f32 %v3966, 1.0
    %v4024 = vadd.f32 %v3968, 1.0
    %v4025 = vadd.f32 %v3970, 1.0
    %v4026 = vadd.f32 %v3972, 1.0
    %v4027 = vadd.f32 %v3974, 1.0
    %v4028 = vadd.f32 %v3976, 1.0
    %v4029 = vadd.f32 %v3978, 1.0
    %v4030 = vadd.f32 %v3980, 1.0
    %v4031 = vadd.f32 %v3982, 1.0
    %v4032 = vadd.f32 %v3984, 1.0
    %v4033 = vadd.f32 %v3986, 1.0
    %v4034 = vadd.f32 %v3988, 1.0
    %v4035 = vadd.f32 %v3990, 1.0
    %v4036 = vadd.f32 %v3992, 1.0
    %v4037 = vadd.f32 %v3994, 1.0
    %v4038 = vadd.f32 %v3996, 1.0
    %v4039 = vadd.f32 %v3998, 1.0
    %v4040 = vadd.f32 %v4000, 1.0
    %v4041 = vadd.f32 %v4002, 1.0
    %v4042 = vadd.f32 %v4004, 1.0
    %v4043 = vadd.f32 %v4006, 1.0
    %v4044 = vadd.f32 %v4008, 1.0
    %v4045 = vadd.f32 %v4010, 1.0
    %v4046 = vadd.f32 %v4012, 1.0
    %v4047 = vadd.f32 %v4014, 1.0
    %v4048 = vadd.f32 %v4016, 1.0
    %v4049 = vrcp.pop %v4017
    %v4050 = vmul.f32 1.0, %v4049
    %v4051 = vrcp.pop %v4018
    %v4052 = vmul.f32 1.0, %v4051
    %v4053 = vrcp.pop %v4019
    %v4054 = vmul.f32 1.0, %v4053
    %v4055 = vrcp.pop %v4020
    %v4056 = vmul.f32 1.0, %v4055
    %v4057 = vrcp.pop %v4021
    %v4058 = vmul.f32 1.0, %v4057
    %v4059 = vrcp.pop %v4022
    %v4060 = vmul.f32 1.0, %v4059
    %v4061 = vrcp.pop %v4023
    %v4062 = vmul.f32 1.0, %v4061
    %v4063 = vrcp.pop %v4024
    %v4064 = vmul.f32 1.0, %v4063
    %v4065 = vrcp.pop %v4025
    %v4066 = vmul.f32 1.0, %v4065
    %v4067 = vrcp.pop %v4026
    %v4068 = vmul.f32 1.0, %v4067
    %v4069 = vrcp.pop %v4027
    %v4070 = vmul.f32 1.0, %v4069
    %v4071 = vrcp.pop %v4028
    %v4072 = vmul.f32 1.0, %v4071
    %v4073 = vrcp.pop %v4029
    %v4074 = vmul.f32 1.0, %v4073
    %v4075 = vrcp.pop %v4030
    %v4076 = vmul.f32 1.0, %v4075
    %v4077 = vrcp.pop %v4031
    %v4078 = vmul.f32 1.0, %v4077
    %v4079 = vrcp.pop %v4032
    %v4080 = vmul.f32 1.0, %v4079
    %v4081 = vrcp.pop %v4033
    %v4082 = vmul.f32 1.0, %v4081
    %v4083 = vrcp.pop %v4034
    %v4084 = vmul.f32 1.0, %v4083
    %v4085 = vrcp.pop %v4035
    %v4086 = vmul.f32 1.0, %v4085
    %v4087 = vrcp.pop %v4036
    %v4088 = vmul.f32 1.0, %v4087
    %v4089 = vrcp.pop %v4037
    %v4090 = vmul.f32 1.0, %v4089
    %v4091 = vrcp.pop %v4038
    %v4092 = vmul.f32 1.0, %v4091
    %v4093 = vrcp.pop %v4039
    %v4094 = vmul.f32 1.0, %v4093
    %v4095 = vrcp.pop %v4040
    %v4096 = vmul.f32 1.0, %v4095
    %v4097 = vrcp.pop %v4041
    %v4098 = vmul.f32 1.0, %v4097
    %v4099 = vrcp.pop %v4042
    %v4100 = vmul.f32 1.0, %v4099
    %v4101 = vrcp.pop %v4043
    %v4102 = vmul.f32 1.0, %v4101
    %v4103 = vrcp.pop %v4044
    %v4104 = vmul.f32 1.0, %v4103
    %v4105 = vrcp.pop %v4045
    %v4106 = vmul.f32 1.0, %v4105
    %v4107 = vrcp.pop %v4046
    %v4108 = vmul.f32 1.0, %v4107
    %v4109 = vrcp.pop %v4047
    %v4110 = vmul.f32 1.0, %v4109
    %v4111 = vrcp.pop %v4048
    %v4112 = vmul.f32 1.0, %v4111
    %4113 = vst [vmem:[#allocation28] sm:$0xff] %v1528
    %4114 = vst [vmem:[#allocation28 + $0x8] sm:$0xff] %v1529
    %4115 = vst [vmem:[#allocation28 + $0x10] sm:$0xff] %v1530
    %4116 = vst [vmem:[#allocation28 + $0x18] sm:$0xff] %v1531
    %4117 = vst [vmem:[#allocation28 + $0x20] sm:$0xff] %v1532
    %4118 = vst [vmem:[#allocation28 + $0x28] sm:$0xff] %v1533
    %4119 = vst [vmem:[#allocation28 + $0x30] sm:$0xff] %v1534
    %4120 = vst [vmem:[#allocation28 + $0x38] sm:$0xff] %v1535
    %4121 = vst [vmem:[#allocation28 + $0x40] sm:$0xff] %v1536
    %4122 = vst [vmem:[#allocation28 + $0x48] sm:$0xff] %v1537
    %4123 = vst [vmem:[#allocation28 + $0x50] sm:$0xff] %v1538
    %4124 = vst [vmem:[#allocation28 + $0x58] sm:$0xff] %v1539
    %4125 = vst [vmem:[#allocation28 + $0x60] sm:$0xff] %v1540
    %4126 = vst [vmem:[#allocation28 + $0x68] sm:$0xff] %v1541
    %4127 = vst [vmem:[#allocation28 + $0x70] sm:$0xff] %v1542
    %4128 = vst [vmem:[#allocation28 + $0x78] sm:$0xff] %v1543
    %4129 = vst [vmem:[#allocation29] sm:$0xff] %v1370
    %4130 = vst [vmem:[#allocation29 + $0x8] sm:$0xff] %v1374
    %4131 = vst [vmem:[#allocation29 + $0x10] sm:$0xff] %v1380
    %4132 = vst [vmem:[#allocation29 + $0x18] sm:$0xff] %v1384
    %4133 = vst [vmem:[#allocation29 + $0x20] sm:$0xff] %v1390
    %4134 = vst [vmem:[#allocation29 + $0x28] sm:$0xff] %v1394
    %4135 = vst [vmem:[#allocation29 + $0x30] sm:$0xff] %v1400
    %4136 = vst [vmem:[#allocation29 + $0x38] sm:$0xff] %v1404
    %4137 = vst [vmem:[#allocation29 + $0x40] sm:$0xff] %v1410
    %4138 = vst [vmem:[#allocation29 + $0x48] sm:$0xff] %v1414
    %4139 = vst [vmem:[#allocation29 + $0x50] sm:$0xff] %v1420
    %4140 = vst [vmem:[#allocation29 + $0x58] sm:$0xff] %v1424
    %4141 = vst [vmem:[#allocation29 + $0x60] sm:$0xff] %v1430
    %4142 = vst [vmem:[#allocation29 + $0x68] sm:$0xff] %v1434
    %4143 = vst [vmem:[#allocation29 + $0x70] sm:$0xff] %v1440
    %4144 = vst [vmem:[#allocation29 + $0x78] sm:$0xff] %v1444
    %4145 = vst [vmem:[#allocation31] sm:$0xff] %v1372
    %4146 = vst [vmem:[#allocation31 + $0x8] sm:$0xff] %v1376
    %4147 = vst [vmem:[#allocation31 + $0x10] sm:$0xff] %v1382
    %4148 = vst [vmem:[#allocation31 + $0x18] sm:$0xff] %v1386
    %4149 = vst [vmem:[#allocation31 + $0x20] sm:$0xff] %v1392
    %4150 = vst [vmem:[#allocation31 + $0x28] sm:$0xff] %v1396
    %4151 = vst [vmem:[#allocation31 + $0x30] sm:$0xff] %v1402
    %4152 = vst [vmem:[#allocation31 + $0x38] sm:$0xff] %v1406
    %4153 = vst [vmem:[#allocation31 + $0x40] sm:$0xff] %v1412
    %4154 = vst [vmem:[#allocation31 + $0x48] sm:$0xff] %v1416
    %4155 = vst [vmem:[#allocation31 + $0x50] sm:$0xff] %v1422
    %4156 = vst [vmem:[#allocation31 + $0x58] sm:$0xff] %v1426
    %4157 = vst [vmem:[#allocation31 + $0x60] sm:$0xff] %v1432
    %4158 = vst [vmem:[#allocation31 + $0x68] sm:$0xff] %v1436
    %4159 = vst [vmem:[#allocation31 + $0x70] sm:$0xff] %v1442
    %4160 = vst [vmem:[#allocation31 + $0x78] sm:$0xff] %v1446
    %4161 = vst [vmem:[#allocation32] sm:$0xff] %v2237
    %4162 = vst [vmem:[#allocation32 + $0x8] sm:$0xff] %v2238
    %4163 = vst [vmem:[#allocation32 + $0x10] sm:$0xff] %v2239
    %4164 = vst [vmem:[#allocation32 + $0x18] sm:$0xff] %v2240
    %4165 = vst [vmem:[#allocation32 + $0x20] sm:$0xff] %v2241
    %4166 = vst [vmem:[#allocation32 + $0x28] sm:$0xff] %v2242
    %4167 = vst [vmem:[#allocation32 + $0x30] sm:$0xff] %v2243
    %4168 = vst [vmem:[#allocation32 + $0x38] sm:$0xff] %v2244
    %4169 = vst [vmem:[#allocation32 + $0x40] sm:$0xff] %v2245
    %4170 = vst [vmem:[#allocation32 + $0x48] sm:$0xff] %v2246
    %4171 = vst [vmem:[#allocation32 + $0x50] sm:$0xff] %v2247
    %4172 = vst [vmem:[#allocation32 + $0x58] sm:$0xff] %v2248
    %4173 = vst [vmem:[#allocation32 + $0x60] sm:$0xff] %v2249
    %4174 = vst [vmem:[#allocation32 + $0x68] sm:$0xff] %v2250
    %4175 = vst [vmem:[#allocation32 + $0x70] sm:$0xff] %v2251
    %4176 = vst [vmem:[#allocation32 + $0x78] sm:$0xff] %v2252
    %4177 = vst [vmem:[#allocation34] sm:$0xff] %v2079
    %4178 = vst [vmem:[#allocation34 + $0x8] sm:$0xff] %v2083
    %4179 = vst [vmem:[#allocation34 + $0x10] sm:$0xff] %v2089
    %4180 = vst [vmem:[#allocation34 + $0x18] sm:$0xff] %v2093
    %4181 = vst [vmem:[#allocation34 + $0x20] sm:$0xff] %v2099
    %4182 = vst [vmem:[#allocation34 + $0x28] sm:$0xff] %v2103
    %4183 = vst [vmem:[#allocation34 + $0x30] sm:$0xff] %v2109
    %4184 = vst [vmem:[#allocation34 + $0x38] sm:$0xff] %v2113
    %4185 = vst [vmem:[#allocation34 + $0x40] sm:$0xff] %v2119
    %4186 = vst [vmem:[#allocation34 + $0x48] sm:$0xff] %v2123
    %4187 = vst [vmem:[#allocation34 + $0x50] sm:$0xff] %v2129
    %4188 = vst [vmem:[#allocation34 + $0x58] sm:$0xff] %v2133
    %4189 = vst [vmem:[#allocation34 + $0x60] sm:$0xff] %v2139
    %4190 = vst [vmem:[#allocation34 + $0x68] sm:$0xff] %v2143
    %4191 = vst [vmem:[#allocation34 + $0x70] sm:$0xff] %v2149
    %4192 = vst [vmem:[#allocation34 + $0x78] sm:$0xff] %v2153
    %4193 = vst [vmem:[#allocation35] sm:$0xff] %v2081
    %4194 = vst [vmem:[#allocation35 + $0x8] sm:$0xff] %v2085
    %4195 = vst [vmem:[#allocation35 + $0x10] sm:$0xff] %v2091
    %4196 = vst [vmem:[#allocation35 + $0x18] sm:$0xff] %v2095
    %4197 = vst [vmem:[#allocation35 + $0x20] sm:$0xff] %v2101
    %4198 = vst [vmem:[#allocation35 + $0x28] sm:$0xff] %v2105
    %4199 = vst [vmem:[#allocation35 + $0x30] sm:$0xff] %v2111
    %4200 = vst [vmem:[#allocation35 + $0x38] sm:$0xff] %v2115
    %4201 = vst [vmem:[#allocation35 + $0x40] sm:$0xff] %v2121
    %4202 = vst [vmem:[#allocation35 + $0x48] sm:$0xff] %v2125
    %4203 = vst [vmem:[#allocation35 + $0x50] sm:$0xff] %v2131
    %4204 = vst [vmem:[#allocation35 + $0x58] sm:$0xff] %v2135
    %4205 = vst [vmem:[#allocation35 + $0x60] sm:$0xff] %v2141
    %4206 = vst [vmem:[#allocation35 + $0x68] sm:$0xff] %v2145
    %4207 = vst [vmem:[#allocation35 + $0x70] sm:$0xff] %v2151
    %4208 = vst [vmem:[#allocation35 + $0x78] sm:$0xff] %v2155
    %4209 = vst [vmem:[#allocation37] sm:$0xff] %v4050
    %4210 = vst [vmem:[#allocation37 + $0x8] sm:$0xff] %v4052
    %4211 = vst [vmem:[#allocation37 + $0x10] sm:$0xff] %v4054
    %4212 = vst [vmem:[#allocation37 + $0x18] sm:$0xff] %v4056
    %4213 = vst [vmem:[#allocation37 + $0x20] sm:$0xff] %v4058
    %4214 = vst [vmem:[#allocation37 + $0x28] sm:$0xff] %v4060
    %4215 = vst [vmem:[#allocation37 + $0x30] sm:$0xff] %v4062
    %4216 = vst [vmem:[#allocation37 + $0x38] sm:$0xff] %v4064
    %4217 = vst [vmem:[#allocation37 + $0x40] sm:$0xff] %v4066
    %4218 = vst [vmem:[#allocation37 + $0x48] sm:$0xff] %v4068
    %4219 = vst [vmem:[#allocation37 + $0x50] sm:$0xff] %v4070
    %4220 = vst [vmem:[#allocation37 + $0x58] sm:$0xff] %v4072
    %4221 = vst [vmem:[#allocation37 + $0x60] sm:$0xff] %v4074
    %4222 = vst [vmem:[#allocation37 + $0x68] sm:$0xff] %v4076
    %4223 = vst [vmem:[#allocation37 + $0x70] sm:$0xff] %v4078
    %4224 = vst [vmem:[#allocation37 + $0x78] sm:$0xff] %v4080
    %4225 = vst [vmem:[#allocation37 + $0x80] sm:$0xff] %v4082
    %4226 = vst [vmem:[#allocation37 + $0x88] sm:$0xff] %v4084
    %4227 = vst [vmem:[#allocation37 + $0x90] sm:$0xff] %v4086
    %4228 = vst [vmem:[#allocation37 + $0x98] sm:$0xff] %v4088
    %4229 = vst [vmem:[#allocation37 + $0xa0] sm:$0xff] %v4090
    %4230 = vst [vmem:[#allocation37 + $0xa8] sm:$0xff] %v4092
    %4231 = vst [vmem:[#allocation37 + $0xb0] sm:$0xff] %v4094
    %4232 = vst [vmem:[#allocation37 + $0xb8] sm:$0xff] %v4096
    %4233 = vst [vmem:[#allocation37 + $0xc0] sm:$0xff] %v4098
    %4234 = vst [vmem:[#allocation37 + $0xc8] sm:$0xff] %v4100
    %4235 = vst [vmem:[#allocation37 + $0xd0] sm:$0xff] %v4102
    %4236 = vst [vmem:[#allocation37 + $0xd8] sm:$0xff] %v4104
    %4237 = vst [vmem:[#allocation37 + $0xe0] sm:$0xff] %v4106
    %4238 = vst [vmem:[#allocation37 + $0xe8] sm:$0xff] %v4108
    %4239 = vst [vmem:[#allocation37 + $0xf0] sm:$0xff] %v4110
    %4240 = vst [vmem:[#allocation37 + $0xf8] sm:$0xff] %v4112
    // Predicated region
    $region178: #{tpu_custom_call.1} parent=1 // pred_check
      _
    $region179: #{tpu_custom_call.1} parent=1 // pred_check_branch
      %4242 = sbr.rel (0) target = $region181
    $region180: #{tpu_custom_call.1} parent=1 // pred_region
      %s4244 = ssub.s32 2048, 2048
      %4245 = vsyncadd [#allocation4], %s4244
      %s4246 = sshll.u32 [#allocation28], 4
      %s4247 = int_to_ptr.vmem [resolvable:$true] %s4246
      %4252 = dma.vmem_to_hbm [thread:$0]  %s4247, 2048, %s57, [#allocation4], 128, 128, 8
    $region181: #{tpu_custom_call.1} parent=1 // pred_fallthru
      _
    // Predicated region
    $region182: #{tpu_custom_call.1} parent=1 // pred_check
      _
    $region183: #{tpu_custom_call.1} parent=1 // pred_check_branch
      %4254 = sbr.rel (0) target = $region185
    $region184: #{tpu_custom_call.1} parent=1 // pred_region
      %s4256 = ssub.s32 2048, 2048
      %4257 = vsyncadd [#allocation30], %s4256
      %s4258 = sshll.u32 [#allocation29], 4
      %s4259 = int_to_ptr.vmem [resolvable:$true] %s4258
      %4264 = dma.vmem_to_hbm [thread:$0]  %s4259, 2048, %s59, [#allocation30], 128, 128, 8
    $region185: #{tpu_custom_call.1} parent=1 // pred_fallthru
      _
    // Predicated region
    $region186: #{tpu_custom_call.1} parent=1 // pred_check
      _
    $region187: #{tpu_custom_call.1} parent=1 // pred_check_branch
      %4266 = sbr.rel (0) target = $region189
    $region188: #{tpu_custom_call.1} parent=1 // pred_region
      %s4268 = ssub.s32 2048, 2048
      %4269 = vsyncadd [#allocation30], %s4268
      %s4270 = sshll.u32 [#allocation31], 4
      %s4271 = int_to_ptr.vmem [resolvable:$true] %s4270
      %4276 = dma.vmem_to_hbm [thread:$0]  %s4271, 2048, %s61, [#allocation30], 128, 128, 8
    $region189: #{tpu_custom_call.1} parent=1 // pred_fallthru
      _
    // Predicated region
    $region190: #{tpu_custom_call.1} parent=1 // pred_check
      _
    $region191: #{tpu_custom_call.1} parent=1 // pred_check_branch
      %4278 = sbr.rel (0) target = $region193
    $region192: #{tpu_custom_call.1} parent=1 // pred_region
      %s4280 = ssub.s32 2048, 2048
      %4281 = vsyncadd [#allocation33], %s4280
      %s4282 = sshll.u32 [#allocation32], 4
      %s4283 = int_to_ptr.vmem [resolvable:$true] %s4282
      %4288 = dma.vmem_to_hbm [thread:$0]  %s4283, 2048, %s63, [#allocation33], 128, 128, 8
    $region193: #{tpu_custom_call.1} parent=1 // pred_fallthru
      _
    // Predicated region
    $region194: #{tpu_custom_call.1} parent=1 // pred_check
      _
    $region195: #{tpu_custom_call.1} parent=1 // pred_check_branch
      %4290 = sbr.rel (0) target = $region197
    $region196: #{tpu_custom_call.1} parent=1 // pred_region
      %s4292 = ssub.s32 2048, 2048
      %4293 = vsyncadd [#allocation33], %s4292
      %s4294 = sshll.u32 [#allocation34], 4
      %s4295 = int_to_ptr.vmem [resolvable:$true] %s4294
      %4300 = dma.vmem_to_hbm [thread:$0]  %s4295, 2048, %s65, [#allocation33], 128, 128, 8
    $region197: #{tpu_custom_call.1} parent=1 // pred_fallthru
      _
    // Predicated region
    $region198: #{tpu_custom_call.1} parent=1 // pred_check
      _
    $region199: #{tpu_custom_call.1} parent=1 // pred_check_branch
      %4302 = sbr.rel (0) target = $region201
    $region200: #{tpu_custom_call.1} parent=1 // pred_region
      %s4304 = ssub.s32 2048, 2048
      %4305 = vsyncadd [#allocation36], %s4304
      %s4306 = sshll.u32 [#allocation35], 4
      %s4307 = int_to_ptr.vmem [resolvable:$true] %s4306
      %4312 = dma.vmem_to_hbm [thread:$0]  %s4307, 2048, %s67, [#allocation36], 128, 128, 8
    $region201: #{tpu_custom_call.1} parent=1 // pred_fallthru
      _
    // Predicated region
    $region202: #{tpu_custom_call.1} parent=1 // pred_check
      _
    $region203: #{tpu_custom_call.1} parent=1 // pred_check_branch
      %4314 = sbr.rel (0) target = $region205
    $region204: #{tpu_custom_call.1} parent=1 // pred_region
      %s4316 = ssub.s32 4096, 4096
      %4317 = vsyncadd [#allocation36], %s4316
      %s4318 = sshll.u32 [#allocation37], 4
      %s4319 = int_to_ptr.vmem [resolvable:$true] %s4318
      %4324 = dma.vmem_to_hbm [thread:$0]  %s4319, 4096, %s69, [#allocation36], 256, 256, 16
    $region205: #{tpu_custom_call.1} parent=1 // pred_fallthru
      _
    // Predicated region
    $region206: #{tpu_custom_call.1} parent=1 // pred_check
      _
    $region207: #{tpu_custom_call.1} parent=1 // pred_check_branch
      %4326 = sbr.rel (0) target = $region209
    $region208: #{tpu_custom_call.1} parent=1 // pred_region
      %4327 = dma.done [#allocation4], 2048
    $region209: #{tpu_custom_call.1} parent=1 // pred_fallthru
      _
    // Predicated region
    $region210: #{tpu_custom_call.1} parent=1 // pred_check
      _
    $region211: #{tpu_custom_call.1} parent=1 // pred_check_branch
      %4329 = sbr.rel (0) target = $region213
    $region212: #{tpu_custom_call.1} parent=1 // pred_region
      %4330 = dma.done [#allocation30], 2048
    $region213: #{tpu_custom_call.1} parent=1 // pred_fallthru
      _
    // Predicated region
    $region214: #{tpu_custom_call.1} parent=1 // pred_check
      _
    $region215: #{tpu_custom_call.1} parent=1 // pred_check_branch
      %4332 = sbr.rel (0) target = $region217
    $region216: #{tpu_custom_call.1} parent=1 // pred_region
      %4333 = dma.done [#allocation30], 2048
    $region217: #{tpu_custom_call.1} parent=1 // pred_fallthru
      _
    // Predicated region
    $region218: #{tpu_custom_call.1} parent=1 // pred_check
      _
    $region219: #{tpu_custom_call.1} parent=1 // pred_check_branch
      %4335 = sbr.rel (0) target = $region221
    $region220: #{tpu_custom_call.1} parent=1 // pred_region
      %4336 = dma.done [#allocation33], 2048
    $region221: #{tpu_custom_call.1} parent=1 // pred_fallthru
      _
    // Predicated region
    $region222: #{tpu_custom_call.1} parent=1 // pred_check
      _
    $region223: #{tpu_custom_call.1} parent=1 // pred_check_branch
      %4338 = sbr.rel (0) target = $region225
    $region224: #{tpu_custom_call.1} parent=1 // pred_region
      %4339 = dma.done [#allocation33], 2048
    $region225: #{tpu_custom_call.1} parent=1 // pred_fallthru
      _
    // Predicated region
    $region226: #{tpu_custom_call.1} parent=1 // pred_check
      _
    $region227: #{tpu_custom_call.1} parent=1 // pred_check_branch
      %4341 = sbr.rel (0) target = $region229
    $region228: #{tpu_custom_call.1} parent=1 // pred_region
      %4342 = dma.done [#allocation36], 2048
    $region229: #{tpu_custom_call.1} parent=1 // pred_fallthru
      _
    // Predicated region
    $region230: #{tpu_custom_call.1} parent=1 // pred_check
      _
    $region231: #{tpu_custom_call.1} parent=1 // pred_check_branch
      %4344 = sbr.rel (0) target = $region233
    $region232: #{tpu_custom_call.1} parent=1 // pred_region
      %4345 = dma.done [#allocation36], 4096
    $region233: #{tpu_custom_call.1} parent=1 // pred_fallthru
      _
    %4346 = vsyncpa [#allocation3], 1
    %4347 = vsyncpa [#allocation6], 1
    %4348 = vsyncpa [#allocation9], 1
    %4349 = vsyncpa [#allocation12], 1
    %4350 = vsyncpa [#allocation15], 1
    %4351 = vsyncpa [#allocation18], 1
    %4352 = vsyncpa [#allocation21], 1
    %4353 = vsyncpa [#allocation24], 1
    %4354 = vsyncpa [#allocation27], 1
    %4355 = vsyncpa [#allocation4], 1
    %4356 = vsyncpa [#allocation30], 1
    %4357 = vsyncpa [#allocation33], 1
    %4358 = vsyncpa [#allocation36], 1

</llo_original>
